<compile_context>
chip_gen: v5e
topology: v5e:2x2
jax: 0.10.0
libtpu: 0.0.40
codegen_flags: <defaults>
</compile_context>

<pallas_src>
import functools

import jax
import jax.numpy as jnp
from jax.experimental import pallas as pl
from jax.experimental.pallas import tpu as pltpu


# ----------------------------------------------------------------------------
# Fused BRITS kernel: one grid step == one full RITS recurrence (one direction)
# ----------------------------------------------------------------------------
def _brits_dir_kernel(
    x_ref, m_ref, d_ref,            # (T, B, F) for this direction (dir axis squeezed)
    norm_ref,                       # (B, F)   norm_val[:, 0, :]
    wg_ref, bg_ref,                 # fused temporal decays: (F, H+F), (1, H+F)
    whist_ref, bhist_ref,           # hist_reg: (H, F), (1, F)
    wfeat_ref, bfeat_ref,           # feat_reg (off-diag masked): (F, F), (1, F)
    wcomb_ref, bcomb_ref,           # combining_weight: (2F, F), (1, F)
    wlstm_ref, blstm_ref,           # fused LSTM: (2F+H, 4H), (1, 4H); gates [i,f,o,g]
    recon_ref, imp_ref,             # (T, B, F)
    h_out_ref,                      # (B, H) final hidden state
    loss_out_ref,                   # (1, 1) reconstruction loss
    *, hidden, n_steps,
):
    H = hidden
    B = x_ref.shape[1]

    norm = norm_ref[...]
    wg, bg = wg_ref[...], bg_ref[...]
    whist, bhist = whist_ref[...], bhist_ref[...]
    wfeat, bfeat = wfeat_ref[...], bfeat_ref[...]
    wcomb, bcomb = wcomb_ref[...], bcomb_ref[...]
    wlstm, blstm = wlstm_ref[...], blstm_ref[...]

    h = jnp.zeros((B, H), jnp.float32)
    c = jnp.zeros((B, H), jnp.float32)
    loss = jnp.zeros((1, 1), jnp.float32)

    # n_steps is small & static -> fully unrolled loop; state lives in vregs.
    for t in range(n_steps):
        x = x_ref[t]
        m = m_ref[t]
        d = d_ref[t]

        # fused temporal decays: [gamma_h | gamma_x] = exp(-relu(d @ Wg + bg))
        gam = jnp.exp(-jnp.maximum(
            jnp.dot(d, wg, preferred_element_type=jnp.float32) + bg, 0.0))
        gamma_h = gam[:, :H]
        gamma_x = gam[:, H:]

        h = h * gamma_h

        # history regression
        x_h = jnp.dot(h, whist, preferred_element_type=jnp.float32) + bhist
        # feature regression
        x_c = m * x + (1.0 - m) * x_h
        z_h = jnp.dot(x_c, wfeat, preferred_element_type=jnp.float32) + bfeat
        # combining weight on cat([gamma_x, m])
        alpha = jax.nn.sigmoid(
            jnp.dot(jnp.concatenate([gamma_x, m], axis=1), wcomb,
                    preferred_element_type=jnp.float32) + bcomb)
        c_h = alpha * z_h + (1.0 - alpha) * x_h

        # calc_mae x3: all three terms share mask m -> one numerator reduce,
        # one denominator reduce, one approx reciprocal (EUP slot).
        xn = x * norm
        num = jnp.sum(
            (jnp.abs(x_h * norm - xn) + jnp.abs(z_h * norm - xn)
             + jnp.abs(c_h * norm - xn)) * m, keepdims=True)
        inv_den = pl.reciprocal(jnp.sum(m, keepdims=True) + 1e-12, approx=True)
        loss = loss + num * inv_den

        c_c = m * x + (1.0 - m) * c_h
        recon_ref[t] = c_h          # VMEM-resident output; HBM writeback happens once

        # LSTMCell on cat([c_c, m]) with hidden h; W_ih and W_hh fused into one
        # matmul, gate columns pre-ordered [i, f, o, g].
        gates = (jnp.dot(jnp.concatenate([c_c, m, h], axis=1), wlstm,
                         preferred_element_type=jnp.float32) + blstm)
        sig = jax.nn.sigmoid(gates[:, :3 * H])       # [ i | f | o ]
        g_g = jnp.tanh(gates[:, 3 * H:])             # g
        i_g = sig[:, :H]
        f_g = sig[:, H:2 * H]
        o_g = sig[:, 2 * H:]
        c = f_g * c + i_g * g_g
        h = o_g * jnp.tanh(c)

    # single bulk imputation write: m * X + (1 - m) * reconstruction
    recon = recon_ref[...]
    m_all = m_ref[...]
    imp_ref[...] = m_all * x_ref[...] + (1.0 - m_all) * recon
    h_out_ref[...] = h
    loss_out_ref[...] = loss * (1.0 / (n_steps * 3.0))


# ----------------------------------------------------------------------------
# Wrapper: one pallas_call covering both directions, XLA epilogue for the
# averaging + consistency loss.
# ----------------------------------------------------------------------------
_PARAM_ORDER = ('wg', 'bg', 'whist', 'bhist', 'wfeat', 'bfeat',
                'wcomb', 'bcomb', 'wlstm', 'blstm')


def brits_forward(inputs, params, hidden):
    """params: pytree with a leading direction axis of size 2 (forward, backward)."""
    norm_val = inputs['norm_val']            # (B, T, F)
    norm0 = norm_val[:, 0, :]                # (B, F)

    def tmaj(a):                             # (B, T, F) -> (T, B, F)
        return jnp.transpose(a, (1, 0, 2))

    X = jnp.stack([tmaj(inputs['forward']['X']),
                   tmaj(inputs['backward']['X'])])                  # (2, T, B, F)
    M = jnp.stack([tmaj(inputs['forward']['missing_mask']),
                   tmaj(inputs['backward']['missing_mask'])])
    D = jnp.stack([tmaj(inputs['forward']['deltas']),
                   tmaj(inputs['backward']['deltas'])])

    _, T, B, F = X.shape
    H = hidden

    def dir_spec(trailing_shape):
        n = len(trailing_shape)
        return pl.BlockSpec((None,) + tuple(trailing_shape),
                            lambda d, _n=n: (d,) + (0,) * _n)

    in_specs = [
        dir_spec((T, B, F)), dir_spec((T, B, F)), dir_spec((T, B, F)),
        pl.BlockSpec((B, F), lambda d: (0, 0)),
    ]
    for name in _PARAM_ORDER:
        in_specs.append(dir_spec(params[name].shape[1:]))

    out_specs = [
        dir_spec((T, B, F)), dir_spec((T, B, F)),
        dir_spec((B, H)),
        dir_spec((1, 1)),
    ]
    out_shape = (
        jax.ShapeDtypeStruct((2, T, B, F), jnp.float32),
        jax.ShapeDtypeStruct((2, T, B, F), jnp.float32),
        jax.ShapeDtypeStruct((2, B, H), jnp.float32),
        jax.ShapeDtypeStruct((2, 1, 1), jnp.float32),
    )

    grid_spec = pltpu.PrefetchScalarGridSpec(
        num_scalar_prefetch=0,
        grid=(2,),
        in_specs=in_specs,
        out_specs=out_specs,
    )

    recon, imp, h_out, loss = pl.pallas_call(
        functools.partial(_brits_dir_kernel, hidden=H, n_steps=T),
        grid_spec=grid_spec,
        out_shape=out_shape,
        compiler_params=pltpu.CompilerParams(
            dimension_semantics=("parallel",)),   # 2 TCs on v7x, no-op elsewhere
    )(X, M, D, norm0, *[params[n] for n in _PARAM_ORDER])

    # Back to (B, T, F). torch _reverse flips dim 1 of every ndim>=2 tensor from
    # the backward RITS (including the (B, H) hidden state along H) — keep that.
    f_imp = jnp.transpose(imp[0], (1, 0, 2))
    b_imp = jnp.flip(jnp.transpose(imp[1], (1, 0, 2)), axis=1)
    f_rec = jnp.transpose(recon[0], (1, 0, 2))
    b_rec = jnp.flip(jnp.transpose(recon[1], (1, 0, 2)), axis=1)
    f_h = h_out[0]
    b_h = jnp.flip(h_out[1], axis=1)
    f_loss = loss[0, 0, 0]
    b_loss = loss[1, 0, 0]

    # Averaging + consistency loss on 256 floats: plain XLA epilogue.
    imputed_data = (f_imp + b_imp) * 0.5
    cnt = f_imp.size
    consistency_loss = (jnp.sum(jnp.abs(f_imp * norm_val - b_imp * norm_val))
                        / (cnt + 1e-12) * 0.1)
    reconstruction_loss = f_loss + b_loss
    return (imputed_data, f_rec, b_rec, f_h, b_h,
            consistency_loss, reconstruction_loss)


# ----------------------------------------------------------------------------
# Deterministic parameters (shapes follow the PyTorch __init__), pre-fused for
# the kernel: stacked decay weight, stacked combining weight, stacked LSTM
# weight with gate order [i, f, o, g].
# ----------------------------------------------------------------------------
def make_rits_params(key, n_features, hidden):
    F, H = n_features, hidden
    keys = jax.random.split(key, 16)
    s = 0.1

    def rnd(k, shape):
        return (s * jax.random.normal(k, shape)).astype(jnp.float32)

    eye = jnp.eye(F, dtype=jnp.float32)

    w_gh = rnd(keys[0], (H, F)); b_gh = rnd(keys[1], (H,))
    w_gx = rnd(keys[2], (F, F)); b_gx = rnd(keys[3], (F,))
    w_hist = rnd(keys[4], (F, H)); b_hist = rnd(keys[5], (F,))
    w_feat = rnd(keys[6], (F, F)); b_feat = rnd(keys[7], (F,))
    w_comb = rnd(keys[8], (F, 2 * F)); b_comb = rnd(keys[9], (F,))
    w_ih = rnd(keys[10], (4 * H, 2 * F)); b_ih = rnd(keys[11], (4 * H,))
    w_hh = rnd(keys[12], (4 * H, H)); b_hh = rnd(keys[13], (4 * H,))

    # fused temporal decays: columns = [gamma_h | gamma_x]; temp_decay_x diag=True
    w_gamma = jnp.concatenate([w_gh.T, (w_gx * eye).T], axis=1)          # (F, H+F)
    b_gamma = jnp.concatenate([b_gh, b_gx]).reshape(1, H + F)

    # fused LSTM on cat([c_c, m, h]); torch gate order [i, f, g, o] -> [i, f, o, g]
    def reorder_gates(a):
        return jnp.concatenate(
            [a[..., :2 * H], a[..., 3 * H:], a[..., 2 * H:3 * H]], axis=-1)

    w_lstm = reorder_gates(jnp.concatenate([w_ih.T, w_hh.T], axis=0))    # (2F+H, 4H)
    b_lstm = reorder_gates((b_ih + b_hh).reshape(1, 4 * H))

    return {
        'wg': w_gamma, 'bg': b_gamma,
        'whist': w_hist.T, 'bhist': b_hist.reshape(1, F),
        'wfeat': (w_feat * (1.0 - eye)).T, 'bfeat': b_feat.reshape(1, F),
        'wcomb': w_comb.T, 'bcomb': b_comb.reshape(1, F),
        'wlstm': w_lstm, 'blstm': b_lstm,
    }


def stack_params(pf, pb):
    return jax.tree_util.tree_map(lambda a, b: jnp.stack([a, b]), pf, pb)


if __name__ == "__main__":
    B, T, F, H = 2, 8, 4, 32   # batch, n_steps, n_features, rnn_hidden_size

    key = jax.random.PRNGKey(0)
    k_data, k_mask, k_delta, k_norm, k_pf, k_pb, k_db = jax.random.split(key, 7)

    X_f = jax.random.normal(k_data, (B, T, F), dtype=jnp.float32)
    mask_f = jax.random.bernoulli(k_mask, 0.8, (B, T, F)).astype(jnp.float32)
    deltas_f = jax.random.uniform(k_delta, (B, T, F), dtype=jnp.float32)

    # backward direction: time-reversed values/masks, its own deltas
    X_b = jnp.flip(X_f, axis=1)
    mask_b = jnp.flip(mask_f, axis=1)
    deltas_b = jax.random.uniform(k_db, (B, T, F), dtype=jnp.float32)

    norm_val = 0.5 + jax.random.uniform(k_norm, (B, T, F), dtype=jnp.float32)

    inputs = {
        'forward': {'X': X_f, 'missing_mask': mask_f, 'deltas': deltas_f},
        'backward': {'X': X_b, 'missing_mask': mask_b, 'deltas': deltas_b},
        'norm_val': norm_val,
    }

    params = stack_params(make_rits_params(k_pf, F, H),
                          make_rits_params(k_pb, F, H))

    outs = jax.block_until_ready(brits_forward(inputs, params, H))

    (imputed_data, f_rec, b_rec, f_h, b_h, cons_loss, rec_loss) = outs
    assert imputed_data.shape == (B, T, F)
    assert f_rec.shape == (B, T, F) and b_rec.shape == (B, T, F)
    assert f_h.shape == (B, H) and b_h.shape == (B, H)
    assert cons_loss.shape == () and rec_loss.shape == ()
    for o in (imputed_data, f_rec, b_rec, f_h, b_h, cons_loss, rec_loss):
        assert bool(jnp.all(jnp.isfinite(o)))
    print("KERNEL_OK")
</pallas_src>

<mosaic_0001>
module attributes {stable_mosaic.version = 11 : i64} {
  func.func @_brits_dir_kernel(%arg0: i32, %arg1: memref<1x8x2x4xf32, #tpu.memory_space<vmem>>, %arg2: memref<1x8x2x4xf32, #tpu.memory_space<vmem>>, %arg3: memref<1x8x2x4xf32, #tpu.memory_space<vmem>>, %arg4: memref<2x4xf32, #tpu.memory_space<vmem>>, %arg5: memref<1x4x36xf32, #tpu.memory_space<vmem>>, %arg6: memref<1x1x36xf32, #tpu.memory_space<vmem>>, %arg7: memref<1x32x4xf32, #tpu.memory_space<vmem>>, %arg8: memref<1x1x4xf32, #tpu.memory_space<vmem>>, %arg9: memref<1x4x4xf32, #tpu.memory_space<vmem>>, %arg10: memref<1x1x4xf32, #tpu.memory_space<vmem>>, %arg11: memref<1x8x4xf32, #tpu.memory_space<vmem>>, %arg12: memref<1x1x4xf32, #tpu.memory_space<vmem>>, %arg13: memref<1x40x128xf32, #tpu.memory_space<vmem>>, %arg14: memref<1x1x128xf32, #tpu.memory_space<vmem>>, %arg15: memref<1x8x2x4xf32, #tpu.memory_space<vmem>>, %arg16: memref<1x8x2x4xf32, #tpu.memory_space<vmem>>, %arg17: memref<1x2x32xf32, #tpu.memory_space<vmem>>, %arg18: memref<1x1x1xf32, #tpu.memory_space<vmem>>) attributes {dimension_semantics = [#tpu.dimension_semantics<parallel>], iteration_bounds = array<i64: 2>, scalar_prefetch = 0 : i64, scratch_operands = 0 : i64, tpu.core_type = #tpu.core_type<tc>, window_params = [{transform_indices = @transform_0, window_bounds = array<i64: 1, 8, 2, 4>}, {transform_indices = @transform_1, window_bounds = array<i64: 1, 8, 2, 4>}, {transform_indices = @transform_2, window_bounds = array<i64: 1, 8, 2, 4>}, {pipeline_mode = #tpu.pipeline_mode<synchronous>, transform_indices = @transform_3, window_bounds = array<i64: 2, 4>}, {transform_indices = @transform_4, window_bounds = array<i64: 1, 4, 36>}, {transform_indices = @transform_5, window_bounds = array<i64: 1, 1, 36>}, {transform_indices = @transform_6, window_bounds = array<i64: 1, 32, 4>}, {transform_indices = @transform_7, window_bounds = array<i64: 1, 1, 4>}, {transform_indices = @transform_8, window_bounds = array<i64: 1, 4, 4>}, {transform_indices = @transform_9, window_bounds = array<i64: 1, 1, 4>}, {transform_indices = @transform_10, window_bounds = array<i64: 1, 8, 4>}, {transform_indices = @transform_11, window_bounds = array<i64: 1, 1, 4>}, {transform_indices = @transform_12, window_bounds = array<i64: 1, 40, 128>}, {transform_indices = @transform_13, window_bounds = array<i64: 1, 1, 128>}, {transform_indices = @transform_14, window_bounds = array<i64: 1, 8, 2, 4>}, {transform_indices = @transform_15, window_bounds = array<i64: 1, 8, 2, 4>}, {transform_indices = @transform_16, window_bounds = array<i64: 1, 2, 32>}, {transform_indices = @transform_17, window_bounds = array<i64: 1, 1, 1>}]} {
    %c0 = arith.constant 0 : index
    %c0_0 = arith.constant 0 : index
    %0 = vector.load %arg4[%c0, %c0_0] : memref<2x4xf32, #tpu.memory_space<vmem>>, vector<2x4xf32>
    %c0_1 = arith.constant 0 : index
    %c0_2 = arith.constant 0 : index
    %c0_3 = arith.constant 0 : index
    %1 = vector.load %arg5[%c0_1, %c0_2, %c0_3] : memref<1x4x36xf32, #tpu.memory_space<vmem>>, vector<1x4x36xf32>
    %2 = vector.shape_cast %1 : vector<1x4x36xf32> to vector<4x36xf32>
    %c0_4 = arith.constant 0 : index
    %c0_5 = arith.constant 0 : index
    %c0_6 = arith.constant 0 : index
    %3 = vector.load %arg6[%c0_4, %c0_5, %c0_6] : memref<1x1x36xf32, #tpu.memory_space<vmem>>, vector<1x1x36xf32>
    %4 = vector.shape_cast %3 : vector<1x1x36xf32> to vector<1x36xf32>
    %c0_7 = arith.constant 0 : index
    %c0_8 = arith.constant 0 : index
    %c0_9 = arith.constant 0 : index
    %5 = vector.load %arg7[%c0_7, %c0_8, %c0_9] : memref<1x32x4xf32, #tpu.memory_space<vmem>>, vector<1x32x4xf32>
    %6 = vector.shape_cast %5 : vector<1x32x4xf32> to vector<32x4xf32>
    %c0_10 = arith.constant 0 : index
    %c0_11 = arith.constant 0 : index
    %c0_12 = arith.constant 0 : index
    %7 = vector.load %arg8[%c0_10, %c0_11, %c0_12] : memref<1x1x4xf32, #tpu.memory_space<vmem>>, vector<1x1x4xf32>
    %8 = vector.shape_cast %7 : vector<1x1x4xf32> to vector<1x4xf32>
    %c0_13 = arith.constant 0 : index
    %c0_14 = arith.constant 0 : index
    %c0_15 = arith.constant 0 : index
    %9 = vector.load %arg9[%c0_13, %c0_14, %c0_15] : memref<1x4x4xf32, #tpu.memory_space<vmem>>, vector<1x4x4xf32>
    %10 = vector.shape_cast %9 : vector<1x4x4xf32> to vector<4x4xf32>
    %c0_16 = arith.constant 0 : index
    %c0_17 = arith.constant 0 : index
    %c0_18 = arith.constant 0 : index
    %11 = vector.load %arg10[%c0_16, %c0_17, %c0_18] : memref<1x1x4xf32, #tpu.memory_space<vmem>>, vector<1x1x4xf32>
    %12 = vector.shape_cast %11 : vector<1x1x4xf32> to vector<1x4xf32>
    %c0_19 = arith.constant 0 : index
    %c0_20 = arith.constant 0 : index
    %c0_21 = arith.constant 0 : index
    %13 = vector.load %arg11[%c0_19, %c0_20, %c0_21] : memref<1x8x4xf32, #tpu.memory_space<vmem>>, vector<1x8x4xf32>
    %14 = vector.shape_cast %13 : vector<1x8x4xf32> to vector<8x4xf32>
    %c0_22 = arith.constant 0 : index
    %c0_23 = arith.constant 0 : index
    %c0_24 = arith.constant 0 : index
    %15 = vector.load %arg12[%c0_22, %c0_23, %c0_24] : memref<1x1x4xf32, #tpu.memory_space<vmem>>, vector<1x1x4xf32>
    %16 = vector.shape_cast %15 : vector<1x1x4xf32> to vector<1x4xf32>
    %c0_25 = arith.constant 0 : index
    %c0_26 = arith.constant 0 : index
    %c0_27 = arith.constant 0 : index
    %17 = vector.load %arg13[%c0_25, %c0_26, %c0_27] : memref<1x40x128xf32, #tpu.memory_space<vmem>>, vector<1x40x128xf32>
    %18 = vector.shape_cast %17 : vector<1x40x128xf32> to vector<40x128xf32>
    %c0_28 = arith.constant 0 : index
    %c0_29 = arith.constant 0 : index
    %c0_30 = arith.constant 0 : index
    %19 = vector.load %arg14[%c0_28, %c0_29, %c0_30] : memref<1x1x128xf32, #tpu.memory_space<vmem>>, vector<1x1x128xf32>
    %20 = vector.shape_cast %19 : vector<1x1x128xf32> to vector<1x128xf32>
    %cst = arith.constant 0.000000e+00 : f32
    %21 = vector.broadcast %cst : f32 to vector<2x32xf32>
    %cst_31 = arith.constant 0.000000e+00 : f32
    %22 = vector.broadcast %cst_31 : f32 to vector<2x32xf32>
    %cst_32 = arith.constant 0.000000e+00 : f32
    %23 = vector.broadcast %cst_32 : f32 to vector<1x1xf32>
    %c0_33 = arith.constant 0 : index
    %c0_34 = arith.constant 0 : index
    %c0_35 = arith.constant 0 : index
    %c0_36 = arith.constant 0 : index
    %24 = vector.load %arg1[%c0_33, %c0_34, %c0_35, %c0_36] : memref<1x8x2x4xf32, #tpu.memory_space<vmem>>, vector<1x1x2x4xf32>
    %25 = vector.shape_cast %24 : vector<1x1x2x4xf32> to vector<2x4xf32>
    %c0_37 = arith.constant 0 : index
    %c0_38 = arith.constant 0 : index
    %c0_39 = arith.constant 0 : index
    %c0_40 = arith.constant 0 : index
    %26 = vector.load %arg2[%c0_37, %c0_38, %c0_39, %c0_40] : memref<1x8x2x4xf32, #tpu.memory_space<vmem>>, vector<1x1x2x4xf32>
    %27 = vector.shape_cast %26 : vector<1x1x2x4xf32> to vector<2x4xf32>
    %c0_41 = arith.constant 0 : index
    %c0_42 = arith.constant 0 : index
    %c0_43 = arith.constant 0 : index
    %c0_44 = arith.constant 0 : index
    %28 = vector.load %arg3[%c0_41, %c0_42, %c0_43, %c0_44] : memref<1x8x2x4xf32, #tpu.memory_space<vmem>>, vector<1x1x2x4xf32>
    %29 = vector.shape_cast %28 : vector<1x1x2x4xf32> to vector<2x4xf32>
    %cst_45 = arith.constant dense<0.000000e+00> : vector<2x36xf32>
    %30 = tpu.matmul %29, %2, %cst_45 {dimension_numbers = #tpu.dot_dimension_numbers<[1], [0], [0], [1], [0, 0, 1, 1], [], []>} : vector<2x4xf32>, vector<4x36xf32>, vector<2x36xf32> -> vector<2x36xf32>
    %31 = vector.broadcast %4 : vector<1x36xf32> to vector<2x36xf32>
    %32 = arith.addf %30, %31 : vector<2x36xf32>
    %cst_46 = arith.constant 0.000000e+00 : f32
    %33 = vector.broadcast %cst_46 : f32 to vector<2x36xf32>
    %34 = arith.maximumf %32, %33 : vector<2x36xf32>
    %cst_47 = arith.constant 0.000000e+00 : f32
    %35 = vector.broadcast %cst_47 : f32 to vector<2x36xf32>
    %36 = arith.subf %35, %34 : vector<2x36xf32>
    %37 = math.exp %36 : vector<2x36xf32>
    %38 = vector.extract_strided_slice %37 {offsets = [0, 0], sizes = [2, 32], strides = [1, 1]} : vector<2x36xf32> to vector<2x32xf32>
    %39 = vector.extract_strided_slice %37 {offsets = [0, 32], sizes = [2, 4], strides = [1, 1]} : vector<2x36xf32> to vector<2x4xf32>
    %40 = arith.mulf %21, %38 : vector<2x32xf32>
    %cst_48 = arith.constant dense<0.000000e+00> : vector<2x4xf32>
    %41 = tpu.matmul %40, %6, %cst_48 {dimension_numbers = #tpu.dot_dimension_numbers<[1], [0], [0], [1], [0, 0, 1, 1], [], []>} : vector<2x32xf32>, vector<32x4xf32>, vector<2x4xf32> -> vector<2x4xf32>
    %42 = vector.broadcast %8 : vector<1x4xf32> to vector<2x4xf32>
    %43 = arith.addf %41, %42 : vector<2x4xf32>
    %44 = arith.mulf %27, %25 : vector<2x4xf32>
    %cst_49 = arith.constant 1.000000e+00 : f32
    %45 = vector.broadcast %cst_49 : f32 to vector<2x4xf32>
    %46 = arith.subf %45, %27 : vector<2x4xf32>
    %47 = arith.mulf %46, %43 : vector<2x4xf32>
    %48 = arith.addf %44, %47 : vector<2x4xf32>
    %cst_50 = arith.constant dense<0.000000e+00> : vector<2x4xf32>
    %49 = tpu.matmul %48, %10, %cst_50 {dimension_numbers = #tpu.dot_dimension_numbers<[1], [0], [0], [1], [0, 0, 1, 1], [], []>} : vector<2x4xf32>, vector<4x4xf32>, vector<2x4xf32> -> vector<2x4xf32>
    %50 = vector.broadcast %12 : vector<1x4xf32> to vector<2x4xf32>
    %51 = arith.addf %49, %50 : vector<2x4xf32>
    %52 = tpu.concatenate %39, %27 in 1 : vector<2x4xf32>, vector<2x4xf32> -> vector<2x8xf32>
    %cst_51 = arith.constant dense<0.000000e+00> : vector<2x4xf32>
    %53 = tpu.matmul %52, %14, %cst_51 {dimension_numbers = #tpu.dot_dimension_numbers<[1], [0], [0], [1], [0, 0, 1, 1], [], []>} : vector<2x8xf32>, vector<8x4xf32>, vector<2x4xf32> -> vector<2x4xf32>
    %54 = vector.broadcast %16 : vector<1x4xf32> to vector<2x4xf32>
    %55 = arith.addf %53, %54 : vector<2x4xf32>
    %56 = arith.negf %55 : vector<2x4xf32>
    %57 = math.exp %56 : vector<2x4xf32>
    %cst_52 = arith.constant 1.000000e+00 : f32
    %58 = vector.broadcast %cst_52 : f32 to vector<2x4xf32>
    %59 = arith.addf %58, %57 : vector<2x4xf32>
    %60 = arith.divf %58, %59 : vector<2x4xf32>
    %61 = arith.mulf %60, %51 : vector<2x4xf32>
    %cst_53 = arith.constant 1.000000e+00 : f32
    %62 = vector.broadcast %cst_53 : f32 to vector<2x4xf32>
    %63 = arith.subf %62, %60 : vector<2x4xf32>
    %64 = arith.mulf %63, %43 : vector<2x4xf32>
    %65 = arith.addf %61, %64 : vector<2x4xf32>
    %66 = arith.mulf %25, %0 : vector<2x4xf32>
    %67 = arith.mulf %43, %0 : vector<2x4xf32>
    %68 = arith.subf %67, %66 : vector<2x4xf32>
    %69 = math.absf %68 : vector<2x4xf32>
    %70 = arith.mulf %51, %0 : vector<2x4xf32>
    %71 = arith.subf %70, %66 : vector<2x4xf32>
    %72 = math.absf %71 : vector<2x4xf32>
    %73 = arith.addf %69, %72 : vector<2x4xf32>
    %74 = arith.mulf %65, %0 : vector<2x4xf32>
    %75 = arith.subf %74, %66 : vector<2x4xf32>
    %76 = math.absf %75 : vector<2x4xf32>
    %77 = arith.addf %73, %76 : vector<2x4xf32>
    %78 = arith.mulf %77, %27 : vector<2x4xf32>
    %79 = vector.shape_cast %78 : vector<2x4xf32> to vector<1x2x4xf32>
    %cst_54 = arith.constant dense<0.000000e+00> : vector<1xf32>
    %80 = vector.multi_reduction <add>, %79, %cst_54 [1, 2] : vector<1x2x4xf32> to vector<1xf32>
    %81 = vector.shape_cast %80 : vector<1xf32> to vector<1x1x1xf32>
    %82 = vector.extract %81[0, 0, 0] : f32 from vector<1x1x1xf32>
    %83 = vector.broadcast %82 : f32 to vector<1x1xf32>
    %84 = vector.shape_cast %27 : vector<2x4xf32> to vector<1x2x4xf32>
    %cst_55 = arith.constant dense<0.000000e+00> : vector<1xf32>
    %85 = vector.multi_reduction <add>, %84, %cst_55 [1, 2] : vector<1x2x4xf32> to vector<1xf32>
    %86 = vector.shape_cast %85 : vector<1xf32> to vector<1x1x1xf32>
    %87 = vector.extract %86[0, 0, 0] : f32 from vector<1x1x1xf32>
    %88 = vector.broadcast %87 : f32 to vector<1x1xf32>
    %cst_56 = arith.constant 9.99999996E-13 : f32
    %89 = vector.broadcast %cst_56 : f32 to vector<1x1xf32>
    %90 = arith.addf %88, %89 : vector<1x1xf32>
    %91 = tpu.reciprocal %90 {approx = true} : vector<1x1xf32> -> vector<1x1xf32>
    %92 = arith.mulf %83, %91 : vector<1x1xf32>
    %93 = arith.addf %23, %92 : vector<1x1xf32>
    %94 = arith.mulf %27, %25 : vector<2x4xf32>
    %cst_57 = arith.constant 1.000000e+00 : f32
    %95 = vector.broadcast %cst_57 : f32 to vector<2x4xf32>
    %96 = arith.subf %95, %27 : vector<2x4xf32>
    %97 = arith.mulf %96, %65 : vector<2x4xf32>
    %98 = arith.addf %94, %97 : vector<2x4xf32>
    %c0_58 = arith.constant 0 : index
    %c0_59 = arith.constant 0 : index
    %c0_60 = arith.constant 0 : index
    %c0_61 = arith.constant 0 : index
    %99 = vector.load %arg15[%c0_58, %c0_59, %c0_60, %c0_61] : memref<1x8x2x4xf32, #tpu.memory_space<vmem>>, vector<1x1x2x4xf32>
    %100 = vector.shape_cast %99 : vector<1x1x2x4xf32> to vector<2x4xf32>
    %101 = vector.shape_cast %65 : vector<2x4xf32> to vector<1x1x2x4xf32>
    tpu.vector_store %arg15[%c0_58, %c0_59, %c0_60, %c0_61], %101 {strides = array<i32>} : memref<1x8x2x4xf32, #tpu.memory_space<vmem>>, vector<1x1x2x4xf32>,
    %102 = tpu.concatenate %98, %27, %40 in 1 : vector<2x4xf32>, vector<2x4xf32>, vector<2x32xf32> -> vector<2x40xf32>
    %cst_62 = arith.constant dense<0.000000e+00> : vector<2x128xf32>
    %103 = tpu.matmul %102, %18, %cst_62 {dimension_numbers = #tpu.dot_dimension_numbers<[1], [0], [0], [1], [0, 0, 1, 1], [], []>} : vector<2x40xf32>, vector<40x128xf32>, vector<2x128xf32> -> vector<2x128xf32>
    %104 = vector.broadcast %20 : vector<1x128xf32> to vector<2x128xf32>
    %105 = arith.addf %103, %104 : vector<2x128xf32>
    %106 = vector.extract_strided_slice %105 {offsets = [0, 0], sizes = [2, 96], strides = [1, 1]} : vector<2x128xf32> to vector<2x96xf32>
    %107 = arith.negf %106 : vector<2x96xf32>
    %108 = math.exp %107 : vector<2x96xf32>
    %cst_63 = arith.constant 1.000000e+00 : f32
    %109 = vector.broadcast %cst_63 : f32 to vector<2x96xf32>
    %110 = arith.addf %109, %108 : vector<2x96xf32>
    %111 = arith.divf %109, %110 : vector<2x96xf32>
    %112 = vector.extract_strided_slice %105 {offsets = [0, 96], sizes = [2, 32], strides = [1, 1]} : vector<2x128xf32> to vector<2x32xf32>
    %113 = math.tanh %112 : vector<2x32xf32>
    %114 = vector.extract_strided_slice %111 {offsets = [0, 0], sizes = [2, 32], strides = [1, 1]} : vector<2x96xf32> to vector<2x32xf32>
    %115 = vector.extract_strided_slice %111 {offsets = [0, 32], sizes = [2, 32], strides = [1, 1]} : vector<2x96xf32> to vector<2x32xf32>
    %116 = vector.extract_strided_slice %111 {offsets = [0, 64], sizes = [2, 32], strides = [1, 1]} : vector<2x96xf32> to vector<2x32xf32>
    %117 = arith.mulf %115, %22 : vector<2x32xf32>
    %118 = arith.mulf %114, %113 : vector<2x32xf32>
    %119 = arith.addf %117, %118 : vector<2x32xf32>
    %120 = math.tanh %119 : vector<2x32xf32>
    %121 = arith.mulf %116, %120 : vector<2x32xf32>
    %c0_64 = arith.constant 0 : index
    %c1 = arith.constant 1 : index
    %c0_65 = arith.constant 0 : index
    %c0_66 = arith.constant 0 : index
    %122 = vector.load %arg1[%c0_64, %c1, %c0_65, %c0_66] : memref<1x8x2x4xf32, #tpu.memory_space<vmem>>, vector<1x1x2x4xf32>
    %123 = vector.shape_cast %122 : vector<1x1x2x4xf32> to vector<2x4xf32>
    %c0_67 = arith.constant 0 : index
    %c1_68 = arith.constant 1 : index
    %c0_69 = arith.constant 0 : index
    %c0_70 = arith.constant 0 : index
    %124 = vector.load %arg2[%c0_67, %c1_68, %c0_69, %c0_70] : memref<1x8x2x4xf32, #tpu.memory_space<vmem>>, vector<1x1x2x4xf32>
    %125 = vector.shape_cast %124 : vector<1x1x2x4xf32> to vector<2x4xf32>
    %c0_71 = arith.constant 0 : index
    %c1_72 = arith.constant 1 : index
    %c0_73 = arith.constant 0 : index
    %c0_74 = arith.constant 0 : index
    %126 = vector.load %arg3[%c0_71, %c1_72, %c0_73, %c0_74] : memref<1x8x2x4xf32, #tpu.memory_space<vmem>>, vector<1x1x2x4xf32>
    %127 = vector.shape_cast %126 : vector<1x1x2x4xf32> to vector<2x4xf32>
    %cst_75 = arith.constant dense<0.000000e+00> : vector<2x36xf32>
    %128 = tpu.matmul %127, %2, %cst_75 {dimension_numbers = #tpu.dot_dimension_numbers<[1], [0], [0], [1], [0, 0, 1, 1], [], []>} : vector<2x4xf32>, vector<4x36xf32>, vector<2x36xf32> -> vector<2x36xf32>
    %129 = vector.broadcast %4 : vector<1x36xf32> to vector<2x36xf32>
    %130 = arith.addf %128, %129 : vector<2x36xf32>
    %cst_76 = arith.constant 0.000000e+00 : f32
    %131 = vector.broadcast %cst_76 : f32 to vector<2x36xf32>
    %132 = arith.maximumf %130, %131 : vector<2x36xf32>
    %cst_77 = arith.constant 0.000000e+00 : f32
    %133 = vector.broadcast %cst_77 : f32 to vector<2x36xf32>
    %134 = arith.subf %133, %132 : vector<2x36xf32>
    %135 = math.exp %134 : vector<2x36xf32>
    %136 = vector.extract_strided_slice %135 {offsets = [0, 0], sizes = [2, 32], strides = [1, 1]} : vector<2x36xf32> to vector<2x32xf32>
    %137 = vector.extract_strided_slice %135 {offsets = [0, 32], sizes = [2, 4], strides = [1, 1]} : vector<2x36xf32> to vector<2x4xf32>
    %138 = arith.mulf %121, %136 : vector<2x32xf32>
    %cst_78 = arith.constant dense<0.000000e+00> : vector<2x4xf32>
    %139 = tpu.matmul %138, %6, %cst_78 {dimension_numbers = #tpu.dot_dimension_numbers<[1], [0], [0], [1], [0, 0, 1, 1], [], []>} : vector<2x32xf32>, vector<32x4xf32>, vector<2x4xf32> -> vector<2x4xf32>
    %140 = vector.broadcast %8 : vector<1x4xf32> to vector<2x4xf32>
    %141 = arith.addf %139, %140 : vector<2x4xf32>
    %142 = arith.mulf %125, %123 : vector<2x4xf32>
    %cst_79 = arith.constant 1.000000e+00 : f32
    %143 = vector.broadcast %cst_79 : f32 to vector<2x4xf32>
    %144 = arith.subf %143, %125 : vector<2x4xf32>
    %145 = arith.mulf %144, %141 : vector<2x4xf32>
    %146 = arith.addf %142, %145 : vector<2x4xf32>
    %cst_80 = arith.constant dense<0.000000e+00> : vector<2x4xf32>
    %147 = tpu.matmul %146, %10, %cst_80 {dimension_numbers = #tpu.dot_dimension_numbers<[1], [0], [0], [1], [0, 0, 1, 1], [], []>} : vector<2x4xf32>, vector<4x4xf32>, vector<2x4xf32> -> vector<2x4xf32>
    %148 = vector.broadcast %12 : vector<1x4xf32> to vector<2x4xf32>
    %149 = arith.addf %147, %148 : vector<2x4xf32>
    %150 = tpu.concatenate %137, %125 in 1 : vector<2x4xf32>, vector<2x4xf32> -> vector<2x8xf32>
    %cst_81 = arith.constant dense<0.000000e+00> : vector<2x4xf32>
    %151 = tpu.matmul %150, %14, %cst_81 {dimension_numbers = #tpu.dot_dimension_numbers<[1], [0], [0], [1], [0, 0, 1, 1], [], []>} : vector<2x8xf32>, vector<8x4xf32>, vector<2x4xf32> -> vector<2x4xf32>
    %152 = vector.broadcast %16 : vector<1x4xf32> to vector<2x4xf32>
    %153 = arith.addf %151, %152 : vector<2x4xf32>
    %154 = arith.negf %153 : vector<2x4xf32>
    %155 = math.exp %154 : vector<2x4xf32>
    %cst_82 = arith.constant 1.000000e+00 : f32
    %156 = vector.broadcast %cst_82 : f32 to vector<2x4xf32>
    %157 = arith.addf %156, %155 : vector<2x4xf32>
    %158 = arith.divf %156, %157 : vector<2x4xf32>
    %159 = arith.mulf %158, %149 : vector<2x4xf32>
    %cst_83 = arith.constant 1.000000e+00 : f32
    %160 = vector.broadcast %cst_83 : f32 to vector<2x4xf32>
    %161 = arith.subf %160, %158 : vector<2x4xf32>
    %162 = arith.mulf %161, %141 : vector<2x4xf32>
    %163 = arith.addf %159, %162 : vector<2x4xf32>
    %164 = arith.mulf %123, %0 : vector<2x4xf32>
    %165 = arith.mulf %141, %0 : vector<2x4xf32>
    %166 = arith.subf %165, %164 : vector<2x4xf32>
    %167 = math.absf %166 : vector<2x4xf32>
    %168 = arith.mulf %149, %0 : vector<2x4xf32>
    %169 = arith.subf %168, %164 : vector<2x4xf32>
    %170 = math.absf %169 : vector<2x4xf32>
    %171 = arith.addf %167, %170 : vector<2x4xf32>
    %172 = arith.mulf %163, %0 : vector<2x4xf32>
    %173 = arith.subf %172, %164 : vector<2x4xf32>
    %174 = math.absf %173 : vector<2x4xf32>
    %175 = arith.addf %171, %174 : vector<2x4xf32>
    %176 = arith.mulf %175, %125 : vector<2x4xf32>
    %177 = vector.shape_cast %176 : vector<2x4xf32> to vector<1x2x4xf32>
    %cst_84 = arith.constant dense<0.000000e+00> : vector<1xf32>
    %178 = vector.multi_reduction <add>, %177, %cst_84 [1, 2] : vector<1x2x4xf32> to vector<1xf32>
    %179 = vector.shape_cast %178 : vector<1xf32> to vector<1x1x1xf32>
    %180 = vector.extract %179[0, 0, 0] : f32 from vector<1x1x1xf32>
    %181 = vector.broadcast %180 : f32 to vector<1x1xf32>
    %182 = vector.shape_cast %125 : vector<2x4xf32> to vector<1x2x4xf32>
    %cst_85 = arith.constant dense<0.000000e+00> : vector<1xf32>
    %183 = vector.multi_reduction <add>, %182, %cst_85 [1, 2] : vector<1x2x4xf32> to vector<1xf32>
    %184 = vector.shape_cast %183 : vector<1xf32> to vector<1x1x1xf32>
    %185 = vector.extract %184[0, 0, 0] : f32 from vector<1x1x1xf32>
    %186 = vector.broadcast %185 : f32 to vector<1x1xf32>
    %cst_86 = arith.constant 9.99999996E-13 : f32
    %187 = vector.broadcast %cst_86 : f32 to vector<1x1xf32>
    %188 = arith.addf %186, %187 : vector<1x1xf32>
    %189 = tpu.reciprocal %188 {approx = true} : vector<1x1xf32> -> vector<1x1xf32>
    %190 = arith.mulf %181, %189 : vector<1x1xf32>
    %191 = arith.addf %93, %190 : vector<1x1xf32>
    %192 = arith.mulf %125, %123 : vector<2x4xf32>
    %cst_87 = arith.constant 1.000000e+00 : f32
    %193 = vector.broadcast %cst_87 : f32 to vector<2x4xf32>
    %194 = arith.subf %193, %125 : vector<2x4xf32>
    %195 = arith.mulf %194, %163 : vector<2x4xf32>
    %196 = arith.addf %192, %195 : vector<2x4xf32>
    %c0_88 = arith.constant 0 : index
    %c1_89 = arith.constant 1 : index
    %c0_90 = arith.constant 0 : index
    %c0_91 = arith.constant 0 : index
    %197 = vector.load %arg15[%c0_88, %c1_89, %c0_90, %c0_91] : memref<1x8x2x4xf32, #tpu.memory_space<vmem>>, vector<1x1x2x4xf32>
    %198 = vector.shape_cast %197 : vector<1x1x2x4xf32> to vector<2x4xf32>
    %199 = vector.shape_cast %163 : vector<2x4xf32> to vector<1x1x2x4xf32>
    tpu.vector_store %arg15[%c0_88, %c1_89, %c0_90, %c0_91], %199 {strides = array<i32>} : memref<1x8x2x4xf32, #tpu.memory_space<vmem>>, vector<1x1x2x4xf32>,
    %200 = tpu.concatenate %196, %125, %138 in 1 : vector<2x4xf32>, vector<2x4xf32>, vector<2x32xf32> -> vector<2x40xf32>
    %cst_92 = arith.constant dense<0.000000e+00> : vector<2x128xf32>
    %201 = tpu.matmul %200, %18, %cst_92 {dimension_numbers = #tpu.dot_dimension_numbers<[1], [0], [0], [1], [0, 0, 1, 1], [], []>} : vector<2x40xf32>, vector<40x128xf32>, vector<2x128xf32> -> vector<2x128xf32>
    %202 = vector.broadcast %20 : vector<1x128xf32> to vector<2x128xf32>
    %203 = arith.addf %201, %202 : vector<2x128xf32>
    %204 = vector.extract_strided_slice %203 {offsets = [0, 0], sizes = [2, 96], strides = [1, 1]} : vector<2x128xf32> to vector<2x96xf32>
    %205 = arith.negf %204 : vector<2x96xf32>
    %206 = math.exp %205 : vector<2x96xf32>
    %cst_93 = arith.constant 1.000000e+00 : f32
    %207 = vector.broadcast %cst_93 : f32 to vector<2x96xf32>
    %208 = arith.addf %207, %206 : vector<2x96xf32>
    %209 = arith.divf %207, %208 : vector<2x96xf32>
    %210 = vector.extract_strided_slice %203 {offsets = [0, 96], sizes = [2, 32], strides = [1, 1]} : vector<2x128xf32> to vector<2x32xf32>
    %211 = math.tanh %210 : vector<2x32xf32>
    %212 = vector.extract_strided_slice %209 {offsets = [0, 0], sizes = [2, 32], strides = [1, 1]} : vector<2x96xf32> to vector<2x32xf32>
    %213 = vector.extract_strided_slice %209 {offsets = [0, 32], sizes = [2, 32], strides = [1, 1]} : vector<2x96xf32> to vector<2x32xf32>
    %214 = vector.extract_strided_slice %209 {offsets = [0, 64], sizes = [2, 32], strides = [1, 1]} : vector<2x96xf32> to vector<2x32xf32>
    %215 = arith.mulf %213, %119 : vector<2x32xf32>
    %216 = arith.mulf %212, %211 : vector<2x32xf32>
    %217 = arith.addf %215, %216 : vector<2x32xf32>
    %218 = math.tanh %217 : vector<2x32xf32>
    %219 = arith.mulf %214, %218 : vector<2x32xf32>
    %c0_94 = arith.constant 0 : index
    %c2 = arith.constant 2 : index
    %c0_95 = arith.constant 0 : index
    %c0_96 = arith.constant 0 : index
    %220 = vector.load %arg1[%c0_94, %c2, %c0_95, %c0_96] : memref<1x8x2x4xf32, #tpu.memory_space<vmem>>, vector<1x1x2x4xf32>
    %221 = vector.shape_cast %220 : vector<1x1x2x4xf32> to vector<2x4xf32>
    %c0_97 = arith.constant 0 : index
    %c2_98 = arith.constant 2 : index
    %c0_99 = arith.constant 0 : index
    %c0_100 = arith.constant 0 : index
    %222 = vector.load %arg2[%c0_97, %c2_98, %c0_99, %c0_100] : memref<1x8x2x4xf32, #tpu.memory_space<vmem>>, vector<1x1x2x4xf32>
    %223 = vector.shape_cast %222 : vector<1x1x2x4xf32> to vector<2x4xf32>
    %c0_101 = arith.constant 0 : index
    %c2_102 = arith.constant 2 : index
    %c0_103 = arith.constant 0 : index
    %c0_104 = arith.constant 0 : index
    %224 = vector.load %arg3[%c0_101, %c2_102, %c0_103, %c0_104] : memref<1x8x2x4xf32, #tpu.memory_space<vmem>>, vector<1x1x2x4xf32>
    %225 = vector.shape_cast %224 : vector<1x1x2x4xf32> to vector<2x4xf32>
    %cst_105 = arith.constant dense<0.000000e+00> : vector<2x36xf32>
    %226 = tpu.matmul %225, %2, %cst_105 {dimension_numbers = #tpu.dot_dimension_numbers<[1], [0], [0], [1], [0, 0, 1, 1], [], []>} : vector<2x4xf32>, vector<4x36xf32>, vector<2x36xf32> -> vector<2x36xf32>
    %227 = vector.broadcast %4 : vector<1x36xf32> to vector<2x36xf32>
    %228 = arith.addf %226, %227 : vector<2x36xf32>
    %cst_106 = arith.constant 0.000000e+00 : f32
    %229 = vector.broadcast %cst_106 : f32 to vector<2x36xf32>
    %230 = arith.maximumf %228, %229 : vector<2x36xf32>
    %cst_107 = arith.constant 0.000000e+00 : f32
    %231 = vector.broadcast %cst_107 : f32 to vector<2x36xf32>
    %232 = arith.subf %231, %230 : vector<2x36xf32>
    %233 = math.exp %232 : vector<2x36xf32>
    %234 = vector.extract_strided_slice %233 {offsets = [0, 0], sizes = [2, 32], strides = [1, 1]} : vector<2x36xf32> to vector<2x32xf32>
    %235 = vector.extract_strided_slice %233 {offsets = [0, 32], sizes = [2, 4], strides = [1, 1]} : vector<2x36xf32> to vector<2x4xf32>
    %236 = arith.mulf %219, %234 : vector<2x32xf32>
    %cst_108 = arith.constant dense<0.000000e+00> : vector<2x4xf32>
    %237 = tpu.matmul %236, %6, %cst_108 {dimension_numbers = #tpu.dot_dimension_numbers<[1], [0], [0], [1], [0, 0, 1, 1], [], []>} : vector<2x32xf32>, vector<32x4xf32>, vector<2x4xf32> -> vector<2x4xf32>
    %238 = vector.broadcast %8 : vector<1x4xf32> to vector<2x4xf32>
    %239 = arith.addf %237, %238 : vector<2x4xf32>
    %240 = arith.mulf %223, %221 : vector<2x4xf32>
    %cst_109 = arith.constant 1.000000e+00 : f32
    %241 = vector.broadcast %cst_109 : f32 to vector<2x4xf32>
    %242 = arith.subf %241, %223 : vector<2x4xf32>
    %243 = arith.mulf %242, %239 : vector<2x4xf32>
    %244 = arith.addf %240, %243 : vector<2x4xf32>
    %cst_110 = arith.constant dense<0.000000e+00> : vector<2x4xf32>
    %245 = tpu.matmul %244, %10, %cst_110 {dimension_numbers = #tpu.dot_dimension_numbers<[1], [0], [0], [1], [0, 0, 1, 1], [], []>} : vector<2x4xf32>, vector<4x4xf32>, vector<2x4xf32> -> vector<2x4xf32>
    %246 = vector.broadcast %12 : vector<1x4xf32> to vector<2x4xf32>
    %247 = arith.addf %245, %246 : vector<2x4xf32>
    %248 = tpu.concatenate %235, %223 in 1 : vector<2x4xf32>, vector<2x4xf32> -> vector<2x8xf32>
    %cst_111 = arith.constant dense<0.000000e+00> : vector<2x4xf32>
    %249 = tpu.matmul %248, %14, %cst_111 {dimension_numbers = #tpu.dot_dimension_numbers<[1], [0], [0], [1], [0, 0, 1, 1], [], []>} : vector<2x8xf32>, vector<8x4xf32>, vector<2x4xf32> -> vector<2x4xf32>
    %250 = vector.broadcast %16 : vector<1x4xf32> to vector<2x4xf32>
    %251 = arith.addf %249, %250 : vector<2x4xf32>
    %252 = arith.negf %251 : vector<2x4xf32>
    %253 = math.exp %252 : vector<2x4xf32>
    %cst_112 = arith.constant 1.000000e+00 : f32
    %254 = vector.broadcast %cst_112 : f32 to vector<2x4xf32>
    %255 = arith.addf %254, %253 : vector<2x4xf32>
    %256 = arith.divf %254, %255 : vector<2x4xf32>
    %257 = arith.mulf %256, %247 : vector<2x4xf32>
    %cst_113 = arith.constant 1.000000e+00 : f32
    %258 = vector.broadcast %cst_113 : f32 to vector<2x4xf32>
    %259 = arith.subf %258, %256 : vector<2x4xf32>
    %260 = arith.mulf %259, %239 : vector<2x4xf32>
    %261 = arith.addf %257, %260 : vector<2x4xf32>
    %262 = arith.mulf %221, %0 : vector<2x4xf32>
    %263 = arith.mulf %239, %0 : vector<2x4xf32>
    %264 = arith.subf %263, %262 : vector<2x4xf32>
    %265 = math.absf %264 : vector<2x4xf32>
    %266 = arith.mulf %247, %0 : vector<2x4xf32>
    %267 = arith.subf %266, %262 : vector<2x4xf32>
    %268 = math.absf %267 : vector<2x4xf32>
    %269 = arith.addf %265, %268 : vector<2x4xf32>
    %270 = arith.mulf %261, %0 : vector<2x4xf32>
    %271 = arith.subf %270, %262 : vector<2x4xf32>
    %272 = math.absf %271 : vector<2x4xf32>
    %273 = arith.addf %269, %272 : vector<2x4xf32>
    %274 = arith.mulf %273, %223 : vector<2x4xf32>
    %275 = vector.shape_cast %274 : vector<2x4xf32> to vector<1x2x4xf32>
    %cst_114 = arith.constant dense<0.000000e+00> : vector<1xf32>
    %276 = vector.multi_reduction <add>, %275, %cst_114 [1, 2] : vector<1x2x4xf32> to vector<1xf32>
    %277 = vector.shape_cast %276 : vector<1xf32> to vector<1x1x1xf32>
    %278 = vector.extract %277[0, 0, 0] : f32 from vector<1x1x1xf32>
    %279 = vector.broadcast %278 : f32 to vector<1x1xf32>
    %280 = vector.shape_cast %223 : vector<2x4xf32> to vector<1x2x4xf32>
    %cst_115 = arith.constant dense<0.000000e+00> : vector<1xf32>
    %281 = vector.multi_reduction <add>, %280, %cst_115 [1, 2] : vector<1x2x4xf32> to vector<1xf32>
    %282 = vector.shape_cast %281 : vector<1xf32> to vector<1x1x1xf32>
    %283 = vector.extract %282[0, 0, 0] : f32 from vector<1x1x1xf32>
    %284 = vector.broadcast %283 : f32 to vector<1x1xf32>
    %cst_116 = arith.constant 9.99999996E-13 : f32
    %285 = vector.broadcast %cst_116 : f32 to vector<1x1xf32>
    %286 = arith.addf %284, %285 : vector<1x1xf32>
    %287 = tpu.reciprocal %286 {approx = true} : vector<1x1xf32> -> vector<1x1xf32>
    %288 = arith.mulf %279, %287 : vector<1x1xf32>
    %289 = arith.addf %191, %288 : vector<1x1xf32>
    %290 = arith.mulf %223, %221 : vector<2x4xf32>
    %cst_117 = arith.constant 1.000000e+00 : f32
    %291 = vector.broadcast %cst_117 : f32 to vector<2x4xf32>
    %292 = arith.subf %291, %223 : vector<2x4xf32>
    %293 = arith.mulf %292, %261 : vector<2x4xf32>
    %294 = arith.addf %290, %293 : vector<2x4xf32>
    %c0_118 = arith.constant 0 : index
    %c2_119 = arith.constant 2 : index
    %c0_120 = arith.constant 0 : index
    %c0_121 = arith.constant 0 : index
    %295 = vector.load %arg15[%c0_118, %c2_119, %c0_120, %c0_121] : memref<1x8x2x4xf32, #tpu.memory_space<vmem>>, vector<1x1x2x4xf32>
    %296 = vector.shape_cast %295 : vector<1x1x2x4xf32> to vector<2x4xf32>
    %297 = vector.shape_cast %261 : vector<2x4xf32> to vector<1x1x2x4xf32>
    tpu.vector_store %arg15[%c0_118, %c2_119, %c0_120, %c0_121], %297 {strides = array<i32>} : memref<1x8x2x4xf32, #tpu.memory_space<vmem>>, vector<1x1x2x4xf32>,
    %298 = tpu.concatenate %294, %223, %236 in 1 : vector<2x4xf32>, vector<2x4xf32>, vector<2x32xf32> -> vector<2x40xf32>
    %cst_122 = arith.constant dense<0.000000e+00> : vector<2x128xf32>
    %299 = tpu.matmul %298, %18, %cst_122 {dimension_numbers = #tpu.dot_dimension_numbers<[1], [0], [0], [1], [0, 0, 1, 1], [], []>} : vector<2x40xf32>, vector<40x128xf32>, vector<2x128xf32> -> vector<2x128xf32>
    %300 = vector.broadcast %20 : vector<1x128xf32> to vector<2x128xf32>
    %301 = arith.addf %299, %300 : vector<2x128xf32>
    %302 = vector.extract_strided_slice %301 {offsets = [0, 0], sizes = [2, 96], strides = [1, 1]} : vector<2x128xf32> to vector<2x96xf32>
    %303 = arith.negf %302 : vector<2x96xf32>
    %304 = math.exp %303 : vector<2x96xf32>
    %cst_123 = arith.constant 1.000000e+00 : f32
    %305 = vector.broadcast %cst_123 : f32 to vector<2x96xf32>
    %306 = arith.addf %305, %304 : vector<2x96xf32>
    %307 = arith.divf %305, %306 : vector<2x96xf32>
    %308 = vector.extract_strided_slice %301 {offsets = [0, 96], sizes = [2, 32], strides = [1, 1]} : vector<2x128xf32> to vector<2x32xf32>
    %309 = math.tanh %308 : vector<2x32xf32>
    %310 = vector.extract_strided_slice %307 {offsets = [0, 0], sizes = [2, 32], strides = [1, 1]} : vector<2x96xf32> to vector<2x32xf32>
    %311 = vector.extract_strided_slice %307 {offsets = [0, 32], sizes = [2, 32], strides = [1, 1]} : vector<2x96xf32> to vector<2x32xf32>
    %312 = vector.extract_strided_slice %307 {offsets = [0, 64], sizes = [2, 32], strides = [1, 1]} : vector<2x96xf32> to vector<2x32xf32>
    %313 = arith.mulf %311, %217 : vector<2x32xf32>
    %314 = arith.mulf %310, %309 : vector<2x32xf32>
    %315 = arith.addf %313, %314 : vector<2x32xf32>
    %316 = math.tanh %315 : vector<2x32xf32>
    %317 = arith.mulf %312, %316 : vector<2x32xf32>
    %c0_124 = arith.constant 0 : index
    %c3 = arith.constant 3 : index
    %c0_125 = arith.constant 0 : index
    %c0_126 = arith.constant 0 : index
    %318 = vector.load %arg1[%c0_124, %c3, %c0_125, %c0_126] : memref<1x8x2x4xf32, #tpu.memory_space<vmem>>, vector<1x1x2x4xf32>
    %319 = vector.shape_cast %318 : vector<1x1x2x4xf32> to vector<2x4xf32>
    %c0_127 = arith.constant 0 : index
    %c3_128 = arith.constant 3 : index
    %c0_129 = arith.constant 0 : index
    %c0_130 = arith.constant 0 : index
    %320 = vector.load %arg2[%c0_127, %c3_128, %c0_129, %c0_130] : memref<1x8x2x4xf32, #tpu.memory_space<vmem>>, vector<1x1x2x4xf32>
    %321 = vector.shape_cast %320 : vector<1x1x2x4xf32> to vector<2x4xf32>
    %c0_131 = arith.constant 0 : index
    %c3_132 = arith.constant 3 : index
    %c0_133 = arith.constant 0 : index
    %c0_134 = arith.constant 0 : index
    %322 = vector.load %arg3[%c0_131, %c3_132, %c0_133, %c0_134] : memref<1x8x2x4xf32, #tpu.memory_space<vmem>>, vector<1x1x2x4xf32>
    %323 = vector.shape_cast %322 : vector<1x1x2x4xf32> to vector<2x4xf32>
    %cst_135 = arith.constant dense<0.000000e+00> : vector<2x36xf32>
    %324 = tpu.matmul %323, %2, %cst_135 {dimension_numbers = #tpu.dot_dimension_numbers<[1], [0], [0], [1], [0, 0, 1, 1], [], []>} : vector<2x4xf32>, vector<4x36xf32>, vector<2x36xf32> -> vector<2x36xf32>
    %325 = vector.broadcast %4 : vector<1x36xf32> to vector<2x36xf32>
    %326 = arith.addf %324, %325 : vector<2x36xf32>
    %cst_136 = arith.constant 0.000000e+00 : f32
    %327 = vector.broadcast %cst_136 : f32 to vector<2x36xf32>
    %328 = arith.maximumf %326, %327 : vector<2x36xf32>
    %cst_137 = arith.constant 0.000000e+00 : f32
    %329 = vector.broadcast %cst_137 : f32 to vector<2x36xf32>
    %330 = arith.subf %329, %328 : vector<2x36xf32>
    %331 = math.exp %330 : vector<2x36xf32>
    %332 = vector.extract_strided_slice %331 {offsets = [0, 0], sizes = [2, 32], strides = [1, 1]} : vector<2x36xf32> to vector<2x32xf32>
    %333 = vector.extract_strided_slice %331 {offsets = [0, 32], sizes = [2, 4], strides = [1, 1]} : vector<2x36xf32> to vector<2x4xf32>
    %334 = arith.mulf %317, %332 : vector<2x32xf32>
    %cst_138 = arith.constant dense<0.000000e+00> : vector<2x4xf32>
    %335 = tpu.matmul %334, %6, %cst_138 {dimension_numbers = #tpu.dot_dimension_numbers<[1], [0], [0], [1], [0, 0, 1, 1], [], []>} : vector<2x32xf32>, vector<32x4xf32>, vector<2x4xf32> -> vector<2x4xf32>
    %336 = vector.broadcast %8 : vector<1x4xf32> to vector<2x4xf32>
    %337 = arith.addf %335, %336 : vector<2x4xf32>
    %338 = arith.mulf %321, %319 : vector<2x4xf32>
    %cst_139 = arith.constant 1.000000e+00 : f32
    %339 = vector.broadcast %cst_139 : f32 to vector<2x4xf32>
    %340 = arith.subf %339, %321 : vector<2x4xf32>
    %341 = arith.mulf %340, %337 : vector<2x4xf32>
    %342 = arith.addf %338, %341 : vector<2x4xf32>
    %cst_140 = arith.constant dense<0.000000e+00> : vector<2x4xf32>
    %343 = tpu.matmul %342, %10, %cst_140 {dimension_numbers = #tpu.dot_dimension_numbers<[1], [0], [0], [1], [0, 0, 1, 1], [], []>} : vector<2x4xf32>, vector<4x4xf32>, vector<2x4xf32> -> vector<2x4xf32>
    %344 = vector.broadcast %12 : vector<1x4xf32> to vector<2x4xf32>
    %345 = arith.addf %343, %344 : vector<2x4xf32>
    %346 = tpu.concatenate %333, %321 in 1 : vector<2x4xf32>, vector<2x4xf32> -> vector<2x8xf32>
    %cst_141 = arith.constant dense<0.000000e+00> : vector<2x4xf32>
    %347 = tpu.matmul %346, %14, %cst_141 {dimension_numbers = #tpu.dot_dimension_numbers<[1], [0], [0], [1], [0, 0, 1, 1], [], []>} : vector<2x8xf32>, vector<8x4xf32>, vector<2x4xf32> -> vector<2x4xf32>
    %348 = vector.broadcast %16 : vector<1x4xf32> to vector<2x4xf32>
    %349 = arith.addf %347, %348 : vector<2x4xf32>
    %350 = arith.negf %349 : vector<2x4xf32>
    %351 = math.exp %350 : vector<2x4xf32>
    %cst_142 = arith.constant 1.000000e+00 : f32
    %352 = vector.broadcast %cst_142 : f32 to vector<2x4xf32>
    %353 = arith.addf %352, %351 : vector<2x4xf32>
    %354 = arith.divf %352, %353 : vector<2x4xf32>
    %355 = arith.mulf %354, %345 : vector<2x4xf32>
    %cst_143 = arith.constant 1.000000e+00 : f32
    %356 = vector.broadcast %cst_143 : f32 to vector<2x4xf32>
    %357 = arith.subf %356, %354 : vector<2x4xf32>
    %358 = arith.mulf %357, %337 : vector<2x4xf32>
    %359 = arith.addf %355, %358 : vector<2x4xf32>
    %360 = arith.mulf %319, %0 : vector<2x4xf32>
    %361 = arith.mulf %337, %0 : vector<2x4xf32>
    %362 = arith.subf %361, %360 : vector<2x4xf32>
    %363 = math.absf %362 : vector<2x4xf32>
    %364 = arith.mulf %345, %0 : vector<2x4xf32>
    %365 = arith.subf %364, %360 : vector<2x4xf32>
    %366 = math.absf %365 : vector<2x4xf32>
    %367 = arith.addf %363, %366 : vector<2x4xf32>
    %368 = arith.mulf %359, %0 : vector<2x4xf32>
    %369 = arith.subf %368, %360 : vector<2x4xf32>
    %370 = math.absf %369 : vector<2x4xf32>
    %371 = arith.addf %367, %370 : vector<2x4xf32>
    %372 = arith.mulf %371, %321 : vector<2x4xf32>
    %373 = vector.shape_cast %372 : vector<2x4xf32> to vector<1x2x4xf32>
    %cst_144 = arith.constant dense<0.000000e+00> : vector<1xf32>
    %374 = vector.multi_reduction <add>, %373, %cst_144 [1, 2] : vector<1x2x4xf32> to vector<1xf32>
    %375 = vector.shape_cast %374 : vector<1xf32> to vector<1x1x1xf32>
    %376 = vector.extract %375[0, 0, 0] : f32 from vector<1x1x1xf32>
    %377 = vector.broadcast %376 : f32 to vector<1x1xf32>
    %378 = vector.shape_cast %321 : vector<2x4xf32> to vector<1x2x4xf32>
    %cst_145 = arith.constant dense<0.000000e+00> : vector<1xf32>
    %379 = vector.multi_reduction <add>, %378, %cst_145 [1, 2] : vector<1x2x4xf32> to vector<1xf32>
    %380 = vector.shape_cast %379 : vector<1xf32> to vector<1x1x1xf32>
    %381 = vector.extract %380[0, 0, 0] : f32 from vector<1x1x1xf32>
    %382 = vector.broadcast %381 : f32 to vector<1x1xf32>
    %cst_146 = arith.constant 9.99999996E-13 : f32
    %383 = vector.broadcast %cst_146 : f32 to vector<1x1xf32>
    %384 = arith.addf %382, %383 : vector<1x1xf32>
    %385 = tpu.reciprocal %384 {approx = true} : vector<1x1xf32> -> vector<1x1xf32>
    %386 = arith.mulf %377, %385 : vector<1x1xf32>
    %387 = arith.addf %289, %386 : vector<1x1xf32>
    %388 = arith.mulf %321, %319 : vector<2x4xf32>
    %cst_147 = arith.constant 1.000000e+00 : f32
    %389 = vector.broadcast %cst_147 : f32 to vector<2x4xf32>
    %390 = arith.subf %389, %321 : vector<2x4xf32>
    %391 = arith.mulf %390, %359 : vector<2x4xf32>
    %392 = arith.addf %388, %391 : vector<2x4xf32>
    %c0_148 = arith.constant 0 : index
    %c3_149 = arith.constant 3 : index
    %c0_150 = arith.constant 0 : index
    %c0_151 = arith.constant 0 : index
    %393 = vector.load %arg15[%c0_148, %c3_149, %c0_150, %c0_151] : memref<1x8x2x4xf32, #tpu.memory_space<vmem>>, vector<1x1x2x4xf32>
    %394 = vector.shape_cast %393 : vector<1x1x2x4xf32> to vector<2x4xf32>
    %395 = vector.shape_cast %359 : vector<2x4xf32> to vector<1x1x2x4xf32>
    tpu.vector_store %arg15[%c0_148, %c3_149, %c0_150, %c0_151], %395 {strides = array<i32>} : memref<1x8x2x4xf32, #tpu.memory_space<vmem>>, vector<1x1x2x4xf32>,
    %396 = tpu.concatenate %392, %321, %334 in 1 : vector<2x4xf32>, vector<2x4xf32>, vector<2x32xf32> -> vector<2x40xf32>
    %cst_152 = arith.constant dense<0.000000e+00> : vector<2x128xf32>
    %397 = tpu.matmul %396, %18, %cst_152 {dimension_numbers = #tpu.dot_dimension_numbers<[1], [0], [0], [1], [0, 0, 1, 1], [], []>} : vector<2x40xf32>, vector<40x128xf32>, vector<2x128xf32> -> vector<2x128xf32>
    %398 = vector.broadcast %20 : vector<1x128xf32> to vector<2x128xf32>
    %399 = arith.addf %397, %398 : vector<2x128xf32>
    %400 = vector.extract_strided_slice %399 {offsets = [0, 0], sizes = [2, 96], strides = [1, 1]} : vector<2x128xf32> to vector<2x96xf32>
    %401 = arith.negf %400 : vector<2x96xf32>
    %402 = math.exp %401 : vector<2x96xf32>
    %cst_153 = arith.constant 1.000000e+00 : f32
    %403 = vector.broadcast %cst_153 : f32 to vector<2x96xf32>
    %404 = arith.addf %403, %402 : vector<2x96xf32>
    %405 = arith.divf %403, %404 : vector<2x96xf32>
    %406 = vector.extract_strided_slice %399 {offsets = [0, 96], sizes = [2, 32], strides = [1, 1]} : vector<2x128xf32> to vector<2x32xf32>
    %407 = math.tanh %406 : vector<2x32xf32>
    %408 = vector.extract_strided_slice %405 {offsets = [0, 0], sizes = [2, 32], strides = [1, 1]} : vector<2x96xf32> to vector<2x32xf32>
    %409 = vector.extract_strided_slice %405 {offsets = [0, 32], sizes = [2, 32], strides = [1, 1]} : vector<2x96xf32> to vector<2x32xf32>
    %410 = vector.extract_strided_slice %405 {offsets = [0, 64], sizes = [2, 32], strides = [1, 1]} : vector<2x96xf32> to vector<2x32xf32>
    %411 = arith.mulf %409, %315 : vector<2x32xf32>
    %412 = arith.mulf %408, %407 : vector<2x32xf32>
    %413 = arith.addf %411, %412 : vector<2x32xf32>
    %414 = math.tanh %413 : vector<2x32xf32>
    %415 = arith.mulf %410, %414 : vector<2x32xf32>
    %c0_154 = arith.constant 0 : index
    %c4 = arith.constant 4 : index
    %c0_155 = arith.constant 0 : index
    %c0_156 = arith.constant 0 : index
    %416 = vector.load %arg1[%c0_154, %c4, %c0_155, %c0_156] : memref<1x8x2x4xf32, #tpu.memory_space<vmem>>, vector<1x1x2x4xf32>
    %417 = vector.shape_cast %416 : vector<1x1x2x4xf32> to vector<2x4xf32>
    %c0_157 = arith.constant 0 : index
    %c4_158 = arith.constant 4 : index
    %c0_159 = arith.constant 0 : index
    %c0_160 = arith.constant 0 : index
    %418 = vector.load %arg2[%c0_157, %c4_158, %c0_159, %c0_160] : memref<1x8x2x4xf32, #tpu.memory_space<vmem>>, vector<1x1x2x4xf32>
    %419 = vector.shape_cast %418 : vector<1x1x2x4xf32> to vector<2x4xf32>
    %c0_161 = arith.constant 0 : index
    %c4_162 = arith.constant 4 : index
    %c0_163 = arith.constant 0 : index
    %c0_164 = arith.constant 0 : index
    %420 = vector.load %arg3[%c0_161, %c4_162, %c0_163, %c0_164] : memref<1x8x2x4xf32, #tpu.memory_space<vmem>>, vector<1x1x2x4xf32>
    %421 = vector.shape_cast %420 : vector<1x1x2x4xf32> to vector<2x4xf32>
    %cst_165 = arith.constant dense<0.000000e+00> : vector<2x36xf32>
    %422 = tpu.matmul %421, %2, %cst_165 {dimension_numbers = #tpu.dot_dimension_numbers<[1], [0], [0], [1], [0, 0, 1, 1], [], []>} : vector<2x4xf32>, vector<4x36xf32>, vector<2x36xf32> -> vector<2x36xf32>
    %423 = vector.broadcast %4 : vector<1x36xf32> to vector<2x36xf32>
    %424 = arith.addf %422, %423 : vector<2x36xf32>
    %cst_166 = arith.constant 0.000000e+00 : f32
    %425 = vector.broadcast %cst_166 : f32 to vector<2x36xf32>
    %426 = arith.maximumf %424, %425 : vector<2x36xf32>
    %cst_167 = arith.constant 0.000000e+00 : f32
    %427 = vector.broadcast %cst_167 : f32 to vector<2x36xf32>
    %428 = arith.subf %427, %426 : vector<2x36xf32>
    %429 = math.exp %428 : vector<2x36xf32>
    %430 = vector.extract_strided_slice %429 {offsets = [0, 0], sizes = [2, 32], strides = [1, 1]} : vector<2x36xf32> to vector<2x32xf32>
    %431 = vector.extract_strided_slice %429 {offsets = [0, 32], sizes = [2, 4], strides = [1, 1]} : vector<2x36xf32> to vector<2x4xf32>
    %432 = arith.mulf %415, %430 : vector<2x32xf32>
    %cst_168 = arith.constant dense<0.000000e+00> : vector<2x4xf32>
    %433 = tpu.matmul %432, %6, %cst_168 {dimension_numbers = #tpu.dot_dimension_numbers<[1], [0], [0], [1], [0, 0, 1, 1], [], []>} : vector<2x32xf32>, vector<32x4xf32>, vector<2x4xf32> -> vector<2x4xf32>
    %434 = vector.broadcast %8 : vector<1x4xf32> to vector<2x4xf32>
    %435 = arith.addf %433, %434 : vector<2x4xf32>
    %436 = arith.mulf %419, %417 : vector<2x4xf32>
    %cst_169 = arith.constant 1.000000e+00 : f32
    %437 = vector.broadcast %cst_169 : f32 to vector<2x4xf32>
    %438 = arith.subf %437, %419 : vector<2x4xf32>
    %439 = arith.mulf %438, %435 : vector<2x4xf32>
    %440 = arith.addf %436, %439 : vector<2x4xf32>
    %cst_170 = arith.constant dense<0.000000e+00> : vector<2x4xf32>
    %441 = tpu.matmul %440, %10, %cst_170 {dimension_numbers = #tpu.dot_dimension_numbers<[1], [0], [0], [1], [0, 0, 1, 1], [], []>} : vector<2x4xf32>, vector<4x4xf32>, vector<2x4xf32> -> vector<2x4xf32>
    %442 = vector.broadcast %12 : vector<1x4xf32> to vector<2x4xf32>
    %443 = arith.addf %441, %442 : vector<2x4xf32>
    %444 = tpu.concatenate %431, %419 in 1 : vector<2x4xf32>, vector<2x4xf32> -> vector<2x8xf32>
    %cst_171 = arith.constant dense<0.000000e+00> : vector<2x4xf32>
    %445 = tpu.matmul %444, %14, %cst_171 {dimension_numbers = #tpu.dot_dimension_numbers<[1], [0], [0], [1], [0, 0, 1, 1], [], []>} : vector<2x8xf32>, vector<8x4xf32>, vector<2x4xf32> -> vector<2x4xf32>
    %446 = vector.broadcast %16 : vector<1x4xf32> to vector<2x4xf32>
    %447 = arith.addf %445, %446 : vector<2x4xf32>
    %448 = arith.negf %447 : vector<2x4xf32>
    %449 = math.exp %448 : vector<2x4xf32>
    %cst_172 = arith.constant 1.000000e+00 : f32
    %450 = vector.broadcast %cst_172 : f32 to vector<2x4xf32>
    %451 = arith.addf %450, %449 : vector<2x4xf32>
    %452 = arith.divf %450, %451 : vector<2x4xf32>
    %453 = arith.mulf %452, %443 : vector<2x4xf32>
    %cst_173 = arith.constant 1.000000e+00 : f32
    %454 = vector.broadcast %cst_173 : f32 to vector<2x4xf32>
    %455 = arith.subf %454, %452 : vector<2x4xf32>
    %456 = arith.mulf %455, %435 : vector<2x4xf32>
    %457 = arith.addf %453, %456 : vector<2x4xf32>
    %458 = arith.mulf %417, %0 : vector<2x4xf32>
    %459 = arith.mulf %435, %0 : vector<2x4xf32>
    %460 = arith.subf %459, %458 : vector<2x4xf32>
    %461 = math.absf %460 : vector<2x4xf32>
    %462 = arith.mulf %443, %0 : vector<2x4xf32>
    %463 = arith.subf %462, %458 : vector<2x4xf32>
    %464 = math.absf %463 : vector<2x4xf32>
    %465 = arith.addf %461, %464 : vector<2x4xf32>
    %466 = arith.mulf %457, %0 : vector<2x4xf32>
    %467 = arith.subf %466, %458 : vector<2x4xf32>
    %468 = math.absf %467 : vector<2x4xf32>
    %469 = arith.addf %465, %468 : vector<2x4xf32>
    %470 = arith.mulf %469, %419 : vector<2x4xf32>
    %471 = vector.shape_cast %470 : vector<2x4xf32> to vector<1x2x4xf32>
    %cst_174 = arith.constant dense<0.000000e+00> : vector<1xf32>
    %472 = vector.multi_reduction <add>, %471, %cst_174 [1, 2] : vector<1x2x4xf32> to vector<1xf32>
    %473 = vector.shape_cast %472 : vector<1xf32> to vector<1x1x1xf32>
    %474 = vector.extract %473[0, 0, 0] : f32 from vector<1x1x1xf32>
    %475 = vector.broadcast %474 : f32 to vector<1x1xf32>
    %476 = vector.shape_cast %419 : vector<2x4xf32> to vector<1x2x4xf32>
    %cst_175 = arith.constant dense<0.000000e+00> : vector<1xf32>
    %477 = vector.multi_reduction <add>, %476, %cst_175 [1, 2] : vector<1x2x4xf32> to vector<1xf32>
    %478 = vector.shape_cast %477 : vector<1xf32> to vector<1x1x1xf32>
    %479 = vector.extract %478[0, 0, 0] : f32 from vector<1x1x1xf32>
    %480 = vector.broadcast %479 : f32 to vector<1x1xf32>
    %cst_176 = arith.constant 9.99999996E-13 : f32
    %481 = vector.broadcast %cst_176 : f32 to vector<1x1xf32>
    %482 = arith.addf %480, %481 : vector<1x1xf32>
    %483 = tpu.reciprocal %482 {approx = true} : vector<1x1xf32> -> vector<1x1xf32>
    %484 = arith.mulf %475, %483 : vector<1x1xf32>
    %485 = arith.addf %387, %484 : vector<1x1xf32>
    %486 = arith.mulf %419, %417 : vector<2x4xf32>
    %cst_177 = arith.constant 1.000000e+00 : f32
    %487 = vector.broadcast %cst_177 : f32 to vector<2x4xf32>
    %488 = arith.subf %487, %419 : vector<2x4xf32>
    %489 = arith.mulf %488, %457 : vector<2x4xf32>
    %490 = arith.addf %486, %489 : vector<2x4xf32>
    %c0_178 = arith.constant 0 : index
    %c4_179 = arith.constant 4 : index
    %c0_180 = arith.constant 0 : index
    %c0_181 = arith.constant 0 : index
    %491 = vector.load %arg15[%c0_178, %c4_179, %c0_180, %c0_181] : memref<1x8x2x4xf32, #tpu.memory_space<vmem>>, vector<1x1x2x4xf32>
    %492 = vector.shape_cast %491 : vector<1x1x2x4xf32> to vector<2x4xf32>
    %493 = vector.shape_cast %457 : vector<2x4xf32> to vector<1x1x2x4xf32>
    tpu.vector_store %arg15[%c0_178, %c4_179, %c0_180, %c0_181], %493 {strides = array<i32>} : memref<1x8x2x4xf32, #tpu.memory_space<vmem>>, vector<1x1x2x4xf32>,
    %494 = tpu.concatenate %490, %419, %432 in 1 : vector<2x4xf32>, vector<2x4xf32>, vector<2x32xf32> -> vector<2x40xf32>
    %cst_182 = arith.constant dense<0.000000e+00> : vector<2x128xf32>
    %495 = tpu.matmul %494, %18, %cst_182 {dimension_numbers = #tpu.dot_dimension_numbers<[1], [0], [0], [1], [0, 0, 1, 1], [], []>} : vector<2x40xf32>, vector<40x128xf32>, vector<2x128xf32> -> vector<2x128xf32>
    %496 = vector.broadcast %20 : vector<1x128xf32> to vector<2x128xf32>
    %497 = arith.addf %495, %496 : vector<2x128xf32>
    %498 = vector.extract_strided_slice %497 {offsets = [0, 0], sizes = [2, 96], strides = [1, 1]} : vector<2x128xf32> to vector<2x96xf32>
    %499 = arith.negf %498 : vector<2x96xf32>
    %500 = math.exp %499 : vector<2x96xf32>
    %cst_183 = arith.constant 1.000000e+00 : f32
    %501 = vector.broadcast %cst_183 : f32 to vector<2x96xf32>
    %502 = arith.addf %501, %500 : vector<2x96xf32>
    %503 = arith.divf %501, %502 : vector<2x96xf32>
    %504 = vector.extract_strided_slice %497 {offsets = [0, 96], sizes = [2, 32], strides = [1, 1]} : vector<2x128xf32> to vector<2x32xf32>
    %505 = math.tanh %504 : vector<2x32xf32>
    %506 = vector.extract_strided_slice %503 {offsets = [0, 0], sizes = [2, 32], strides = [1, 1]} : vector<2x96xf32> to vector<2x32xf32>
    %507 = vector.extract_strided_slice %503 {offsets = [0, 32], sizes = [2, 32], strides = [1, 1]} : vector<2x96xf32> to vector<2x32xf32>
    %508 = vector.extract_strided_slice %503 {offsets = [0, 64], sizes = [2, 32], strides = [1, 1]} : vector<2x96xf32> to vector<2x32xf32>
    %509 = arith.mulf %507, %413 : vector<2x32xf32>
    %510 = arith.mulf %506, %505 : vector<2x32xf32>
    %511 = arith.addf %509, %510 : vector<2x32xf32>
    %512 = math.tanh %511 : vector<2x32xf32>
    %513 = arith.mulf %508, %512 : vector<2x32xf32>
    %c0_184 = arith.constant 0 : index
    %c5 = arith.constant 5 : index
    %c0_185 = arith.constant 0 : index
    %c0_186 = arith.constant 0 : index
    %514 = vector.load %arg1[%c0_184, %c5, %c0_185, %c0_186] : memref<1x8x2x4xf32, #tpu.memory_space<vmem>>, vector<1x1x2x4xf32>
    %515 = vector.shape_cast %514 : vector<1x1x2x4xf32> to vector<2x4xf32>
    %c0_187 = arith.constant 0 : index
    %c5_188 = arith.constant 5 : index
    %c0_189 = arith.constant 0 : index
    %c0_190 = arith.constant 0 : index
    %516 = vector.load %arg2[%c0_187, %c5_188, %c0_189, %c0_190] : memref<1x8x2x4xf32, #tpu.memory_space<vmem>>, vector<1x1x2x4xf32>
    %517 = vector.shape_cast %516 : vector<1x1x2x4xf32> to vector<2x4xf32>
    %c0_191 = arith.constant 0 : index
    %c5_192 = arith.constant 5 : index
    %c0_193 = arith.constant 0 : index
    %c0_194 = arith.constant 0 : index
    %518 = vector.load %arg3[%c0_191, %c5_192, %c0_193, %c0_194] : memref<1x8x2x4xf32, #tpu.memory_space<vmem>>, vector<1x1x2x4xf32>
    %519 = vector.shape_cast %518 : vector<1x1x2x4xf32> to vector<2x4xf32>
    %cst_195 = arith.constant dense<0.000000e+00> : vector<2x36xf32>
    %520 = tpu.matmul %519, %2, %cst_195 {dimension_numbers = #tpu.dot_dimension_numbers<[1], [0], [0], [1], [0, 0, 1, 1], [], []>} : vector<2x4xf32>, vector<4x36xf32>, vector<2x36xf32> -> vector<2x36xf32>
    %521 = vector.broadcast %4 : vector<1x36xf32> to vector<2x36xf32>
    %522 = arith.addf %520, %521 : vector<2x36xf32>
    %cst_196 = arith.constant 0.000000e+00 : f32
    %523 = vector.broadcast %cst_196 : f32 to vector<2x36xf32>
    %524 = arith.maximumf %522, %523 : vector<2x36xf32>
    %cst_197 = arith.constant 0.000000e+00 : f32
    %525 = vector.broadcast %cst_197 : f32 to vector<2x36xf32>
    %526 = arith.subf %525, %524 : vector<2x36xf32>
    %527 = math.exp %526 : vector<2x36xf32>
    %528 = vector.extract_strided_slice %527 {offsets = [0, 0], sizes = [2, 32], strides = [1, 1]} : vector<2x36xf32> to vector<2x32xf32>
    %529 = vector.extract_strided_slice %527 {offsets = [0, 32], sizes = [2, 4], strides = [1, 1]} : vector<2x36xf32> to vector<2x4xf32>
    %530 = arith.mulf %513, %528 : vector<2x32xf32>
    %cst_198 = arith.constant dense<0.000000e+00> : vector<2x4xf32>
    %531 = tpu.matmul %530, %6, %cst_198 {dimension_numbers = #tpu.dot_dimension_numbers<[1], [0], [0], [1], [0, 0, 1, 1], [], []>} : vector<2x32xf32>, vector<32x4xf32>, vector<2x4xf32> -> vector<2x4xf32>
    %532 = vector.broadcast %8 : vector<1x4xf32> to vector<2x4xf32>
    %533 = arith.addf %531, %532 : vector<2x4xf32>
    %534 = arith.mulf %517, %515 : vector<2x4xf32>
    %cst_199 = arith.constant 1.000000e+00 : f32
    %535 = vector.broadcast %cst_199 : f32 to vector<2x4xf32>
    %536 = arith.subf %535, %517 : vector<2x4xf32>
    %537 = arith.mulf %536, %533 : vector<2x4xf32>
    %538 = arith.addf %534, %537 : vector<2x4xf32>
    %cst_200 = arith.constant dense<0.000000e+00> : vector<2x4xf32>
    %539 = tpu.matmul %538, %10, %cst_200 {dimension_numbers = #tpu.dot_dimension_numbers<[1], [0], [0], [1], [0, 0, 1, 1], [], []>} : vector<2x4xf32>, vector<4x4xf32>, vector<2x4xf32> -> vector<2x4xf32>
    %540 = vector.broadcast %12 : vector<1x4xf32> to vector<2x4xf32>
    %541 = arith.addf %539, %540 : vector<2x4xf32>
    %542 = tpu.concatenate %529, %517 in 1 : vector<2x4xf32>, vector<2x4xf32> -> vector<2x8xf32>
    %cst_201 = arith.constant dense<0.000000e+00> : vector<2x4xf32>
    %543 = tpu.matmul %542, %14, %cst_201 {dimension_numbers = #tpu.dot_dimension_numbers<[1], [0], [0], [1], [0, 0, 1, 1], [], []>} : vector<2x8xf32>, vector<8x4xf32>, vector<2x4xf32> -> vector<2x4xf32>
    %544 = vector.broadcast %16 : vector<1x4xf32> to vector<2x4xf32>
    %545 = arith.addf %543, %544 : vector<2x4xf32>
    %546 = arith.negf %545 : vector<2x4xf32>
    %547 = math.exp %546 : vector<2x4xf32>
    %cst_202 = arith.constant 1.000000e+00 : f32
    %548 = vector.broadcast %cst_202 : f32 to vector<2x4xf32>
    %549 = arith.addf %548, %547 : vector<2x4xf32>
    %550 = arith.divf %548, %549 : vector<2x4xf32>
    %551 = arith.mulf %550, %541 : vector<2x4xf32>
    %cst_203 = arith.constant 1.000000e+00 : f32
    %552 = vector.broadcast %cst_203 : f32 to vector<2x4xf32>
    %553 = arith.subf %552, %550 : vector<2x4xf32>
    %554 = arith.mulf %553, %533 : vector<2x4xf32>
    %555 = arith.addf %551, %554 : vector<2x4xf32>
    %556 = arith.mulf %515, %0 : vector<2x4xf32>
    %557 = arith.mulf %533, %0 : vector<2x4xf32>
    %558 = arith.subf %557, %556 : vector<2x4xf32>
    %559 = math.absf %558 : vector<2x4xf32>
    %560 = arith.mulf %541, %0 : vector<2x4xf32>
    %561 = arith.subf %560, %556 : vector<2x4xf32>
    %562 = math.absf %561 : vector<2x4xf32>
    %563 = arith.addf %559, %562 : vector<2x4xf32>
    %564 = arith.mulf %555, %0 : vector<2x4xf32>
    %565 = arith.subf %564, %556 : vector<2x4xf32>
    %566 = math.absf %565 : vector<2x4xf32>
    %567 = arith.addf %563, %566 : vector<2x4xf32>
    %568 = arith.mulf %567, %517 : vector<2x4xf32>
    %569 = vector.shape_cast %568 : vector<2x4xf32> to vector<1x2x4xf32>
    %cst_204 = arith.constant dense<0.000000e+00> : vector<1xf32>
    %570 = vector.multi_reduction <add>, %569, %cst_204 [1, 2] : vector<1x2x4xf32> to vector<1xf32>
    %571 = vector.shape_cast %570 : vector<1xf32> to vector<1x1x1xf32>
    %572 = vector.extract %571[0, 0, 0] : f32 from vector<1x1x1xf32>
    %573 = vector.broadcast %572 : f32 to vector<1x1xf32>
    %574 = vector.shape_cast %517 : vector<2x4xf32> to vector<1x2x4xf32>
    %cst_205 = arith.constant dense<0.000000e+00> : vector<1xf32>
    %575 = vector.multi_reduction <add>, %574, %cst_205 [1, 2] : vector<1x2x4xf32> to vector<1xf32>
    %576 = vector.shape_cast %575 : vector<1xf32> to vector<1x1x1xf32>
    %577 = vector.extract %576[0, 0, 0] : f32 from vector<1x1x1xf32>
    %578 = vector.broadcast %577 : f32 to vector<1x1xf32>
    %cst_206 = arith.constant 9.99999996E-13 : f32
    %579 = vector.broadcast %cst_206 : f32 to vector<1x1xf32>
    %580 = arith.addf %578, %579 : vector<1x1xf32>
    %581 = tpu.reciprocal %580 {approx = true} : vector<1x1xf32> -> vector<1x1xf32>
    %582 = arith.mulf %573, %581 : vector<1x1xf32>
    %583 = arith.addf %485, %582 : vector<1x1xf32>
    %584 = arith.mulf %517, %515 : vector<2x4xf32>
    %cst_207 = arith.constant 1.000000e+00 : f32
    %585 = vector.broadcast %cst_207 : f32 to vector<2x4xf32>
    %586 = arith.subf %585, %517 : vector<2x4xf32>
    %587 = arith.mulf %586, %555 : vector<2x4xf32>
    %588 = arith.addf %584, %587 : vector<2x4xf32>
    %c0_208 = arith.constant 0 : index
    %c5_209 = arith.constant 5 : index
    %c0_210 = arith.constant 0 : index
    %c0_211 = arith.constant 0 : index
    %589 = vector.load %arg15[%c0_208, %c5_209, %c0_210, %c0_211] : memref<1x8x2x4xf32, #tpu.memory_space<vmem>>, vector<1x1x2x4xf32>
    %590 = vector.shape_cast %589 : vector<1x1x2x4xf32> to vector<2x4xf32>
    %591 = vector.shape_cast %555 : vector<2x4xf32> to vector<1x1x2x4xf32>
    tpu.vector_store %arg15[%c0_208, %c5_209, %c0_210, %c0_211], %591 {strides = array<i32>} : memref<1x8x2x4xf32, #tpu.memory_space<vmem>>, vector<1x1x2x4xf32>,
    %592 = tpu.concatenate %588, %517, %530 in 1 : vector<2x4xf32>, vector<2x4xf32>, vector<2x32xf32> -> vector<2x40xf32>
    %cst_212 = arith.constant dense<0.000000e+00> : vector<2x128xf32>
    %593 = tpu.matmul %592, %18, %cst_212 {dimension_numbers = #tpu.dot_dimension_numbers<[1], [0], [0], [1], [0, 0, 1, 1], [], []>} : vector<2x40xf32>, vector<40x128xf32>, vector<2x128xf32> -> vector<2x128xf32>
    %594 = vector.broadcast %20 : vector<1x128xf32> to vector<2x128xf32>
    %595 = arith.addf %593, %594 : vector<2x128xf32>
    %596 = vector.extract_strided_slice %595 {offsets = [0, 0], sizes = [2, 96], strides = [1, 1]} : vector<2x128xf32> to vector<2x96xf32>
    %597 = arith.negf %596 : vector<2x96xf32>
    %598 = math.exp %597 : vector<2x96xf32>
    %cst_213 = arith.constant 1.000000e+00 : f32
    %599 = vector.broadcast %cst_213 : f32 to vector<2x96xf32>
    %600 = arith.addf %599, %598 : vector<2x96xf32>
    %601 = arith.divf %599, %600 : vector<2x96xf32>
    %602 = vector.extract_strided_slice %595 {offsets = [0, 96], sizes = [2, 32], strides = [1, 1]} : vector<2x128xf32> to vector<2x32xf32>
    %603 = math.tanh %602 : vector<2x32xf32>
    %604 = vector.extract_strided_slice %601 {offsets = [0, 0], sizes = [2, 32], strides = [1, 1]} : vector<2x96xf32> to vector<2x32xf32>
    %605 = vector.extract_strided_slice %601 {offsets = [0, 32], sizes = [2, 32], strides = [1, 1]} : vector<2x96xf32> to vector<2x32xf32>
    %606 = vector.extract_strided_slice %601 {offsets = [0, 64], sizes = [2, 32], strides = [1, 1]} : vector<2x96xf32> to vector<2x32xf32>
    %607 = arith.mulf %605, %511 : vector<2x32xf32>
    %608 = arith.mulf %604, %603 : vector<2x32xf32>
    %609 = arith.addf %607, %608 : vector<2x32xf32>
    %610 = math.tanh %609 : vector<2x32xf32>
    %611 = arith.mulf %606, %610 : vector<2x32xf32>
    %c0_214 = arith.constant 0 : index
    %c6 = arith.constant 6 : index
    %c0_215 = arith.constant 0 : index
    %c0_216 = arith.constant 0 : index
    %612 = vector.load %arg1[%c0_214, %c6, %c0_215, %c0_216] : memref<1x8x2x4xf32, #tpu.memory_space<vmem>>, vector<1x1x2x4xf32>
    %613 = vector.shape_cast %612 : vector<1x1x2x4xf32> to vector<2x4xf32>
    %c0_217 = arith.constant 0 : index
    %c6_218 = arith.constant 6 : index
    %c0_219 = arith.constant 0 : index
    %c0_220 = arith.constant 0 : index
    %614 = vector.load %arg2[%c0_217, %c6_218, %c0_219, %c0_220] : memref<1x8x2x4xf32, #tpu.memory_space<vmem>>, vector<1x1x2x4xf32>
    %615 = vector.shape_cast %614 : vector<1x1x2x4xf32> to vector<2x4xf32>
    %c0_221 = arith.constant 0 : index
    %c6_222 = arith.constant 6 : index
    %c0_223 = arith.constant 0 : index
    %c0_224 = arith.constant 0 : index
    %616 = vector.load %arg3[%c0_221, %c6_222, %c0_223, %c0_224] : memref<1x8x2x4xf32, #tpu.memory_space<vmem>>, vector<1x1x2x4xf32>
    %617 = vector.shape_cast %616 : vector<1x1x2x4xf32> to vector<2x4xf32>
    %cst_225 = arith.constant dense<0.000000e+00> : vector<2x36xf32>
    %618 = tpu.matmul %617, %2, %cst_225 {dimension_numbers = #tpu.dot_dimension_numbers<[1], [0], [0], [1], [0, 0, 1, 1], [], []>} : vector<2x4xf32>, vector<4x36xf32>, vector<2x36xf32> -> vector<2x36xf32>
    %619 = vector.broadcast %4 : vector<1x36xf32> to vector<2x36xf32>
    %620 = arith.addf %618, %619 : vector<2x36xf32>
    %cst_226 = arith.constant 0.000000e+00 : f32
    %621 = vector.broadcast %cst_226 : f32 to vector<2x36xf32>
    %622 = arith.maximumf %620, %621 : vector<2x36xf32>
    %cst_227 = arith.constant 0.000000e+00 : f32
    %623 = vector.broadcast %cst_227 : f32 to vector<2x36xf32>
    %624 = arith.subf %623, %622 : vector<2x36xf32>
    %625 = math.exp %624 : vector<2x36xf32>
    %626 = vector.extract_strided_slice %625 {offsets = [0, 0], sizes = [2, 32], strides = [1, 1]} : vector<2x36xf32> to vector<2x32xf32>
    %627 = vector.extract_strided_slice %625 {offsets = [0, 32], sizes = [2, 4], strides = [1, 1]} : vector<2x36xf32> to vector<2x4xf32>
    %628 = arith.mulf %611, %626 : vector<2x32xf32>
    %cst_228 = arith.constant dense<0.000000e+00> : vector<2x4xf32>
    %629 = tpu.matmul %628, %6, %cst_228 {dimension_numbers = #tpu.dot_dimension_numbers<[1], [0], [0], [1], [0, 0, 1, 1], [], []>} : vector<2x32xf32>, vector<32x4xf32>, vector<2x4xf32> -> vector<2x4xf32>
    %630 = vector.broadcast %8 : vector<1x4xf32> to vector<2x4xf32>
    %631 = arith.addf %629, %630 : vector<2x4xf32>
    %632 = arith.mulf %615, %613 : vector<2x4xf32>
    %cst_229 = arith.constant 1.000000e+00 : f32
    %633 = vector.broadcast %cst_229 : f32 to vector<2x4xf32>
    %634 = arith.subf %633, %615 : vector<2x4xf32>
    %635 = arith.mulf %634, %631 : vector<2x4xf32>
    %636 = arith.addf %632, %635 : vector<2x4xf32>
    %cst_230 = arith.constant dense<0.000000e+00> : vector<2x4xf32>
    %637 = tpu.matmul %636, %10, %cst_230 {dimension_numbers = #tpu.dot_dimension_numbers<[1], [0], [0], [1], [0, 0, 1, 1], [], []>} : vector<2x4xf32>, vector<4x4xf32>, vector<2x4xf32> -> vector<2x4xf32>
    %638 = vector.broadcast %12 : vector<1x4xf32> to vector<2x4xf32>
    %639 = arith.addf %637, %638 : vector<2x4xf32>
    %640 = tpu.concatenate %627, %615 in 1 : vector<2x4xf32>, vector<2x4xf32> -> vector<2x8xf32>
    %cst_231 = arith.constant dense<0.000000e+00> : vector<2x4xf32>
    %641 = tpu.matmul %640, %14, %cst_231 {dimension_numbers = #tpu.dot_dimension_numbers<[1], [0], [0], [1], [0, 0, 1, 1], [], []>} : vector<2x8xf32>, vector<8x4xf32>, vector<2x4xf32> -> vector<2x4xf32>
    %642 = vector.broadcast %16 : vector<1x4xf32> to vector<2x4xf32>
    %643 = arith.addf %641, %642 : vector<2x4xf32>
    %644 = arith.negf %643 : vector<2x4xf32>
    %645 = math.exp %644 : vector<2x4xf32>
    %cst_232 = arith.constant 1.000000e+00 : f32
    %646 = vector.broadcast %cst_232 : f32 to vector<2x4xf32>
    %647 = arith.addf %646, %645 : vector<2x4xf32>
    %648 = arith.divf %646, %647 : vector<2x4xf32>
    %649 = arith.mulf %648, %639 : vector<2x4xf32>
    %cst_233 = arith.constant 1.000000e+00 : f32
    %650 = vector.broadcast %cst_233 : f32 to vector<2x4xf32>
    %651 = arith.subf %650, %648 : vector<2x4xf32>
    %652 = arith.mulf %651, %631 : vector<2x4xf32>
    %653 = arith.addf %649, %652 : vector<2x4xf32>
    %654 = arith.mulf %613, %0 : vector<2x4xf32>
    %655 = arith.mulf %631, %0 : vector<2x4xf32>
    %656 = arith.subf %655, %654 : vector<2x4xf32>
    %657 = math.absf %656 : vector<2x4xf32>
    %658 = arith.mulf %639, %0 : vector<2x4xf32>
    %659 = arith.subf %658, %654 : vector<2x4xf32>
    %660 = math.absf %659 : vector<2x4xf32>
    %661 = arith.addf %657, %660 : vector<2x4xf32>
    %662 = arith.mulf %653, %0 : vector<2x4xf32>
    %663 = arith.subf %662, %654 : vector<2x4xf32>
    %664 = math.absf %663 : vector<2x4xf32>
    %665 = arith.addf %661, %664 : vector<2x4xf32>
    %666 = arith.mulf %665, %615 : vector<2x4xf32>
    %667 = vector.shape_cast %666 : vector<2x4xf32> to vector<1x2x4xf32>
    %cst_234 = arith.constant dense<0.000000e+00> : vector<1xf32>
    %668 = vector.multi_reduction <add>, %667, %cst_234 [1, 2] : vector<1x2x4xf32> to vector<1xf32>
    %669 = vector.shape_cast %668 : vector<1xf32> to vector<1x1x1xf32>
    %670 = vector.extract %669[0, 0, 0] : f32 from vector<1x1x1xf32>
    %671 = vector.broadcast %670 : f32 to vector<1x1xf32>
    %672 = vector.shape_cast %615 : vector<2x4xf32> to vector<1x2x4xf32>
    %cst_235 = arith.constant dense<0.000000e+00> : vector<1xf32>
    %673 = vector.multi_reduction <add>, %672, %cst_235 [1, 2] : vector<1x2x4xf32> to vector<1xf32>
    %674 = vector.shape_cast %673 : vector<1xf32> to vector<1x1x1xf32>
    %675 = vector.extract %674[0, 0, 0] : f32 from vector<1x1x1xf32>
    %676 = vector.broadcast %675 : f32 to vector<1x1xf32>
    %cst_236 = arith.constant 9.99999996E-13 : f32
    %677 = vector.broadcast %cst_236 : f32 to vector<1x1xf32>
    %678 = arith.addf %676, %677 : vector<1x1xf32>
    %679 = tpu.reciprocal %678 {approx = true} : vector<1x1xf32> -> vector<1x1xf32>
    %680 = arith.mulf %671, %679 : vector<1x1xf32>
    %681 = arith.addf %583, %680 : vector<1x1xf32>
    %682 = arith.mulf %615, %613 : vector<2x4xf32>
    %cst_237 = arith.constant 1.000000e+00 : f32
    %683 = vector.broadcast %cst_237 : f32 to vector<2x4xf32>
    %684 = arith.subf %683, %615 : vector<2x4xf32>
    %685 = arith.mulf %684, %653 : vector<2x4xf32>
    %686 = arith.addf %682, %685 : vector<2x4xf32>
    %c0_238 = arith.constant 0 : index
    %c6_239 = arith.constant 6 : index
    %c0_240 = arith.constant 0 : index
    %c0_241 = arith.constant 0 : index
    %687 = vector.load %arg15[%c0_238, %c6_239, %c0_240, %c0_241] : memref<1x8x2x4xf32, #tpu.memory_space<vmem>>, vector<1x1x2x4xf32>
    %688 = vector.shape_cast %687 : vector<1x1x2x4xf32> to vector<2x4xf32>
    %689 = vector.shape_cast %653 : vector<2x4xf32> to vector<1x1x2x4xf32>
    tpu.vector_store %arg15[%c0_238, %c6_239, %c0_240, %c0_241], %689 {strides = array<i32>} : memref<1x8x2x4xf32, #tpu.memory_space<vmem>>, vector<1x1x2x4xf32>,
    %690 = tpu.concatenate %686, %615, %628 in 1 : vector<2x4xf32>, vector<2x4xf32>, vector<2x32xf32> -> vector<2x40xf32>
    %cst_242 = arith.constant dense<0.000000e+00> : vector<2x128xf32>
    %691 = tpu.matmul %690, %18, %cst_242 {dimension_numbers = #tpu.dot_dimension_numbers<[1], [0], [0], [1], [0, 0, 1, 1], [], []>} : vector<2x40xf32>, vector<40x128xf32>, vector<2x128xf32> -> vector<2x128xf32>
    %692 = vector.broadcast %20 : vector<1x128xf32> to vector<2x128xf32>
    %693 = arith.addf %691, %692 : vector<2x128xf32>
    %694 = vector.extract_strided_slice %693 {offsets = [0, 0], sizes = [2, 96], strides = [1, 1]} : vector<2x128xf32> to vector<2x96xf32>
    %695 = arith.negf %694 : vector<2x96xf32>
    %696 = math.exp %695 : vector<2x96xf32>
    %cst_243 = arith.constant 1.000000e+00 : f32
    %697 = vector.broadcast %cst_243 : f32 to vector<2x96xf32>
    %698 = arith.addf %697, %696 : vector<2x96xf32>
    %699 = arith.divf %697, %698 : vector<2x96xf32>
    %700 = vector.extract_strided_slice %693 {offsets = [0, 96], sizes = [2, 32], strides = [1, 1]} : vector<2x128xf32> to vector<2x32xf32>
    %701 = math.tanh %700 : vector<2x32xf32>
    %702 = vector.extract_strided_slice %699 {offsets = [0, 0], sizes = [2, 32], strides = [1, 1]} : vector<2x96xf32> to vector<2x32xf32>
    %703 = vector.extract_strided_slice %699 {offsets = [0, 32], sizes = [2, 32], strides = [1, 1]} : vector<2x96xf32> to vector<2x32xf32>
    %704 = vector.extract_strided_slice %699 {offsets = [0, 64], sizes = [2, 32], strides = [1, 1]} : vector<2x96xf32> to vector<2x32xf32>
    %705 = arith.mulf %703, %609 : vector<2x32xf32>
    %706 = arith.mulf %702, %701 : vector<2x32xf32>
    %707 = arith.addf %705, %706 : vector<2x32xf32>
    %708 = math.tanh %707 : vector<2x32xf32>
    %709 = arith.mulf %704, %708 : vector<2x32xf32>
    %c0_244 = arith.constant 0 : index
    %c7 = arith.constant 7 : index
    %c0_245 = arith.constant 0 : index
    %c0_246 = arith.constant 0 : index
    %710 = vector.load %arg1[%c0_244, %c7, %c0_245, %c0_246] : memref<1x8x2x4xf32, #tpu.memory_space<vmem>>, vector<1x1x2x4xf32>
    %711 = vector.shape_cast %710 : vector<1x1x2x4xf32> to vector<2x4xf32>
    %c0_247 = arith.constant 0 : index
    %c7_248 = arith.constant 7 : index
    %c0_249 = arith.constant 0 : index
    %c0_250 = arith.constant 0 : index
    %712 = vector.load %arg2[%c0_247, %c7_248, %c0_249, %c0_250] : memref<1x8x2x4xf32, #tpu.memory_space<vmem>>, vector<1x1x2x4xf32>
    %713 = vector.shape_cast %712 : vector<1x1x2x4xf32> to vector<2x4xf32>
    %c0_251 = arith.constant 0 : index
    %c7_252 = arith.constant 7 : index
    %c0_253 = arith.constant 0 : index
    %c0_254 = arith.constant 0 : index
    %714 = vector.load %arg3[%c0_251, %c7_252, %c0_253, %c0_254] : memref<1x8x2x4xf32, #tpu.memory_space<vmem>>, vector<1x1x2x4xf32>
    %715 = vector.shape_cast %714 : vector<1x1x2x4xf32> to vector<2x4xf32>
    %cst_255 = arith.constant dense<0.000000e+00> : vector<2x36xf32>
    %716 = tpu.matmul %715, %2, %cst_255 {dimension_numbers = #tpu.dot_dimension_numbers<[1], [0], [0], [1], [0, 0, 1, 1], [], []>} : vector<2x4xf32>, vector<4x36xf32>, vector<2x36xf32> -> vector<2x36xf32>
    %717 = vector.broadcast %4 : vector<1x36xf32> to vector<2x36xf32>
    %718 = arith.addf %716, %717 : vector<2x36xf32>
    %cst_256 = arith.constant 0.000000e+00 : f32
    %719 = vector.broadcast %cst_256 : f32 to vector<2x36xf32>
    %720 = arith.maximumf %718, %719 : vector<2x36xf32>
    %cst_257 = arith.constant 0.000000e+00 : f32
    %721 = vector.broadcast %cst_257 : f32 to vector<2x36xf32>
    %722 = arith.subf %721, %720 : vector<2x36xf32>
    %723 = math.exp %722 : vector<2x36xf32>
    %724 = vector.extract_strided_slice %723 {offsets = [0, 0], sizes = [2, 32], strides = [1, 1]} : vector<2x36xf32> to vector<2x32xf32>
    %725 = vector.extract_strided_slice %723 {offsets = [0, 32], sizes = [2, 4], strides = [1, 1]} : vector<2x36xf32> to vector<2x4xf32>
    %726 = arith.mulf %709, %724 : vector<2x32xf32>
    %cst_258 = arith.constant dense<0.000000e+00> : vector<2x4xf32>
    %727 = tpu.matmul %726, %6, %cst_258 {dimension_numbers = #tpu.dot_dimension_numbers<[1], [0], [0], [1], [0, 0, 1, 1], [], []>} : vector<2x32xf32>, vector<32x4xf32>, vector<2x4xf32> -> vector<2x4xf32>
    %728 = vector.broadcast %8 : vector<1x4xf32> to vector<2x4xf32>
    %729 = arith.addf %727, %728 : vector<2x4xf32>
    %730 = arith.mulf %713, %711 : vector<2x4xf32>
    %cst_259 = arith.constant 1.000000e+00 : f32
    %731 = vector.broadcast %cst_259 : f32 to vector<2x4xf32>
    %732 = arith.subf %731, %713 : vector<2x4xf32>
    %733 = arith.mulf %732, %729 : vector<2x4xf32>
    %734 = arith.addf %730, %733 : vector<2x4xf32>
    %cst_260 = arith.constant dense<0.000000e+00> : vector<2x4xf32>
    %735 = tpu.matmul %734, %10, %cst_260 {dimension_numbers = #tpu.dot_dimension_numbers<[1], [0], [0], [1], [0, 0, 1, 1], [], []>} : vector<2x4xf32>, vector<4x4xf32>, vector<2x4xf32> -> vector<2x4xf32>
    %736 = vector.broadcast %12 : vector<1x4xf32> to vector<2x4xf32>
    %737 = arith.addf %735, %736 : vector<2x4xf32>
    %738 = tpu.concatenate %725, %713 in 1 : vector<2x4xf32>, vector<2x4xf32> -> vector<2x8xf32>
    %cst_261 = arith.constant dense<0.000000e+00> : vector<2x4xf32>
    %739 = tpu.matmul %738, %14, %cst_261 {dimension_numbers = #tpu.dot_dimension_numbers<[1], [0], [0], [1], [0, 0, 1, 1], [], []>} : vector<2x8xf32>, vector<8x4xf32>, vector<2x4xf32> -> vector<2x4xf32>
    %740 = vector.broadcast %16 : vector<1x4xf32> to vector<2x4xf32>
    %741 = arith.addf %739, %740 : vector<2x4xf32>
    %742 = arith.negf %741 : vector<2x4xf32>
    %743 = math.exp %742 : vector<2x4xf32>
    %cst_262 = arith.constant 1.000000e+00 : f32
    %744 = vector.broadcast %cst_262 : f32 to vector<2x4xf32>
    %745 = arith.addf %744, %743 : vector<2x4xf32>
    %746 = arith.divf %744, %745 : vector<2x4xf32>
    %747 = arith.mulf %746, %737 : vector<2x4xf32>
    %cst_263 = arith.constant 1.000000e+00 : f32
    %748 = vector.broadcast %cst_263 : f32 to vector<2x4xf32>
    %749 = arith.subf %748, %746 : vector<2x4xf32>
    %750 = arith.mulf %749, %729 : vector<2x4xf32>
    %751 = arith.addf %747, %750 : vector<2x4xf32>
    %752 = arith.mulf %711, %0 : vector<2x4xf32>
    %753 = arith.mulf %729, %0 : vector<2x4xf32>
    %754 = arith.subf %753, %752 : vector<2x4xf32>
    %755 = math.absf %754 : vector<2x4xf32>
    %756 = arith.mulf %737, %0 : vector<2x4xf32>
    %757 = arith.subf %756, %752 : vector<2x4xf32>
    %758 = math.absf %757 : vector<2x4xf32>
    %759 = arith.addf %755, %758 : vector<2x4xf32>
    %760 = arith.mulf %751, %0 : vector<2x4xf32>
    %761 = arith.subf %760, %752 : vector<2x4xf32>
    %762 = math.absf %761 : vector<2x4xf32>
    %763 = arith.addf %759, %762 : vector<2x4xf32>
    %764 = arith.mulf %763, %713 : vector<2x4xf32>
    %765 = vector.shape_cast %764 : vector<2x4xf32> to vector<1x2x4xf32>
    %cst_264 = arith.constant dense<0.000000e+00> : vector<1xf32>
    %766 = vector.multi_reduction <add>, %765, %cst_264 [1, 2] : vector<1x2x4xf32> to vector<1xf32>
    %767 = vector.shape_cast %766 : vector<1xf32> to vector<1x1x1xf32>
    %768 = vector.extract %767[0, 0, 0] : f32 from vector<1x1x1xf32>
    %769 = vector.broadcast %768 : f32 to vector<1x1xf32>
    %770 = vector.shape_cast %713 : vector<2x4xf32> to vector<1x2x4xf32>
    %cst_265 = arith.constant dense<0.000000e+00> : vector<1xf32>
    %771 = vector.multi_reduction <add>, %770, %cst_265 [1, 2] : vector<1x2x4xf32> to vector<1xf32>
    %772 = vector.shape_cast %771 : vector<1xf32> to vector<1x1x1xf32>
    %773 = vector.extract %772[0, 0, 0] : f32 from vector<1x1x1xf32>
    %774 = vector.broadcast %773 : f32 to vector<1x1xf32>
    %cst_266 = arith.constant 9.99999996E-13 : f32
    %775 = vector.broadcast %cst_266 : f32 to vector<1x1xf32>
    %776 = arith.addf %774, %775 : vector<1x1xf32>
    %777 = tpu.reciprocal %776 {approx = true} : vector<1x1xf32> -> vector<1x1xf32>
    %778 = arith.mulf %769, %777 : vector<1x1xf32>
    %779 = arith.addf %681, %778 : vector<1x1xf32>
    %780 = arith.mulf %713, %711 : vector<2x4xf32>
    %cst_267 = arith.constant 1.000000e+00 : f32
    %781 = vector.broadcast %cst_267 : f32 to vector<2x4xf32>
    %782 = arith.subf %781, %713 : vector<2x4xf32>
    %783 = arith.mulf %782, %751 : vector<2x4xf32>
    %784 = arith.addf %780, %783 : vector<2x4xf32>
    %c0_268 = arith.constant 0 : index
    %c7_269 = arith.constant 7 : index
    %c0_270 = arith.constant 0 : index
    %c0_271 = arith.constant 0 : index
    %785 = vector.load %arg15[%c0_268, %c7_269, %c0_270, %c0_271] : memref<1x8x2x4xf32, #tpu.memory_space<vmem>>, vector<1x1x2x4xf32>
    %786 = vector.shape_cast %785 : vector<1x1x2x4xf32> to vector<2x4xf32>
    %787 = vector.shape_cast %751 : vector<2x4xf32> to vector<1x1x2x4xf32>
    tpu.vector_store %arg15[%c0_268, %c7_269, %c0_270, %c0_271], %787 {strides = array<i32>} : memref<1x8x2x4xf32, #tpu.memory_space<vmem>>, vector<1x1x2x4xf32>,
    %788 = tpu.concatenate %784, %713, %726 in 1 : vector<2x4xf32>, vector<2x4xf32>, vector<2x32xf32> -> vector<2x40xf32>
    %cst_272 = arith.constant dense<0.000000e+00> : vector<2x128xf32>
    %789 = tpu.matmul %788, %18, %cst_272 {dimension_numbers = #tpu.dot_dimension_numbers<[1], [0], [0], [1], [0, 0, 1, 1], [], []>} : vector<2x40xf32>, vector<40x128xf32>, vector<2x128xf32> -> vector<2x128xf32>
    %790 = vector.broadcast %20 : vector<1x128xf32> to vector<2x128xf32>
    %791 = arith.addf %789, %790 : vector<2x128xf32>
    %792 = vector.extract_strided_slice %791 {offsets = [0, 0], sizes = [2, 96], strides = [1, 1]} : vector<2x128xf32> to vector<2x96xf32>
    %793 = arith.negf %792 : vector<2x96xf32>
    %794 = math.exp %793 : vector<2x96xf32>
    %cst_273 = arith.constant 1.000000e+00 : f32
    %795 = vector.broadcast %cst_273 : f32 to vector<2x96xf32>
    %796 = arith.addf %795, %794 : vector<2x96xf32>
    %797 = arith.divf %795, %796 : vector<2x96xf32>
    %798 = vector.extract_strided_slice %791 {offsets = [0, 96], sizes = [2, 32], strides = [1, 1]} : vector<2x128xf32> to vector<2x32xf32>
    %799 = math.tanh %798 : vector<2x32xf32>
    %800 = vector.extract_strided_slice %797 {offsets = [0, 0], sizes = [2, 32], strides = [1, 1]} : vector<2x96xf32> to vector<2x32xf32>
    %801 = vector.extract_strided_slice %797 {offsets = [0, 32], sizes = [2, 32], strides = [1, 1]} : vector<2x96xf32> to vector<2x32xf32>
    %802 = vector.extract_strided_slice %797 {offsets = [0, 64], sizes = [2, 32], strides = [1, 1]} : vector<2x96xf32> to vector<2x32xf32>
    %803 = arith.mulf %801, %707 : vector<2x32xf32>
    %804 = arith.mulf %800, %799 : vector<2x32xf32>
    %805 = arith.addf %803, %804 : vector<2x32xf32>
    %806 = math.tanh %805 : vector<2x32xf32>
    %807 = arith.mulf %802, %806 : vector<2x32xf32>
    %c0_274 = arith.constant 0 : index
    %c0_275 = arith.constant 0 : index
    %c0_276 = arith.constant 0 : index
    %c0_277 = arith.constant 0 : index
    %808 = vector.load %arg15[%c0_274, %c0_275, %c0_276, %c0_277] : memref<1x8x2x4xf32, #tpu.memory_space<vmem>>, vector<1x8x2x4xf32>
    %809 = vector.shape_cast %808 : vector<1x8x2x4xf32> to vector<8x2x4xf32>
    %c0_278 = arith.constant 0 : index
    %c0_279 = arith.constant 0 : index
    %c0_280 = arith.constant 0 : index
    %c0_281 = arith.constant 0 : index
    %810 = vector.load %arg2[%c0_278, %c0_279, %c0_280, %c0_281] : memref<1x8x2x4xf32, #tpu.memory_space<vmem>>, vector<1x8x2x4xf32>
    %811 = vector.shape_cast %810 : vector<1x8x2x4xf32> to vector<8x2x4xf32>
    %c0_282 = arith.constant 0 : index
    %c0_283 = arith.constant 0 : index
    %c0_284 = arith.constant 0 : index
    %c0_285 = arith.constant 0 : index
    %812 = vector.load %arg1[%c0_282, %c0_283, %c0_284, %c0_285] : memref<1x8x2x4xf32, #tpu.memory_space<vmem>>, vector<1x8x2x4xf32>
    %813 = vector.shape_cast %812 : vector<1x8x2x4xf32> to vector<8x2x4xf32>
    %814 = arith.mulf %811, %813 : vector<8x2x4xf32>
    %cst_286 = arith.constant 1.000000e+00 : f32
    %815 = vector.broadcast %cst_286 : f32 to vector<8x2x4xf32>
    %816 = arith.subf %815, %811 : vector<8x2x4xf32>
    %817 = arith.mulf %816, %809 : vector<8x2x4xf32>
    %818 = arith.addf %814, %817 : vector<8x2x4xf32>
    %c0_287 = arith.constant 0 : index
    %c0_288 = arith.constant 0 : index
    %c0_289 = arith.constant 0 : index
    %c0_290 = arith.constant 0 : index
    %819 = vector.load %arg16[%c0_287, %c0_288, %c0_289, %c0_290] : memref<1x8x2x4xf32, #tpu.memory_space<vmem>>, vector<1x8x2x4xf32>
    %820 = vector.shape_cast %819 : vector<1x8x2x4xf32> to vector<8x2x4xf32>
    %821 = vector.shape_cast %818 : vector<8x2x4xf32> to vector<1x8x2x4xf32>
    tpu.vector_store %arg16[%c0_287, %c0_288, %c0_289, %c0_290], %821 {strides = array<i32>} : memref<1x8x2x4xf32, #tpu.memory_space<vmem>>, vector<1x8x2x4xf32>,
    %c0_291 = arith.constant 0 : index
    %c0_292 = arith.constant 0 : index
    %c0_293 = arith.constant 0 : index
    %822 = vector.load %arg17[%c0_291, %c0_292, %c0_293] : memref<1x2x32xf32, #tpu.memory_space<vmem>>, vector<1x2x32xf32>
    %823 = vector.shape_cast %822 : vector<1x2x32xf32> to vector<2x32xf32>
    %824 = vector.shape_cast %807 : vector<2x32xf32> to vector<1x2x32xf32>
    tpu.vector_store %arg17[%c0_291, %c0_292, %c0_293], %824 {strides = array<i32>} : memref<1x2x32xf32, #tpu.memory_space<vmem>>, vector<1x2x32xf32>,
    %cst_294 = arith.constant 0.0416666679 : f32
    %825 = vector.broadcast %cst_294 : f32 to vector<1x1xf32>
    %826 = arith.mulf %779, %825 : vector<1x1xf32>
    %c0_295 = arith.constant 0 : index
    %c0_296 = arith.constant 0 : index
    %c0_297 = arith.constant 0 : index
    %827 = vector.load %arg18[%c0_295, %c0_296, %c0_297] : memref<1x1x1xf32, #tpu.memory_space<vmem>>, vector<1x1x1xf32>
    %828 = vector.shape_cast %827 : vector<1x1x1xf32> to vector<1x1xf32>
    %829 = vector.shape_cast %826 : vector<1x1xf32> to vector<1x1x1xf32>
    tpu.vector_store %arg18[%c0_295, %c0_296, %c0_297], %829 {strides = array<i32>} : memref<1x1x1xf32, #tpu.memory_space<vmem>>, vector<1x1x1xf32>,
    return
  }
  func.func @transform_0(%arg0: i32) -> (i32, i32, i32, i32) {
    %c0_i32 = arith.constant 0 : i32
    %c0_i32_0 = arith.constant 0 : i32
    %c0_i32_1 = arith.constant 0 : i32
    %c0_i32_2 = arith.constant 0 : i32
    return %arg0, %c0_i32, %c0_i32_0, %c0_i32_1 : i32, i32, i32, i32
  }
  func.func @transform_1(%arg0: i32) -> (i32, i32, i32, i32) {
    %c0_i32 = arith.constant 0 : i32
    %c0_i32_0 = arith.constant 0 : i32
    %c0_i32_1 = arith.constant 0 : i32
    %c0_i32_2 = arith.constant 0 : i32
    return %arg0, %c0_i32, %c0_i32_0, %c0_i32_1 : i32, i32, i32, i32
  }
  func.func @transform_2(%arg0: i32) -> (i32, i32, i32, i32) {
    %c0_i32 = arith.constant 0 : i32
    %c0_i32_0 = arith.constant 0 : i32
    %c0_i32_1 = arith.constant 0 : i32
    %c0_i32_2 = arith.constant 0 : i32
    return %arg0, %c0_i32, %c0_i32_0, %c0_i32_1 : i32, i32, i32, i32
  }
  func.func @transform_3(%arg0: i32) -> (i32, i32) {
    %c0_i32 = arith.constant 0 : i32
    %c0_i32_0 = arith.constant 0 : i32
    %c0_i32_1 = arith.constant 0 : i32
    return %c0_i32, %c0_i32_0 : i32, i32
  }
  func.func @transform_4(%arg0: i32) -> (i32, i32, i32) {
    %c0_i32 = arith.constant 0 : i32
    %c0_i32_0 = arith.constant 0 : i32
    %c0_i32_1 = arith.constant 0 : i32
    return %arg0, %c0_i32, %c0_i32_0 : i32, i32, i32
  }
  func.func @transform_5(%arg0: i32) -> (i32, i32, i32) {
    %c0_i32 = arith.constant 0 : i32
    %c0_i32_0 = arith.constant 0 : i32
    %c0_i32_1 = arith.constant 0 : i32
    return %arg0, %c0_i32, %c0_i32_0 : i32, i32, i32
  }
  func.func @transform_6(%arg0: i32) -> (i32, i32, i32) {
    %c0_i32 = arith.constant 0 : i32
    %c0_i32_0 = arith.constant 0 : i32
    %c0_i32_1 = arith.constant 0 : i32
    return %arg0, %c0_i32, %c0_i32_0 : i32, i32, i32
  }
  func.func @transform_7(%arg0: i32) -> (i32, i32, i32) {
    %c0_i32 = arith.constant 0 : i32
    %c0_i32_0 = arith.constant 0 : i32
    %c0_i32_1 = arith.constant 0 : i32
    return %arg0, %c0_i32, %c0_i32_0 : i32, i32, i32
  }
  func.func @transform_8(%arg0: i32) -> (i32, i32, i32) {
    %c0_i32 = arith.constant 0 : i32
    %c0_i32_0 = arith.constant 0 : i32
    %c0_i32_1 = arith.constant 0 : i32
    return %arg0, %c0_i32, %c0_i32_0 : i32, i32, i32
  }
  func.func @transform_9(%arg0: i32) -> (i32, i32, i32) {
    %c0_i32 = arith.constant 0 : i32
    %c0_i32_0 = arith.constant 0 : i32
    %c0_i32_1 = arith.constant 0 : i32
    return %arg0, %c0_i32, %c0_i32_0 : i32, i32, i32
  }
  func.func @transform_10(%arg0: i32) -> (i32, i32, i32) {
    %c0_i32 = arith.constant 0 : i32
    %c0_i32_0 = arith.constant 0 : i32
    %c0_i32_1 = arith.constant 0 : i32
    return %arg0, %c0_i32, %c0_i32_0 : i32, i32, i32
  }
  func.func @transform_11(%arg0: i32) -> (i32, i32, i32) {
    %c0_i32 = arith.constant 0 : i32
    %c0_i32_0 = arith.constant 0 : i32
    %c0_i32_1 = arith.constant 0 : i32
    return %arg0, %c0_i32, %c0_i32_0 : i32, i32, i32
  }
  func.func @transform_12(%arg0: i32) -> (i32, i32, i32) {
    %c0_i32 = arith.constant 0 : i32
    %c0_i32_0 = arith.constant 0 : i32
    %c0_i32_1 = arith.constant 0 : i32
    return %arg0, %c0_i32, %c0_i32_0 : i32, i32, i32
  }
  func.func @transform_13(%arg0: i32) -> (i32, i32, i32) {
    %c0_i32 = arith.constant 0 : i32
    %c0_i32_0 = arith.constant 0 : i32
    %c0_i32_1 = arith.constant 0 : i32
    return %arg0, %c0_i32, %c0_i32_0 : i32, i32, i32
  }
  func.func @transform_14(%arg0: i32) -> (i32, i32, i32, i32) {
    %c0_i32 = arith.constant 0 : i32
    %c0_i32_0 = arith.constant 0 : i32
    %c0_i32_1 = arith.constant 0 : i32
    %c0_i32_2 = arith.constant 0 : i32
    return %arg0, %c0_i32, %c0_i32_0, %c0_i32_1 : i32, i32, i32, i32
  }
  func.func @transform_15(%arg0: i32) -> (i32, i32, i32, i32) {
    %c0_i32 = arith.constant 0 : i32
    %c0_i32_0 = arith.constant 0 : i32
    %c0_i32_1 = arith.constant 0 : i32
    %c0_i32_2 = arith.constant 0 : i32
    return %arg0, %c0_i32, %c0_i32_0, %c0_i32_1 : i32, i32, i32, i32
  }
  func.func @transform_16(%arg0: i32) -> (i32, i32, i32) {
    %c0_i32 = arith.constant 0 : i32
    %c0_i32_0 = arith.constant 0 : i32
    %c0_i32_1 = arith.constant 0 : i32
    return %arg0, %c0_i32, %c0_i32_0 : i32, i32, i32
  }
  func.func @transform_17(%arg0: i32) -> (i32, i32, i32) {
    %c0_i32 = arith.constant 0 : i32
    %c0_i32_0 = arith.constant 0 : i32
    %c0_i32_1 = arith.constant 0 : i32
    return %arg0, %c0_i32, %c0_i32_0 : i32, i32, i32
  }
}

</mosaic_0001>

<llo_original>
// kernel: tpu_custom_call.1
$region0: #{tpu_custom_call.1}
  #allocation0 [shape = 'u32[]', space=smem, size = 0x4, offset = 0x4, fixed_abs, tag = 'smem constant byte address 0x4 - core index']
  #allocation1 [shape = 'u32[72,128]{1,0:T(1,128)}', space=vmem, size = 0x9000, scoped, tag = 'internal scratch']
  %s0 = inlined_call_operand.vmem [shape: f32[2,8,2,4], index: 0, kind: input, shape index: {}]
  %s1 = inlined_call_operand.vmem [shape: f32[2,8,2,4], index: 1, kind: input, shape index: {}]
  %s2 = inlined_call_operand.vmem [shape: f32[2,8,2,4], index: 2, kind: input, shape index: {}]
  %s3 = inlined_call_operand.vmem [shape: f32[2,4], index: 3, kind: input, shape index: {}]
  %s4 = inlined_call_operand.vmem [shape: f32[2,4,36], index: 4, kind: input, shape index: {}]
  %s5 = inlined_call_operand.vmem [shape: f32[2,1,36], index: 5, kind: input, shape index: {}]
  %s6 = inlined_call_operand.vmem [shape: f32[2,32,4], index: 6, kind: input, shape index: {}]
  %s7 = inlined_call_operand.vmem [shape: f32[2,1,4], index: 7, kind: input, shape index: {}]
  %s8 = inlined_call_operand.vmem [shape: f32[2,4,4], index: 8, kind: input, shape index: {}]
  %s9 = inlined_call_operand.vmem [shape: f32[2,1,4], index: 9, kind: input, shape index: {}]
  %s10 = inlined_call_operand.vmem [shape: f32[2,8,4], index: 10, kind: input, shape index: {}]
  %s11 = inlined_call_operand.vmem [shape: f32[2,1,4], index: 11, kind: input, shape index: {}]
  %s12 = inlined_call_operand.vmem [shape: f32[2,40,128], index: 12, kind: input, shape index: {}]
  %s13 = inlined_call_operand.vmem [shape: f32[2,1,128], index: 13, kind: input, shape index: {}]
  %s14 = inlined_call_operand.vmem [shape: f32[2,8,2,4], index: 14, kind: output, shape index: {0}]
  %s15 = inlined_call_operand.vmem [shape: f32[2,8,2,4], index: 15, kind: output, shape index: {1}]
  %s16 = inlined_call_operand.hbm [shape: f32[2,2,32], index: 16, kind: output, shape index: {2}]
  %s17 = inlined_call_operand.vmem [shape: f32[2,1,1], index: 17, kind: output, shape index: {3}]
  %18 = xla_tuple %s14, %s15, %s16, %s17
  %s19 = sld [smem:[#allocation0]]
  $region113: #{tpu_custom_call.1} parent=0
    _
  %s21 = ssub.s32 1, %s19
  %s22 = scalar_select 0, %s21, %s19
  $region1: #{tpu_custom_call.1} parent=0
    #allocation2 [shape = 'u8[2048]{0}', space=vmem, size = 0x800, scoped, tag = 'output window, operand 2']
    #allocation3 [shape = 's32[2]{0}', space=sflag, size = 0x8, scoped, tag = 'scoped memory for tpu_custom_call.1']
    %23 = vsyncpa [#allocation3], 0
    %s24 = scalar_lea.sflag [#allocation3], 1
    %25 = vsyncpa %s24, 0
    loop: start=0, step=1, limit=4
    $region2: #{tpu_custom_call.1} parent=1 // loop_pre_header
      _
    $region3: #{tpu_custom_call.1} parent=1 // loop_header
      %s27 = sphi 0, %s31
      %p28 = scmp.ge.s32.totalorder %s27, 4
      %s37 = sphi 0, %s39
      %s40 = sphi 0, %s37
      %s41 = sphi 0, %s40
      %s57 = sphi 0, %s41
      %s63 = sphi 0, %s65
      %s66 = sphi 0, %s63
      %s67 = sphi 0, %s66
      %s83 = sphi 0, %s67
      %s89 = sphi 0, %s91
      %s92 = sphi 0, %s89
      %s93 = sphi 0, %s92
      %s109 = sphi 0, %s93
      %s113 = sphi 0, %s113
      %s115 = sphi 0, %s113
      %s116 = sphi 0, %s115
      %s130 = sphi 0, %s116
      %s136 = sphi 0, %s138
      %s139 = sphi 0, %s136
      %s140 = sphi 0, %s139
      %s156 = sphi 0, %s140
      %s162 = sphi 0, %s164
      %s165 = sphi 0, %s162
      %s166 = sphi 0, %s165
      %s182 = sphi 0, %s166
      %s188 = sphi 0, %s190
      %s191 = sphi 0, %s188
      %s192 = sphi 0, %s191
      %s208 = sphi 0, %s192
      %s214 = sphi 0, %s216
      %s217 = sphi 0, %s214
      %s218 = sphi 0, %s217
      %s234 = sphi 0, %s218
      %s240 = sphi 0, %s242
      %s243 = sphi 0, %s240
      %s244 = sphi 0, %s243
      %s260 = sphi 0, %s244
      %s266 = sphi 0, %s268
      %s269 = sphi 0, %s266
      %s270 = sphi 0, %s269
      %s286 = sphi 0, %s270
      %s292 = sphi 0, %s294
      %s295 = sphi 0, %s292
      %s296 = sphi 0, %s295
      %s312 = sphi 0, %s296
      %s318 = sphi 0, %s320
      %s321 = sphi 0, %s318
      %s322 = sphi 0, %s321
      %s338 = sphi 0, %s322
      %s344 = sphi 0, %s346
      %s347 = sphi 0, %s344
      %s348 = sphi 0, %s347
      %s364 = sphi 0, %s348
      %s370 = sphi 0, %s372
      %s373 = sphi 0, %s370
      %s374 = sphi 0, %s373
      %s390 = sphi 0, %s374
      %s396 = sphi 0, %s398
      %s399 = sphi 0, %s396
      %s400 = sphi 0, %s399
      %s416 = sphi 0, %s400
      %s422 = sphi 0, %s424
      %s425 = sphi 0, %s422
      %s426 = sphi 0, %s425
      %s442 = sphi 0, %s426
      %s448 = sphi 0, %s450
      %s451 = sphi 0, %s448
      %s452 = sphi 0, %s451
      %s468 = sphi 0, %s452
      %s474 = sphi 0, %s476
      %s477 = sphi 0, %s474
      %s478 = sphi 0, %s477
      %s494 = sphi 0, %s478
    $region4: #{tpu_custom_call.1} parent=1 // loop_header_branch
      %30 = sbr.rel (%p28) target = $region8
    $region5: #{tpu_custom_call.1} parent=1 // loop_body
      %s32 = ssub.s32 %s27, 1
      %s33 = ssub.s32 %s27, 2
      %s34 = sadd.s32 %s27, 1
      %s35 = ssub.s32 %s27, %s34
      %p36 = scmp.eq.s32.totalorder %s35, 0
      %s38 = sadd.s32 %s37, 1
      %s39 = scalar_select %p36, %s37, %s38
      %p42 = pneg %p36
      %p43 = scmp.eq.s32.totalorder %s27, 1
      %p44 = por %p42, %p43
      %p45 = scmp.ne.s32.totalorder %s37, %s40
      %p46 = scmp.eq.s32.totalorder %s27, 0
      %p47 = por %p45, %p46
      %p48 = scmp.ne.s32.totalorder %s37, %s40
      %p49 = scmp.eq.s32.totalorder %s32, 1
      %p50 = por %p48, %p49
      %p51 = scmp.ne.s32.totalorder %s40, %s41
      %p52 = scmp.eq.s32.totalorder %s32, 0
      %p53 = por %p51, %p52
      %p54 = scmp.ne.s32.totalorder %s40, %s41
      %p55 = scmp.eq.s32.totalorder %s33, 1
      %p56 = por %p54, %p55
      %p58 = scmp.ne.s32.totalorder %s41, %s57
      %p59 = scmp.eq.s32.totalorder %s33, 0
      %p60 = por %p58, %p59
      %s61 = ssub.s32 %s27, %s34
      %p62 = scmp.eq.s32.totalorder %s61, 0
      %s64 = sadd.s32 %s63, 1
      %s65 = scalar_select %p62, %s63, %s64
      %p68 = pneg %p62
      %p69 = scmp.eq.s32.totalorder %s27, 1
      %p70 = por %p68, %p69
      %p71 = scmp.ne.s32.totalorder %s63, %s66
      %p72 = scmp.eq.s32.totalorder %s27, 0
      %p73 = por %p71, %p72
      %p74 = scmp.ne.s32.totalorder %s63, %s66
      %p75 = scmp.eq.s32.totalorder %s32, 1
      %p76 = por %p74, %p75
      %p77 = scmp.ne.s32.totalorder %s66, %s67
      %p78 = scmp.eq.s32.totalorder %s32, 0
      %p79 = por %p77, %p78
      %p80 = scmp.ne.s32.totalorder %s66, %s67
      %p81 = scmp.eq.s32.totalorder %s33, 1
      %p82 = por %p80, %p81
      %p84 = scmp.ne.s32.totalorder %s67, %s83
      %p85 = scmp.eq.s32.totalorder %s33, 0
      %p86 = por %p84, %p85
      %s87 = ssub.s32 %s27, %s34
      %p88 = scmp.eq.s32.totalorder %s87, 0
      %s90 = sadd.s32 %s89, 1
      %s91 = scalar_select %p88, %s89, %s90
      %p94 = pneg %p88
      %p95 = scmp.eq.s32.totalorder %s27, 1
      %p96 = por %p94, %p95
      %p97 = scmp.ne.s32.totalorder %s89, %s92
      %p98 = scmp.eq.s32.totalorder %s27, 0
      %p99 = por %p97, %p98
      %p100 = scmp.ne.s32.totalorder %s89, %s92
      %p101 = scmp.eq.s32.totalorder %s32, 1
      %p102 = por %p100, %p101
      %p103 = scmp.ne.s32.totalorder %s92, %s93
      %p104 = scmp.eq.s32.totalorder %s32, 0
      %p105 = por %p103, %p104
      %p106 = scmp.ne.s32.totalorder %s92, %s93
      %p107 = scmp.eq.s32.totalorder %s33, 1
      %p108 = por %p106, %p107
      %p110 = scmp.ne.s32.totalorder %s93, %s109
      %p111 = scmp.eq.s32.totalorder %s33, 0
      %p112 = por %p110, %p111
      %s114 = sadd.s32 %s113, 1
      %p117 = scmp.eq.s32.totalorder %s27, 1
      %p118 = scmp.ne.s32.totalorder %s113, %s115
      %p119 = scmp.eq.s32.totalorder %s27, 0
      %p120 = por %p118, %p119
      %p121 = scmp.ne.s32.totalorder %s113, %s115
      %p122 = scmp.eq.s32.totalorder %s32, 1
      %p123 = por %p121, %p122
      %p124 = scmp.ne.s32.totalorder %s115, %s116
      %p125 = scmp.eq.s32.totalorder %s32, 0
      %p126 = por %p124, %p125
      %p127 = scmp.ne.s32.totalorder %s115, %s116
      %p128 = scmp.eq.s32.totalorder %s33, 1
      %p129 = por %p127, %p128
      %p131 = scmp.ne.s32.totalorder %s116, %s130
      %p132 = scmp.eq.s32.totalorder %s33, 0
      %p133 = por %p131, %p132
      %s134 = ssub.s32 %s27, %s34
      %p135 = scmp.eq.s32.totalorder %s134, 0
      %s137 = sadd.s32 %s136, 1
      %s138 = scalar_select %p135, %s136, %s137
      %p141 = pneg %p135
      %p142 = scmp.eq.s32.totalorder %s27, 1
      %p143 = por %p141, %p142
      %p144 = scmp.ne.s32.totalorder %s136, %s139
      %p145 = scmp.eq.s32.totalorder %s27, 0
      %p146 = por %p144, %p145
      %p147 = scmp.ne.s32.totalorder %s136, %s139
      %p148 = scmp.eq.s32.totalorder %s32, 1
      %p149 = por %p147, %p148
      %p150 = scmp.ne.s32.totalorder %s139, %s140
      %p151 = scmp.eq.s32.totalorder %s32, 0
      %p152 = por %p150, %p151
      %p153 = scmp.ne.s32.totalorder %s139, %s140
      %p154 = scmp.eq.s32.totalorder %s33, 1
      %p155 = por %p153, %p154
      %p157 = scmp.ne.s32.totalorder %s140, %s156
      %p158 = scmp.eq.s32.totalorder %s33, 0
      %p159 = por %p157, %p158
      %s160 = ssub.s32 %s27, %s34
      %p161 = scmp.eq.s32.totalorder %s160, 0
      %s163 = sadd.s32 %s162, 1
      %s164 = scalar_select %p161, %s162, %s163
      %p167 = pneg %p161
      %p168 = scmp.eq.s32.totalorder %s27, 1
      %p169 = por %p167, %p168
      %p170 = scmp.ne.s32.totalorder %s162, %s165
      %p171 = scmp.eq.s32.totalorder %s27, 0
      %p172 = por %p170, %p171
      %p173 = scmp.ne.s32.totalorder %s162, %s165
      %p174 = scmp.eq.s32.totalorder %s32, 1
      %p175 = por %p173, %p174
      %p176 = scmp.ne.s32.totalorder %s165, %s166
      %p177 = scmp.eq.s32.totalorder %s32, 0
      %p178 = por %p176, %p177
      %p179 = scmp.ne.s32.totalorder %s165, %s166
      %p180 = scmp.eq.s32.totalorder %s33, 1
      %p181 = por %p179, %p180
      %p183 = scmp.ne.s32.totalorder %s166, %s182
      %p184 = scmp.eq.s32.totalorder %s33, 0
      %p185 = por %p183, %p184
      %s186 = ssub.s32 %s27, %s34
      %p187 = scmp.eq.s32.totalorder %s186, 0
      %s189 = sadd.s32 %s188, 1
      %s190 = scalar_select %p187, %s188, %s189
      %p193 = pneg %p187
      %p194 = scmp.eq.s32.totalorder %s27, 1
      %p195 = por %p193, %p194
      %p196 = scmp.ne.s32.totalorder %s188, %s191
      %p197 = scmp.eq.s32.totalorder %s27, 0
      %p198 = por %p196, %p197
      %p199 = scmp.ne.s32.totalorder %s188, %s191
      %p200 = scmp.eq.s32.totalorder %s32, 1
      %p201 = por %p199, %p200
      %p202 = scmp.ne.s32.totalorder %s191, %s192
      %p203 = scmp.eq.s32.totalorder %s32, 0
      %p204 = por %p202, %p203
      %p205 = scmp.ne.s32.totalorder %s191, %s192
      %p206 = scmp.eq.s32.totalorder %s33, 1
      %p207 = por %p205, %p206
      %p209 = scmp.ne.s32.totalorder %s192, %s208
      %p210 = scmp.eq.s32.totalorder %s33, 0
      %p211 = por %p209, %p210
      %s212 = ssub.s32 %s27, %s34
      %p213 = scmp.eq.s32.totalorder %s212, 0
      %s215 = sadd.s32 %s214, 1
      %s216 = scalar_select %p213, %s214, %s215
      %p219 = pneg %p213
      %p220 = scmp.eq.s32.totalorder %s27, 1
      %p221 = por %p219, %p220
      %p222 = scmp.ne.s32.totalorder %s214, %s217
      %p223 = scmp.eq.s32.totalorder %s27, 0
      %p224 = por %p222, %p223
      %p225 = scmp.ne.s32.totalorder %s214, %s217
      %p226 = scmp.eq.s32.totalorder %s32, 1
      %p227 = por %p225, %p226
      %p228 = scmp.ne.s32.totalorder %s217, %s218
      %p229 = scmp.eq.s32.totalorder %s32, 0
      %p230 = por %p228, %p229
      %p231 = scmp.ne.s32.totalorder %s217, %s218
      %p232 = scmp.eq.s32.totalorder %s33, 1
      %p233 = por %p231, %p232
      %p235 = scmp.ne.s32.totalorder %s218, %s234
      %p236 = scmp.eq.s32.totalorder %s33, 0
      %p237 = por %p235, %p236
      %s238 = ssub.s32 %s27, %s34
      %p239 = scmp.eq.s32.totalorder %s238, 0
      %s241 = sadd.s32 %s240, 1
      %s242 = scalar_select %p239, %s240, %s241
      %p245 = pneg %p239
      %p246 = scmp.eq.s32.totalorder %s27, 1
      %p247 = por %p245, %p246
      %p248 = scmp.ne.s32.totalorder %s240, %s243
      %p249 = scmp.eq.s32.totalorder %s27, 0
      %p250 = por %p248, %p249
      %p251 = scmp.ne.s32.totalorder %s240, %s243
      %p252 = scmp.eq.s32.totalorder %s32, 1
      %p253 = por %p251, %p252
      %p254 = scmp.ne.s32.totalorder %s243, %s244
      %p255 = scmp.eq.s32.totalorder %s32, 0
      %p256 = por %p254, %p255
      %p257 = scmp.ne.s32.totalorder %s243, %s244
      %p258 = scmp.eq.s32.totalorder %s33, 1
      %p259 = por %p257, %p258
      %p261 = scmp.ne.s32.totalorder %s244, %s260
      %p262 = scmp.eq.s32.totalorder %s33, 0
      %p263 = por %p261, %p262
      %s264 = ssub.s32 %s27, %s34
      %p265 = scmp.eq.s32.totalorder %s264, 0
      %s267 = sadd.s32 %s266, 1
      %s268 = scalar_select %p265, %s266, %s267
      %p271 = pneg %p265
      %p272 = scmp.eq.s32.totalorder %s27, 1
      %p273 = por %p271, %p272
      %p274 = scmp.ne.s32.totalorder %s266, %s269
      %p275 = scmp.eq.s32.totalorder %s27, 0
      %p276 = por %p274, %p275
      %p277 = scmp.ne.s32.totalorder %s266, %s269
      %p278 = scmp.eq.s32.totalorder %s32, 1
      %p279 = por %p277, %p278
      %p280 = scmp.ne.s32.totalorder %s269, %s270
      %p281 = scmp.eq.s32.totalorder %s32, 0
      %p282 = por %p280, %p281
      %p283 = scmp.ne.s32.totalorder %s269, %s270
      %p284 = scmp.eq.s32.totalorder %s33, 1
      %p285 = por %p283, %p284
      %p287 = scmp.ne.s32.totalorder %s270, %s286
      %p288 = scmp.eq.s32.totalorder %s33, 0
      %p289 = por %p287, %p288
      %s290 = ssub.s32 %s27, %s34
      %p291 = scmp.eq.s32.totalorder %s290, 0
      %s293 = sadd.s32 %s292, 1
      %s294 = scalar_select %p291, %s292, %s293
      %p297 = pneg %p291
      %p298 = scmp.eq.s32.totalorder %s27, 1
      %p299 = por %p297, %p298
      %p300 = scmp.ne.s32.totalorder %s292, %s295
      %p301 = scmp.eq.s32.totalorder %s27, 0
      %p302 = por %p300, %p301
      %p303 = scmp.ne.s32.totalorder %s292, %s295
      %p304 = scmp.eq.s32.totalorder %s32, 1
      %p305 = por %p303, %p304
      %p306 = scmp.ne.s32.totalorder %s295, %s296
      %p307 = scmp.eq.s32.totalorder %s32, 0
      %p308 = por %p306, %p307
      %p309 = scmp.ne.s32.totalorder %s295, %s296
      %p310 = scmp.eq.s32.totalorder %s33, 1
      %p311 = por %p309, %p310
      %p313 = scmp.ne.s32.totalorder %s296, %s312
      %p314 = scmp.eq.s32.totalorder %s33, 0
      %p315 = por %p313, %p314
      %s316 = ssub.s32 %s27, %s34
      %p317 = scmp.eq.s32.totalorder %s316, 0
      %s319 = sadd.s32 %s318, 1
      %s320 = scalar_select %p317, %s318, %s319
      %p323 = pneg %p317
      %p324 = scmp.eq.s32.totalorder %s27, 1
      %p325 = por %p323, %p324
      %p326 = scmp.ne.s32.totalorder %s318, %s321
      %p327 = scmp.eq.s32.totalorder %s27, 0
      %p328 = por %p326, %p327
      %p329 = scmp.ne.s32.totalorder %s318, %s321
      %p330 = scmp.eq.s32.totalorder %s32, 1
      %p331 = por %p329, %p330
      %p332 = scmp.ne.s32.totalorder %s321, %s322
      %p333 = scmp.eq.s32.totalorder %s32, 0
      %p334 = por %p332, %p333
      %p335 = scmp.ne.s32.totalorder %s321, %s322
      %p336 = scmp.eq.s32.totalorder %s33, 1
      %p337 = por %p335, %p336
      %p339 = scmp.ne.s32.totalorder %s322, %s338
      %p340 = scmp.eq.s32.totalorder %s33, 0
      %p341 = por %p339, %p340
      %s342 = ssub.s32 %s27, %s34
      %p343 = scmp.eq.s32.totalorder %s342, 0
      %s345 = sadd.s32 %s344, 1
      %s346 = scalar_select %p343, %s344, %s345
      %p349 = pneg %p343
      %p350 = scmp.eq.s32.totalorder %s27, 1
      %p351 = por %p349, %p350
      %p352 = scmp.ne.s32.totalorder %s344, %s347
      %p353 = scmp.eq.s32.totalorder %s27, 0
      %p354 = por %p352, %p353
      %p355 = scmp.ne.s32.totalorder %s344, %s347
      %p356 = scmp.eq.s32.totalorder %s32, 1
      %p357 = por %p355, %p356
      %p358 = scmp.ne.s32.totalorder %s347, %s348
      %p359 = scmp.eq.s32.totalorder %s32, 0
      %p360 = por %p358, %p359
      %p361 = scmp.ne.s32.totalorder %s347, %s348
      %p362 = scmp.eq.s32.totalorder %s33, 1
      %p363 = por %p361, %p362
      %p365 = scmp.ne.s32.totalorder %s348, %s364
      %p366 = scmp.eq.s32.totalorder %s33, 0
      %p367 = por %p365, %p366
      %s368 = ssub.s32 %s27, %s34
      %p369 = scmp.eq.s32.totalorder %s368, 0
      %s371 = sadd.s32 %s370, 1
      %s372 = scalar_select %p369, %s370, %s371
      %p375 = pneg %p369
      %p376 = scmp.eq.s32.totalorder %s27, 1
      %p377 = por %p375, %p376
      %p378 = scmp.ne.s32.totalorder %s370, %s373
      %p379 = scmp.eq.s32.totalorder %s27, 0
      %p380 = por %p378, %p379
      %p381 = scmp.ne.s32.totalorder %s370, %s373
      %p382 = scmp.eq.s32.totalorder %s32, 1
      %p383 = por %p381, %p382
      %p384 = scmp.ne.s32.totalorder %s373, %s374
      %p385 = scmp.eq.s32.totalorder %s32, 0
      %p386 = por %p384, %p385
      %p387 = scmp.ne.s32.totalorder %s373, %s374
      %p388 = scmp.eq.s32.totalorder %s33, 1
      %p389 = por %p387, %p388
      %p391 = scmp.ne.s32.totalorder %s374, %s390
      %p392 = scmp.eq.s32.totalorder %s33, 0
      %p393 = por %p391, %p392
      %s394 = ssub.s32 %s27, %s34
      %p395 = scmp.eq.s32.totalorder %s394, 0
      %s397 = sadd.s32 %s396, 1
      %s398 = scalar_select %p395, %s396, %s397
      %p401 = pneg %p395
      %p402 = scmp.eq.s32.totalorder %s27, 1
      %p403 = por %p401, %p402
      %p404 = scmp.ne.s32.totalorder %s396, %s399
      %p405 = scmp.eq.s32.totalorder %s27, 0
      %p406 = por %p404, %p405
      %p407 = scmp.ne.s32.totalorder %s396, %s399
      %p408 = scmp.eq.s32.totalorder %s32, 1
      %p409 = por %p407, %p408
      %p410 = scmp.ne.s32.totalorder %s399, %s400
      %p411 = scmp.eq.s32.totalorder %s32, 0
      %p412 = por %p410, %p411
      %p413 = scmp.ne.s32.totalorder %s399, %s400
      %p414 = scmp.eq.s32.totalorder %s33, 1
      %p415 = por %p413, %p414
      %p417 = scmp.ne.s32.totalorder %s400, %s416
      %p418 = scmp.eq.s32.totalorder %s33, 0
      %p419 = por %p417, %p418
      %s420 = ssub.s32 %s27, %s34
      %p421 = scmp.eq.s32.totalorder %s420, 0
      %s423 = sadd.s32 %s422, 1
      %s424 = scalar_select %p421, %s422, %s423
      %p427 = pneg %p421
      %p428 = scmp.eq.s32.totalorder %s27, 1
      %p429 = por %p427, %p428
      %p430 = scmp.ne.s32.totalorder %s422, %s425
      %p431 = scmp.eq.s32.totalorder %s27, 0
      %p432 = por %p430, %p431
      %p433 = scmp.ne.s32.totalorder %s422, %s425
      %p434 = scmp.eq.s32.totalorder %s32, 1
      %p435 = por %p433, %p434
      %p436 = scmp.ne.s32.totalorder %s425, %s426
      %p437 = scmp.eq.s32.totalorder %s32, 0
      %p438 = por %p436, %p437
      %p439 = scmp.ne.s32.totalorder %s425, %s426
      %p440 = scmp.eq.s32.totalorder %s33, 1
      %p441 = por %p439, %p440
      %p443 = scmp.ne.s32.totalorder %s426, %s442
      %p444 = scmp.eq.s32.totalorder %s33, 0
      %p445 = por %p443, %p444
      %s446 = ssub.s32 %s27, %s34
      %p447 = scmp.eq.s32.totalorder %s446, 0
      %s449 = sadd.s32 %s448, 1
      %s450 = scalar_select %p447, %s448, %s449
      %p453 = pneg %p447
      %p454 = scmp.eq.s32.totalorder %s27, 1
      %p455 = por %p453, %p454
      %p456 = scmp.ne.s32.totalorder %s448, %s451
      %p457 = scmp.eq.s32.totalorder %s27, 0
      %p458 = por %p456, %p457
      %p459 = scmp.ne.s32.totalorder %s448, %s451
      %p460 = scmp.eq.s32.totalorder %s32, 1
      %p461 = por %p459, %p460
      %p462 = scmp.ne.s32.totalorder %s451, %s452
      %p463 = scmp.eq.s32.totalorder %s32, 0
      %p464 = por %p462, %p463
      %p465 = scmp.ne.s32.totalorder %s451, %s452
      %p466 = scmp.eq.s32.totalorder %s33, 1
      %p467 = por %p465, %p466
      %p469 = scmp.ne.s32.totalorder %s452, %s468
      %p470 = scmp.eq.s32.totalorder %s33, 0
      %p471 = por %p469, %p470
      %s472 = ssub.s32 %s27, %s34
      %p473 = scmp.eq.s32.totalorder %s472, 0
      %s475 = sadd.s32 %s474, 1
      %s476 = scalar_select %p473, %s474, %s475
      %p479 = pneg %p473
      %p480 = scmp.eq.s32.totalorder %s27, 1
      %p481 = por %p479, %p480
      %p482 = scmp.ne.s32.totalorder %s474, %s477
      %p483 = scmp.eq.s32.totalorder %s27, 0
      %p484 = por %p482, %p483
      %p485 = scmp.ne.s32.totalorder %s474, %s477
      %p486 = scmp.eq.s32.totalorder %s32, 1
      %p487 = por %p485, %p486
      %p488 = scmp.ne.s32.totalorder %s477, %s478
      %p489 = scmp.eq.s32.totalorder %s32, 0
      %p490 = por %p488, %p489
      %p491 = scmp.ne.s32.totalorder %s477, %s478
      %p492 = scmp.eq.s32.totalorder %s33, 1
      %p493 = por %p491, %p492
      %p495 = scmp.ne.s32.totalorder %s478, %s494
      %p496 = scmp.eq.s32.totalorder %s33, 0
      %p497 = por %p495, %p496
      %p498 = scmp.le.s32.totalorder 1, %s27
      %p499 = scmp.lt.s32.totalorder %s27, 3
      %p500 = pnand %p498, %p499
      %p501 = pneg %p500
      // Predicated region
      $region9: #{tpu_custom_call.1} parent=5 // pred_check
        _
      $region10: #{tpu_custom_call.1} parent=5 // pred_check_branch
        %503 = sbr.rel (%p500) target = $region12
      $region11: #{tpu_custom_call.1} parent=5 // pred_region
        %s504 = ssub.s32 %s27, 1
        // Predicated region
        $region13: #{tpu_custom_call.1} parent=11 // pred_check
          %p505 = pneg %p126
        $region14: #{tpu_custom_call.1} parent=11 // pred_check_branch
          %507 = sbr.rel (%p505) target = $region16
        $region15: #{tpu_custom_call.1} parent=11 // pred_region
          _
        $region16: #{tpu_custom_call.1} parent=11 // pred_fallthru
          _
      $region12: #{tpu_custom_call.1} parent=5 // pred_fallthru
        _
      %p508 = scmp.lt.s32.totalorder %s27, 2
      // Predicated region
      $region17: #{tpu_custom_call.1} parent=5 // pred_check
        %p509 = pneg %p508
      $region18: #{tpu_custom_call.1} parent=5 // pred_check_branch
        %511 = sbr.rel (%p509) target = $region20
      $region19: #{tpu_custom_call.1} parent=5 // pred_region
        // Predicated region
        $region21: #{tpu_custom_call.1} parent=19 // pred_check
          %p512 = pneg %p47
        $region22: #{tpu_custom_call.1} parent=19 // pred_check_branch
          %514 = sbr.rel (%p512) target = $region24
        $region23: #{tpu_custom_call.1} parent=19 // pred_region
          %p515 = scmp.lt.s32.totalorder %s27, 1
          %s516 = scalar_select %p515, %s27, 1
          %s517 = smul.addr %s516, 8
          %s518 = smul.addr %s517, 2
          %s519 = scalar_lea.vmem %s0, %s518
        $region24: #{tpu_custom_call.1} parent=19 // pred_fallthru
          _
        // Predicated region
        $region25: #{tpu_custom_call.1} parent=19 // pred_check
          %p520 = pneg %p73
        $region26: #{tpu_custom_call.1} parent=19 // pred_check_branch
          %522 = sbr.rel (%p520) target = $region28
        $region27: #{tpu_custom_call.1} parent=19 // pred_region
          %p523 = scmp.lt.s32.totalorder %s27, 1
          %s524 = scalar_select %p523, %s27, 1
          %s525 = smul.addr %s524, 8
          %s526 = smul.addr %s525, 2
          %s527 = scalar_lea.vmem %s1, %s526
        $region28: #{tpu_custom_call.1} parent=19 // pred_fallthru
          _
        // Predicated region
        $region29: #{tpu_custom_call.1} parent=19 // pred_check
          %p528 = pneg %p99
        $region30: #{tpu_custom_call.1} parent=19 // pred_check_branch
          %530 = sbr.rel (%p528) target = $region32
        $region31: #{tpu_custom_call.1} parent=19 // pred_region
          %p531 = scmp.lt.s32.totalorder %s27, 1
          %s532 = scalar_select %p531, %s27, 1
          %s533 = smul.addr %s532, 8
          %s534 = smul.addr %s533, 2
          %s535 = scalar_lea.vmem %s2, %s534
        $region32: #{tpu_custom_call.1} parent=19 // pred_fallthru
          _
        // Predicated region
        $region33: #{tpu_custom_call.1} parent=19 // pred_check
          %p536 = pneg %p146
        $region34: #{tpu_custom_call.1} parent=19 // pred_check_branch
          %538 = sbr.rel (%p536) target = $region36
        $region35: #{tpu_custom_call.1} parent=19 // pred_region
          %p539 = scmp.lt.s32.totalorder %s27, 1
          %s540 = scalar_select %p539, %s27, 1
          %s541 = smul.addr %s540, 4
          %s542 = scalar_lea.vmem %s4, %s541
        $region36: #{tpu_custom_call.1} parent=19 // pred_fallthru
          _
        // Predicated region
        $region37: #{tpu_custom_call.1} parent=19 // pred_check
          %p543 = pneg %p172
        $region38: #{tpu_custom_call.1} parent=19 // pred_check_branch
          %545 = sbr.rel (%p543) target = $region40
        $region39: #{tpu_custom_call.1} parent=19 // pred_region
          %p546 = scmp.lt.s32.totalorder %s27, 1
          %s547 = scalar_select %p546, %s27, 1
          %s548 = scalar_lea.vmem %s5, %s547
        $region40: #{tpu_custom_call.1} parent=19 // pred_fallthru
          _
        // Predicated region
        $region41: #{tpu_custom_call.1} parent=19 // pred_check
          %p549 = pneg %p198
        $region42: #{tpu_custom_call.1} parent=19 // pred_check_branch
          %551 = sbr.rel (%p549) target = $region44
        $region43: #{tpu_custom_call.1} parent=19 // pred_region
          %p552 = scmp.lt.s32.totalorder %s27, 1
          %s553 = scalar_select %p552, %s27, 1
          %s554 = smul.addr %s553, 4
          %s555 = smul.addr %s554, 8
          %s556 = scalar_lea.vmem %s6, %s555
        $region44: #{tpu_custom_call.1} parent=19 // pred_fallthru
          _
        // Predicated region
        $region45: #{tpu_custom_call.1} parent=19 // pred_check
          %p557 = pneg %p224
        $region46: #{tpu_custom_call.1} parent=19 // pred_check_branch
          %559 = sbr.rel (%p557) target = $region48
        $region47: #{tpu_custom_call.1} parent=19 // pred_region
          %p560 = scmp.lt.s32.totalorder %s27, 1
          %s561 = scalar_select %p560, %s27, 1
          %s562 = scalar_lea.vmem %s7, %s561
        $region48: #{tpu_custom_call.1} parent=19 // pred_fallthru
          _
        // Predicated region
        $region49: #{tpu_custom_call.1} parent=19 // pred_check
          %p563 = pneg %p250
        $region50: #{tpu_custom_call.1} parent=19 // pred_check_branch
          %565 = sbr.rel (%p563) target = $region52
        $region51: #{tpu_custom_call.1} parent=19 // pred_region
          %p566 = scmp.lt.s32.totalorder %s27, 1
          %s567 = scalar_select %p566, %s27, 1
          %s568 = smul.addr %s567, 4
          %s569 = scalar_lea.vmem %s8, %s568
        $region52: #{tpu_custom_call.1} parent=19 // pred_fallthru
          _
        // Predicated region
        $region53: #{tpu_custom_call.1} parent=19 // pred_check
          %p570 = pneg %p276
        $region54: #{tpu_custom_call.1} parent=19 // pred_check_branch
          %572 = sbr.rel (%p570) target = $region56
        $region55: #{tpu_custom_call.1} parent=19 // pred_region
          %p573 = scmp.lt.s32.totalorder %s27, 1
          %s574 = scalar_select %p573, %s27, 1
          %s575 = scalar_lea.vmem %s9, %s574
        $region56: #{tpu_custom_call.1} parent=19 // pred_fallthru
          _
        // Predicated region
        $region57: #{tpu_custom_call.1} parent=19 // pred_check
          %p576 = pneg %p302
        $region58: #{tpu_custom_call.1} parent=19 // pred_check_branch
          %578 = sbr.rel (%p576) target = $region60
        $region59: #{tpu_custom_call.1} parent=19 // pred_region
          %p579 = scmp.lt.s32.totalorder %s27, 1
          %s580 = scalar_select %p579, %s27, 1
          %s581 = smul.addr %s580, 8
          %s582 = scalar_lea.vmem %s10, %s581
        $region60: #{tpu_custom_call.1} parent=19 // pred_fallthru
          _
        // Predicated region
        $region61: #{tpu_custom_call.1} parent=19 // pred_check
          %p583 = pneg %p328
        $region62: #{tpu_custom_call.1} parent=19 // pred_check_branch
          %585 = sbr.rel (%p583) target = $region64
        $region63: #{tpu_custom_call.1} parent=19 // pred_region
          %p586 = scmp.lt.s32.totalorder %s27, 1
          %s587 = scalar_select %p586, %s27, 1
          %s588 = scalar_lea.vmem %s11, %s587
        $region64: #{tpu_custom_call.1} parent=19 // pred_fallthru
          _
        // Predicated region
        $region65: #{tpu_custom_call.1} parent=19 // pred_check
          %p589 = pneg %p354
        $region66: #{tpu_custom_call.1} parent=19 // pred_check_branch
          %591 = sbr.rel (%p589) target = $region68
        $region67: #{tpu_custom_call.1} parent=19 // pred_region
          %p592 = scmp.lt.s32.totalorder %s27, 1
          %s593 = scalar_select %p592, %s27, 1
          %s594 = smul.addr %s593, 5
          %s595 = smul.addr %s594, 8
          %s596 = scalar_lea.vmem %s12, %s595
        $region68: #{tpu_custom_call.1} parent=19 // pred_fallthru
          _
        // Predicated region
        $region69: #{tpu_custom_call.1} parent=19 // pred_check
          %p597 = pneg %p380
        $region70: #{tpu_custom_call.1} parent=19 // pred_check_branch
          %599 = sbr.rel (%p597) target = $region72
        $region71: #{tpu_custom_call.1} parent=19 // pred_region
          %p600 = scmp.lt.s32.totalorder %s27, 1
          %s601 = scalar_select %p600, %s27, 1
          %s602 = scalar_lea.vmem %s13, %s601
        $region72: #{tpu_custom_call.1} parent=19 // pred_fallthru
          _
      $region20: #{tpu_custom_call.1} parent=5 // pred_fallthru
        _
      %p603 = scmp.le.s32.totalorder 1, %s27
      %p604 = scmp.lt.s32.totalorder %s27, 3
      %p605 = pnand %p603, %p604
      %p606 = pneg %p605
      // Predicated region
      $region73: #{tpu_custom_call.1} parent=5 // pred_check
        _
      $region74: #{tpu_custom_call.1} parent=5 // pred_check_branch
        %608 = sbr.rel (%p605) target = $region76
      $region75: #{tpu_custom_call.1} parent=5 // pred_region
        %s609 = ssub.s32 %s27, 1
        %p610 = scmp.lt.s32.totalorder %s32, 1
        %s611 = scalar_select %p610, %s32, 1
        %s612 = smul.addr %s611, 8
        %s613 = smul.addr %s612, 2
        %s614 = scalar_lea.vmem %s0, %s613
        %p615 = pneg %p53
        %p616 = pneg %p50
        %p617 = scmp.lt.s32.totalorder %s32, 1
        %s618 = scalar_select %p617, %s32, 1
        %s619 = smul.addr %s618, 8
        %s620 = smul.addr %s619, 2
        %s621 = scalar_lea.vmem %s1, %s620
        %p622 = pneg %p79
        %p623 = pneg %p76
        %p624 = scmp.lt.s32.totalorder %s32, 1
        %s625 = scalar_select %p624, %s32, 1
        %s626 = smul.addr %s625, 8
        %s627 = smul.addr %s626, 2
        %s628 = scalar_lea.vmem %s2, %s627
        %p629 = pneg %p105
        %p630 = pneg %p102
        %p631 = pneg %p126
        %p632 = pneg %p123
        %p633 = scmp.lt.s32.totalorder %s32, 1
        %s634 = scalar_select %p633, %s32, 1
        %s635 = smul.addr %s634, 4
        %s636 = scalar_lea.vmem %s4, %s635
        %p637 = pneg %p152
        %p638 = pneg %p149
        %p639 = scmp.lt.s32.totalorder %s32, 1
        %s640 = scalar_select %p639, %s32, 1
        %s641 = scalar_lea.vmem %s5, %s640
        %p642 = pneg %p178
        %p643 = pneg %p175
        %p644 = scmp.lt.s32.totalorder %s32, 1
        %s645 = scalar_select %p644, %s32, 1
        %s646 = smul.addr %s645, 4
        %s647 = smul.addr %s646, 8
        %s648 = scalar_lea.vmem %s6, %s647
        %p649 = pneg %p204
        %p650 = pneg %p201
        %p651 = scmp.lt.s32.totalorder %s32, 1
        %s652 = scalar_select %p651, %s32, 1
        %s653 = scalar_lea.vmem %s7, %s652
        %p654 = pneg %p230
        %p655 = pneg %p227
        %p656 = scmp.lt.s32.totalorder %s32, 1
        %s657 = scalar_select %p656, %s32, 1
        %s658 = smul.addr %s657, 4
        %s659 = scalar_lea.vmem %s8, %s658
        %p660 = pneg %p256
        %p661 = pneg %p253
        %p662 = scmp.lt.s32.totalorder %s32, 1
        %s663 = scalar_select %p662, %s32, 1
        %s664 = scalar_lea.vmem %s9, %s663
        %p665 = pneg %p282
        %p666 = pneg %p279
        %p667 = scmp.lt.s32.totalorder %s32, 1
        %s668 = scalar_select %p667, %s32, 1
        %s669 = smul.addr %s668, 8
        %s670 = scalar_lea.vmem %s10, %s669
        %p671 = pneg %p308
        %p672 = pneg %p305
        %p673 = scmp.lt.s32.totalorder %s32, 1
        %s674 = scalar_select %p673, %s32, 1
        %s675 = scalar_lea.vmem %s11, %s674
        %p676 = pneg %p334
        %p677 = pneg %p331
        %p678 = scmp.lt.s32.totalorder %s32, 1
        %s679 = scalar_select %p678, %s32, 1
        %s680 = smul.addr %s679, 5
        %s681 = smul.addr %s680, 8
        %s682 = scalar_lea.vmem %s12, %s681
        %p683 = pneg %p360
        %p684 = pneg %p357
        %p685 = scmp.lt.s32.totalorder %s32, 1
        %s686 = scalar_select %p685, %s32, 1
        %s687 = scalar_lea.vmem %s13, %s686
        %p688 = pneg %p386
        %p689 = pneg %p383
        %p690 = pneg %p412
        %p691 = pneg %p409
        %p692 = scmp.lt.s32.totalorder %s32, 1
        %s693 = scalar_select %p692, %s32, 1
        %s694 = smul.addr %s693, 8
        %s695 = smul.addr %s694, 2
        %s696 = scalar_lea.vmem %s14, %s695
        %p697 = pneg %p438
        %p698 = pneg %p435
        %p699 = scmp.lt.s32.totalorder %s32, 1
        %s700 = scalar_select %p699, %s32, 1
        %s701 = smul.addr %s700, 8
        %s702 = smul.addr %s701, 2
        %s703 = scalar_lea.vmem %s15, %s702
        %p704 = pneg %p464
        %p705 = pneg %p461
        %s706 = sand.u32 %s451, 1
        %s707 = scalar_lea.sflag [#allocation3], %s706
        %s708 = sand.u32 %s451, 1
        %s709 = smul.addr %s708, 2
        %s710 = scalar_lea.vmem [#allocation2], %s709
        %p711 = pneg %p490
        %p712 = pneg %p487
        %p713 = scmp.lt.s32.totalorder %s32, 1
        %s714 = scalar_select %p713, %s32, 1
        %s715 = scalar_lea.vmem %s17, %s714
        %p716 = scmp.lt.s32.totalorder %s32, 1
        %s717 = scalar_select %p716, %s32, 1
        %s718 = smul.addr %s717, 8
        %s719 = smul.addr %s718, 2
        %s720 = scalar_lea.vmem %s0, %s719
        %p721 = scmp.lt.s32.totalorder %s32, 1
        %s722 = scalar_select %p721, %s32, 1
        %s723 = smul.addr %s722, 8
        %s724 = smul.addr %s723, 2
        %s725 = scalar_lea.vmem %s1, %s724
        %p726 = scmp.lt.s32.totalorder %s32, 1
        %s727 = scalar_select %p726, %s32, 1
        %s728 = smul.addr %s727, 8
        %s729 = smul.addr %s728, 2
        %s730 = scalar_lea.vmem %s2, %s729
        %p731 = scmp.lt.s32.totalorder %s32, 1
        %s732 = scalar_select %p731, %s32, 1
        %s733 = smul.addr %s732, 4
        %s734 = scalar_lea.vmem %s4, %s733
        %p735 = scmp.lt.s32.totalorder %s32, 1
        %s736 = scalar_select %p735, %s32, 1
        %s737 = scalar_lea.vmem %s5, %s736
        %p738 = scmp.lt.s32.totalorder %s32, 1
        %s739 = scalar_select %p738, %s32, 1
        %s740 = smul.addr %s739, 4
        %s741 = smul.addr %s740, 8
        %s742 = scalar_lea.vmem %s6, %s741
        %p743 = scmp.lt.s32.totalorder %s32, 1
        %s744 = scalar_select %p743, %s32, 1
        %s745 = scalar_lea.vmem %s7, %s744
        %p746 = scmp.lt.s32.totalorder %s32, 1
        %s747 = scalar_select %p746, %s32, 1
        %s748 = smul.addr %s747, 4
        %s749 = scalar_lea.vmem %s8, %s748
        %p750 = scmp.lt.s32.totalorder %s32, 1
        %s751 = scalar_select %p750, %s32, 1
        %s752 = scalar_lea.vmem %s9, %s751
        %p753 = scmp.lt.s32.totalorder %s32, 1
        %s754 = scalar_select %p753, %s32, 1
        %s755 = smul.addr %s754, 8
        %s756 = scalar_lea.vmem %s10, %s755
        %p757 = scmp.lt.s32.totalorder %s32, 1
        %s758 = scalar_select %p757, %s32, 1
        %s759 = scalar_lea.vmem %s11, %s758
        %p760 = scmp.lt.s32.totalorder %s32, 1
        %s761 = scalar_select %p760, %s32, 1
        %s762 = smul.addr %s761, 5
        %s763 = smul.addr %s762, 8
        %s764 = scalar_lea.vmem %s12, %s763
        %p765 = scmp.lt.s32.totalorder %s32, 1
        %s766 = scalar_select %p765, %s32, 1
        %s767 = scalar_lea.vmem %s13, %s766
        %p768 = scmp.lt.s32.totalorder %s32, 1
        %s769 = scalar_select %p768, %s32, 1
        %s770 = smul.addr %s769, 8
        %s771 = smul.addr %s770, 2
        %s772 = scalar_lea.vmem %s14, %s771
        %p773 = scmp.lt.s32.totalorder %s32, 1
        %s774 = scalar_select %p773, %s32, 1
        %s775 = smul.addr %s774, 8
        %s776 = smul.addr %s775, 2
        %s777 = scalar_lea.vmem %s15, %s776
        %p778 = scmp.lt.s32.totalorder %s32, 1
        %s779 = scalar_select %p778, %s32, 1
        %s780 = scalar_lea.vmem %s17, %s779
        %v781 = vld [vmem:[%s3] sm:$0x3]
        %v782 = vld [vmem:[%s734] sm:$0xf]
        %v783 = vld [vmem:[%s737] sm:$0x1]
        %v784 = vld [vmem:[%s742] sm:$0xff]
        %v785 = vld [vmem:[%s742 + $0x8] sm:$0xff]
        %v786 = vld [vmem:[%s742 + $0x10] sm:$0xff]
        %v787 = vld [vmem:[%s742 + $0x18] sm:$0xff]
        %v788 = vld [vmem:[%s745] sm:$0x1]
        %v789 = vld [vmem:[%s749] sm:$0xf]
        %v790 = vld [vmem:[%s752] sm:$0x1]
        %v791 = vld [vmem:[%s756] sm:$0xff]
        %v792 = vld [vmem:[%s759] sm:$0x1]
        %v793 = vld [vmem:[%s764] sm:$0xff]
        %v794 = vld [vmem:[%s764 + $0x8] sm:$0xff]
        %v795 = vld [vmem:[%s764 + $0x10] sm:$0xff]
        %v796 = vld [vmem:[%s764 + $0x18] sm:$0xff]
        %v797 = vld [vmem:[%s764 + $0x20] sm:$0xff]
        %v798 = vld [vmem:[%s767] sm:$0x1]
        %v799 = vld [vmem:[%s720] sm:$0x3]
        %v800 = vld [vmem:[%s725] sm:$0x3]
        %v801 = vld [vmem:[%s730] sm:$0x3]
        %v803 = vperm.slane %v783, 0
        %vm805 = vcmask 31744
        %v807 = vsel %vm805, %v801, 0
        %vm809 = vcmask 1043456
        %v811 = vsel %vm809, %v782, 0
        %813 = vmatpush.msra.mxu0 0.0
        %814 = vmatpush.msra.mxu0 0.0
        %815 = vmatpush.msra.mxu0 0.0
        %816 = vmatpush.msra.mxu0 0.0
        %817 = vmatpush.msra.mxu0 0.0
        %818 = vmatpush.msra.mxu0 0.0
        %819 = vmatpush.msra.mxu0 0.0
        %820 = vmatpush.msra.mxu0 0.0
        %821 = vmatpush.msra.mxu0 0.0
        %822 = vmatpush.msra.mxu0 0.0
        %823 = vmatpush.msra.mxu0 0.0
        %824 = vmatpush.msra.mxu0 0.0
        %825 = vmatpush.msra.mxu0 0.0
        %826 = vmatpush.msra.mxu0 0.0
        %827 = vmatpush.msra.mxu0 0.0
        %828 = vmatpush.msra.mxu0 %v811
        %829 = vmatmul.f32.gmra.mxu0 %v807
        %v830 = vpop.f32.mrf.mxu0
        %v831 = vadd.f32 %v803, %v830
        %832 = vdwg.mxu0
        %v833 = vmax.f32 %v831, 0.0
        %v834 = vsub.f32 0.0, %v833
        %v835 = vmul.f32 %v834, 1.442695
        %v836 = vpow.pop %v835
        %v837 = vmul.f32 %v836, 0.0
        %v839 = vperm.slane %v788, 0
        %vm841 = vcmask 261120
        %v843 = vsel %vm841, %v837, 0
        %845 = vmatpush.msra.mxu0 0.0
        %846 = vmatpush.msra.mxu0 0.0
        %847 = vmatpush.msra.mxu0 0.0
        %848 = vmatpush.msra.mxu0 0.0
        %849 = vmatpush.msra.mxu0 0.0
        %850 = vmatpush.msra.mxu0 0.0
        %851 = vmatpush.msra.mxu0 0.0
        %852 = vmatpush.msra.mxu0 0.0
        %853 = vmatpush.msra.mxu0 0.0
        %854 = vmatpush.msra.mxu0 0.0
        %855 = vmatpush.msra.mxu0 0.0
        %856 = vmatpush.msra.mxu0 0.0
        %857 = vmatpush.msra.mxu0 %v787
        %858 = vmatpush.msra.mxu0 %v786
        %859 = vmatpush.msra.mxu0 %v785
        %860 = vmatpush.msra.mxu0 %v784
        %861 = vmatmul.f32.gmra.mxu0 %v843
        %v862 = vpop.f32.mrf.mxu0
        %v863 = vadd.f32 %v839, %v862
        %864 = vdwg.mxu0
        %v865 = vmul.f32 %v800, %v799
        %v866 = vsub.f32 1.0, %v800
        %v867 = vmul.f32 %v866, %v863
        %v868 = vadd.f32 %v865, %v867
        %v870 = vperm.slane %v790, 0
        %v873 = vsel %vm805, %v868, 0
        %v876 = vsel %vm809, %v789, 0
        %878 = vmatpush.msra.mxu0 0.0
        %879 = vmatpush.msra.mxu0 0.0
        %880 = vmatpush.msra.mxu0 0.0
        %881 = vmatpush.msra.mxu0 0.0
        %882 = vmatpush.msra.mxu0 0.0
        %883 = vmatpush.msra.mxu0 0.0
        %884 = vmatpush.msra.mxu0 0.0
        %885 = vmatpush.msra.mxu0 0.0
        %886 = vmatpush.msra.mxu0 0.0
        %887 = vmatpush.msra.mxu0 0.0
        %888 = vmatpush.msra.mxu0 0.0
        %889 = vmatpush.msra.mxu0 0.0
        %890 = vmatpush.msra.mxu0 0.0
        %891 = vmatpush.msra.mxu0 0.0
        %892 = vmatpush.msra.mxu0 0.0
        %893 = vmatpush.msra.mxu0 %v876
        %894 = vmatmul.f32.gmra.mxu0 %v873
        %v895 = vpop.f32.mrf.mxu0
        %v896 = vadd.f32 %v870, %v895
        %897 = vdwg.mxu0
        %899 = vrot.lane.b32.xlu0 %v836, 96
        %v900 = vpop.permute.xlu0 %899
        %903 = vrot.lane.b32.xlu0 %v800, 4
        %v904 = vpop.permute.xlu0 %903
        %v906 = vsel %vm805, %v900, %v904
        %v908 = vperm.slane %v792, 0
        %vm910 = vcmask 64512
        %v912 = vsel %vm910, %v906, 0
        %914 = vmatpush.msra.mxu0 0.0
        %915 = vmatpush.msra.mxu0 0.0
        %916 = vmatpush.msra.mxu0 0.0
        %917 = vmatpush.msra.mxu0 0.0
        %918 = vmatpush.msra.mxu0 0.0
        %919 = vmatpush.msra.mxu0 0.0
        %920 = vmatpush.msra.mxu0 0.0
        %921 = vmatpush.msra.mxu0 0.0
        %922 = vmatpush.msra.mxu0 0.0
        %923 = vmatpush.msra.mxu0 0.0
        %924 = vmatpush.msra.mxu0 0.0
        %925 = vmatpush.msra.mxu0 0.0
        %926 = vmatpush.msra.mxu0 0.0
        %927 = vmatpush.msra.mxu0 0.0
        %928 = vmatpush.msra.mxu0 0.0
        %929 = vmatpush.msra.mxu0 %v791
        %930 = vmatmul.f32.gmra.mxu0 %v912
        %v931 = vpop.f32.mrf.mxu0
        %v932 = vadd.f32 %v908, %v931
        %933 = vdwg.mxu0
        %v934 = vxor.u32 %v932, 2147483648
        %v935 = vmul.f32 %v934, 1.442695
        %v936 = vpow.pop %v935
        %v937 = vadd.f32 %v936, 1.0
        %v938 = vrcp.pop %v937
        %v939 = vmul.f32 %v937, %v938
        %v940 = vsub.f32 1.0, %v939
        %v941 = vmul.f32 %v938, %v940
        %v942 = vadd.f32 %v938, %v941
        %vm943 = vweird.f32 %v937
        %vm944 = vweird.f32 %v938
        %vm945 = vmor %vm943, %vm944
        %v946 = vsel %vm945, %v938, %v942
        %v947 = vand.u32 2147483647, %v937
        %vm948 = vcmp.eq.f32.partialorder %v947, 8.507059e+37
        %v949 = vand.u32 %v937, 2147483648
        %v950 = vor.u32 1.1754944e-38, %v949
        %v951 = vsel %vm948, %v950, %v946
        %v952 = vmul.f32 1.0, %v951
        %v953 = vmul.f32 %v952, %v896
        %v954 = vsub.f32 1.0, %v952
        %v955 = vmul.f32 %v954, %v863
        %v956 = vadd.f32 %v953, %v955
        %v957 = vmul.f32 %v799, %v781
        %v958 = vmul.f32 %v863, %v781
        %v959 = vsub.f32 %v958, %v957
        %v960 = vand.u32 2147483647, %v959
        %v961 = vmul.f32 %v896, %v781
        %v962 = vsub.f32 %v961, %v957
        %v963 = vand.u32 2147483647, %v962
        %v964 = vadd.f32 %v960, %v963
        %v965 = vmul.f32 %v956, %v781
        %v966 = vsub.f32 %v965, %v957
        %v967 = vand.u32 2147483647, %v966
        %v968 = vadd.f32 %v964, %v967
        %v969 = vmul.f32 %v968, %v800
        %vm970 = vcmask 25600
        %v971 = vsel %vm970, %v969, 0.0
        %972 = vadd.xlane.f32.xlu0 %v971
        %v973 = vpop.xlane.xlu0 %972
        %v974 = vrot.slane %v973, 4
        %v975 = vadd.f32 %v973, %v974
        %v976 = vrot.slane %v975, 2
        %v977 = vadd.f32 %v975, %v976
        %v978 = vrot.slane %v977, 1
        %v979 = vadd.f32 %v977, %v978
        %s980 = vtos %v979
        %v981 = vstv %s980
        %v982 = vsel %vm970, %v800, 0.0
        %983 = vadd.xlane.f32.xlu0 %v982
        %v984 = vpop.xlane.xlu0 %983
        %v985 = vrot.slane %v984, 4
        %v986 = vadd.f32 %v984, %v985
        %v987 = vrot.slane %v986, 2
        %v988 = vadd.f32 %v986, %v987
        %v989 = vrot.slane %v988, 1
        %v990 = vadd.f32 %v988, %v989
        %s991 = vtos %v990
        %v992 = vstv %s991
        %v993 = vadd.f32 %v992, 1e-12
        %v994 = vrcp.pop %v993
        %v995 = vmul.f32 %v981, %v994
        %v996 = vadd.f32 %v995, 0.0
        %v997 = vmul.f32 %v866, %v956
        %v998 = vadd.f32 %v865, %v997
        %999 = vst.msk [vmem:[%s772] sm:$0x3] %vm970, %v956
        %1000 = vrot.lane.b32.xlu0 %v837, 8
        %v1001 = vpop.permute.xlu0 %1000
        %v1003 = vsel %vm805, %v998, %v904
        %v1004 = vsel %vm910, %v1003, %v1001
        %v1006 = vperm.slane %v798, 0
        %vm1008 = vcmask 326656
        %v1010 = vsel %vm1008, %v1004, 0
        %1012 = vmatpush.msra.mxu0 0.0
        %1013 = vmatpush.msra.mxu0 0.0
        %1014 = vmatpush.msra.mxu0 0.0
        %1015 = vmatpush.msra.mxu0 0.0
        %1016 = vmatpush.msra.mxu0 0.0
        %1017 = vmatpush.msra.mxu0 0.0
        %1018 = vmatpush.msra.mxu0 0.0
        %1019 = vmatpush.msra.mxu0 0.0
        %1020 = vmatpush.msra.mxu0 0.0
        %1021 = vmatpush.msra.mxu0 0.0
        %1022 = vmatpush.msra.mxu0 0.0
        %1023 = vmatpush.msra.mxu0 %v797
        %1024 = vmatpush.msra.mxu0 %v796
        %1025 = vmatpush.msra.mxu0 %v795
        %1026 = vmatpush.msra.mxu0 %v794
        %1027 = vmatpush.msra.mxu0 %v793
        %1028 = vmatmul.f32.gmra.mxu0 %v1010
        %v1029 = vpop.f32.mrf.mxu0
        %v1030 = vadd.f32 %v1006, %v1029
        %1031 = vdwg.mxu0
        %v1032 = vxor.u32 %v1030, 2147483648
        %v1033 = vmul.f32 %v1032, 1.442695
        %v1034 = vpow.pop %v1033
        %v1035 = vadd.f32 %v1034, 1.0
        %v1036 = vrcp.pop %v1035
        %v1037 = vmul.f32 %v1035, %v1036
        %v1038 = vsub.f32 1.0, %v1037
        %v1039 = vmul.f32 %v1036, %v1038
        %v1040 = vadd.f32 %v1036, %v1039
        %vm1041 = vweird.f32 %v1035
        %vm1042 = vweird.f32 %v1036
        %vm1043 = vmor %vm1041, %vm1042
        %v1044 = vsel %vm1043, %v1036, %v1040
        %v1045 = vand.u32 2147483647, %v1035
        %vm1046 = vcmp.eq.f32.partialorder %v1045, 8.507059e+37
        %v1047 = vand.u32 %v1035, 2147483648
        %v1048 = vor.u32 1.1754944e-38, %v1047
        %v1049 = vsel %vm1046, %v1048, %v1044
        %v1050 = vmul.f32 1.0, %v1049
        %v1051 = vtanh.pop %v1030
        %v1052 = vmul.f32 %v1050, 0.0
        %1054 = vrot.lane.b32.xlu0 %v1051, 32
        %v1055 = vpop.permute.xlu0 %1054
        %v1057 = vmul.f32 %v1050, %v1055
        %1059 = vrot.lane.b32.xlu0 %v1057, 32
        %v1060 = vpop.permute.xlu0 %1059
        %v1062 = vadd.f32 %v1052, %v1060
        %v1063 = vtanh.pop %v1062
        %1065 = vrot.lane.b32.xlu0 %v1063, 32
        %v1066 = vpop.permute.xlu0 %1065
        %v1068 = vmul.f32 %v1050, %v1066
        %s1069 = scalar_lea.vmem %s720, 2
        %v1070 = vld [vmem:[%s1069] sm:$0x3]
        %s1071 = scalar_lea.vmem %s725, 2
        %v1072 = vld [vmem:[%s1071] sm:$0x3]
        %s1073 = scalar_lea.vmem %s730, 2
        %v1074 = vld [vmem:[%s1073] sm:$0x3]
        %v1076 = vsel %vm805, %v1074, 0
        %1078 = vmatpush.msra.mxu0 0.0
        %1079 = vmatpush.msra.mxu0 0.0
        %1080 = vmatpush.msra.mxu0 0.0
        %1081 = vmatpush.msra.mxu0 0.0
        %1082 = vmatpush.msra.mxu0 0.0
        %1083 = vmatpush.msra.mxu0 0.0
        %1084 = vmatpush.msra.mxu0 0.0
        %1085 = vmatpush.msra.mxu0 0.0
        %1086 = vmatpush.msra.mxu0 0.0
        %1087 = vmatpush.msra.mxu0 0.0
        %1088 = vmatpush.msra.mxu0 0.0
        %1089 = vmatpush.msra.mxu0 0.0
        %1090 = vmatpush.msra.mxu0 0.0
        %1091 = vmatpush.msra.mxu0 0.0
        %1092 = vmatpush.msra.mxu0 0.0
        %1093 = vmatpush.msra.mxu0 %v811
        %1094 = vmatmul.f32.gmra.mxu0 %v1076
        %v1095 = vpop.f32.mrf.mxu0
        %v1096 = vadd.f32 %v803, %v1095
        %1097 = vdwg.mxu0
        %v1098 = vmax.f32 %v1096, 0.0
        %v1099 = vsub.f32 0.0, %v1098
        %v1100 = vmul.f32 %v1099, 1.442695
        %v1101 = vpow.pop %v1100
        %1103 = vrot.lane.b32.xlu0 %v1101, 64
        %v1104 = vpop.permute.xlu0 %1103
        %v1106 = vmul.f32 %v1068, %v1104
        %1108 = vrot.lane.b32.xlu0 %v1106, 64
        %v1109 = vpop.permute.xlu0 %1108
        %v1110 = vsel %vm841, %v1109, 0
        %1112 = vmatpush.msra.mxu0 0.0
        %1113 = vmatpush.msra.mxu0 0.0
        %1114 = vmatpush.msra.mxu0 0.0
        %1115 = vmatpush.msra.mxu0 0.0
        %1116 = vmatpush.msra.mxu0 0.0
        %1117 = vmatpush.msra.mxu0 0.0
        %1118 = vmatpush.msra.mxu0 0.0
        %1119 = vmatpush.msra.mxu0 0.0
        %1120 = vmatpush.msra.mxu0 0.0
        %1121 = vmatpush.msra.mxu0 0.0
        %1122 = vmatpush.msra.mxu0 0.0
        %1123 = vmatpush.msra.mxu0 0.0
        %1124 = vmatpush.msra.mxu0 %v787
        %1125 = vmatpush.msra.mxu0 %v786
        %1126 = vmatpush.msra.mxu0 %v785
        %1127 = vmatpush.msra.mxu0 %v784
        %1128 = vmatmul.f32.gmra.mxu0 %v1110
        %v1129 = vpop.f32.mrf.mxu0
        %v1130 = vadd.f32 %v839, %v1129
        %1131 = vdwg.mxu0
        %v1132 = vmul.f32 %v1072, %v1070
        %v1133 = vsub.f32 1.0, %v1072
        %v1134 = vmul.f32 %v1133, %v1130
        %v1135 = vadd.f32 %v1132, %v1134
        %v1137 = vsel %vm805, %v1135, 0
        %1139 = vmatpush.msra.mxu0 0.0
        %1140 = vmatpush.msra.mxu0 0.0
        %1141 = vmatpush.msra.mxu0 0.0
        %1142 = vmatpush.msra.mxu0 0.0
        %1143 = vmatpush.msra.mxu0 0.0
        %1144 = vmatpush.msra.mxu0 0.0
        %1145 = vmatpush.msra.mxu0 0.0
        %1146 = vmatpush.msra.mxu0 0.0
        %1147 = vmatpush.msra.mxu0 0.0
        %1148 = vmatpush.msra.mxu0 0.0
        %1149 = vmatpush.msra.mxu0 0.0
        %1150 = vmatpush.msra.mxu0 0.0
        %1151 = vmatpush.msra.mxu0 0.0
        %1152 = vmatpush.msra.mxu0 0.0
        %1153 = vmatpush.msra.mxu0 0.0
        %1154 = vmatpush.msra.mxu0 %v876
        %1155 = vmatmul.f32.gmra.mxu0 %v1137
        %v1156 = vpop.f32.mrf.mxu0
        %v1157 = vadd.f32 %v870, %v1156
        %1158 = vdwg.mxu0
        %1159 = vrot.lane.b32.xlu0 %v1101, 96
        %v1160 = vpop.permute.xlu0 %1159
        %1163 = vrot.lane.b32.xlu0 %v1072, 4
        %v1164 = vpop.permute.xlu0 %1163
        %v1166 = vsel %vm805, %v1160, %v1164
        %v1168 = vsel %vm910, %v1166, 0
        %1170 = vmatpush.msra.mxu0 0.0
        %1171 = vmatpush.msra.mxu0 0.0
        %1172 = vmatpush.msra.mxu0 0.0
        %1173 = vmatpush.msra.mxu0 0.0
        %1174 = vmatpush.msra.mxu0 0.0
        %1175 = vmatpush.msra.mxu0 0.0
        %1176 = vmatpush.msra.mxu0 0.0
        %1177 = vmatpush.msra.mxu0 0.0
        %1178 = vmatpush.msra.mxu0 0.0
        %1179 = vmatpush.msra.mxu0 0.0
        %1180 = vmatpush.msra.mxu0 0.0
        %1181 = vmatpush.msra.mxu0 0.0
        %1182 = vmatpush.msra.mxu0 0.0
        %1183 = vmatpush.msra.mxu0 0.0
        %1184 = vmatpush.msra.mxu0 0.0
        %1185 = vmatpush.msra.mxu0 %v791
        %1186 = vmatmul.f32.gmra.mxu0 %v1168
        %v1187 = vpop.f32.mrf.mxu0
        %v1188 = vadd.f32 %v908, %v1187
        %1189 = vdwg.mxu0
        %v1190 = vxor.u32 %v1188, 2147483648
        %v1191 = vmul.f32 %v1190, 1.442695
        %v1192 = vpow.pop %v1191
        %v1193 = vadd.f32 %v1192, 1.0
        %v1194 = vrcp.pop %v1193
        %v1195 = vmul.f32 %v1193, %v1194
        %v1196 = vsub.f32 1.0, %v1195
        %v1197 = vmul.f32 %v1194, %v1196
        %v1198 = vadd.f32 %v1194, %v1197
        %vm1199 = vweird.f32 %v1193
        %vm1200 = vweird.f32 %v1194
        %vm1201 = vmor %vm1199, %vm1200
        %v1202 = vsel %vm1201, %v1194, %v1198
        %v1203 = vand.u32 2147483647, %v1193
        %vm1204 = vcmp.eq.f32.partialorder %v1203, 8.507059e+37
        %v1205 = vand.u32 %v1193, 2147483648
        %v1206 = vor.u32 1.1754944e-38, %v1205
        %v1207 = vsel %vm1204, %v1206, %v1202
        %v1208 = vmul.f32 1.0, %v1207
        %v1209 = vmul.f32 %v1208, %v1157
        %v1210 = vsub.f32 1.0, %v1208
        %v1211 = vmul.f32 %v1210, %v1130
        %v1212 = vadd.f32 %v1209, %v1211
        %v1213 = vmul.f32 %v1070, %v781
        %v1214 = vmul.f32 %v1130, %v781
        %v1215 = vsub.f32 %v1214, %v1213
        %v1216 = vand.u32 2147483647, %v1215
        %v1217 = vmul.f32 %v1157, %v781
        %v1218 = vsub.f32 %v1217, %v1213
        %v1219 = vand.u32 2147483647, %v1218
        %v1220 = vadd.f32 %v1216, %v1219
        %v1221 = vmul.f32 %v1212, %v781
        %v1222 = vsub.f32 %v1221, %v1213
        %v1223 = vand.u32 2147483647, %v1222
        %v1224 = vadd.f32 %v1220, %v1223
        %v1225 = vmul.f32 %v1224, %v1072
        %v1226 = vsel %vm970, %v1225, 0.0
        %1227 = vadd.xlane.f32.xlu0 %v1226
        %v1228 = vpop.xlane.xlu0 %1227
        %v1229 = vrot.slane %v1228, 4
        %v1230 = vadd.f32 %v1228, %v1229
        %v1231 = vrot.slane %v1230, 2
        %v1232 = vadd.f32 %v1230, %v1231
        %v1233 = vrot.slane %v1232, 1
        %v1234 = vadd.f32 %v1232, %v1233
        %s1235 = vtos %v1234
        %v1236 = vstv %s1235
        %v1237 = vsel %vm970, %v1072, 0.0
        %1238 = vadd.xlane.f32.xlu0 %v1237
        %v1239 = vpop.xlane.xlu0 %1238
        %v1240 = vrot.slane %v1239, 4
        %v1241 = vadd.f32 %v1239, %v1240
        %v1242 = vrot.slane %v1241, 2
        %v1243 = vadd.f32 %v1241, %v1242
        %v1244 = vrot.slane %v1243, 1
        %v1245 = vadd.f32 %v1243, %v1244
        %s1246 = vtos %v1245
        %v1247 = vstv %s1246
        %v1248 = vadd.f32 %v1247, 1e-12
        %v1249 = vrcp.pop %v1248
        %v1250 = vmul.f32 %v1236, %v1249
        %v1251 = vadd.f32 %v996, %v1250
        %v1252 = vmul.f32 %v1133, %v1212
        %v1253 = vadd.f32 %v1132, %v1252
        %s1254 = scalar_lea.vmem %s772, 2
        %1255 = vst.msk [vmem:[%s1254] sm:$0x3] %vm970, %v1212
        %1256 = vrot.lane.b32.xlu0 %v1106, 72
        %v1257 = vpop.permute.xlu0 %1256
        %v1259 = vsel %vm805, %v1253, %v1164
        %v1260 = vsel %vm910, %v1259, %v1257
        %v1262 = vsel %vm1008, %v1260, 0
        %1264 = vmatpush.msra.mxu0 0.0
        %1265 = vmatpush.msra.mxu0 0.0
        %1266 = vmatpush.msra.mxu0 0.0
        %1267 = vmatpush.msra.mxu0 0.0
        %1268 = vmatpush.msra.mxu0 0.0
        %1269 = vmatpush.msra.mxu0 0.0
        %1270 = vmatpush.msra.mxu0 0.0
        %1271 = vmatpush.msra.mxu0 0.0
        %1272 = vmatpush.msra.mxu0 0.0
        %1273 = vmatpush.msra.mxu0 0.0
        %1274 = vmatpush.msra.mxu0 0.0
        %1275 = vmatpush.msra.mxu0 %v797
        %1276 = vmatpush.msra.mxu0 %v796
        %1277 = vmatpush.msra.mxu0 %v795
        %1278 = vmatpush.msra.mxu0 %v794
        %1279 = vmatpush.msra.mxu0 %v793
        %1280 = vmatmul.f32.gmra.mxu0 %v1262
        %v1281 = vpop.f32.mrf.mxu0
        %v1282 = vadd.f32 %v1006, %v1281
        %1283 = vdwg.mxu0
        %v1284 = vxor.u32 %v1282, 2147483648
        %v1285 = vmul.f32 %v1284, 1.442695
        %v1286 = vpow.pop %v1285
        %v1287 = vadd.f32 %v1286, 1.0
        %v1288 = vrcp.pop %v1287
        %v1289 = vmul.f32 %v1287, %v1288
        %v1290 = vsub.f32 1.0, %v1289
        %v1291 = vmul.f32 %v1288, %v1290
        %v1292 = vadd.f32 %v1288, %v1291
        %vm1293 = vweird.f32 %v1287
        %vm1294 = vweird.f32 %v1288
        %vm1295 = vmor %vm1293, %vm1294
        %v1296 = vsel %vm1295, %v1288, %v1292
        %v1297 = vand.u32 2147483647, %v1287
        %vm1298 = vcmp.eq.f32.partialorder %v1297, 8.507059e+37
        %v1299 = vand.u32 %v1287, 2147483648
        %v1300 = vor.u32 1.1754944e-38, %v1299
        %v1301 = vsel %vm1298, %v1300, %v1296
        %v1302 = vmul.f32 1.0, %v1301
        %v1303 = vtanh.pop %v1282
        %v1304 = vmul.f32 %v1302, %v1062
        %1306 = vrot.lane.b32.xlu0 %v1303, 32
        %v1307 = vpop.permute.xlu0 %1306
        %v1309 = vmul.f32 %v1302, %v1307
        %1311 = vrot.lane.b32.xlu0 %v1309, 32
        %v1312 = vpop.permute.xlu0 %1311
        %v1314 = vadd.f32 %v1304, %v1312
        %v1315 = vtanh.pop %v1314
        %1317 = vrot.lane.b32.xlu0 %v1315, 32
        %v1318 = vpop.permute.xlu0 %1317
        %v1320 = vmul.f32 %v1302, %v1318
        %s1321 = scalar_lea.vmem %s720, 4
        %v1322 = vld [vmem:[%s1321] sm:$0x3]
        %s1323 = scalar_lea.vmem %s725, 4
        %v1324 = vld [vmem:[%s1323] sm:$0x3]
        %s1325 = scalar_lea.vmem %s730, 4
        %v1326 = vld [vmem:[%s1325] sm:$0x3]
        %v1328 = vsel %vm805, %v1326, 0
        %1330 = vmatpush.msra.mxu0 0.0
        %1331 = vmatpush.msra.mxu0 0.0
        %1332 = vmatpush.msra.mxu0 0.0
        %1333 = vmatpush.msra.mxu0 0.0
        %1334 = vmatpush.msra.mxu0 0.0
        %1335 = vmatpush.msra.mxu0 0.0
        %1336 = vmatpush.msra.mxu0 0.0
        %1337 = vmatpush.msra.mxu0 0.0
        %1338 = vmatpush.msra.mxu0 0.0
        %1339 = vmatpush.msra.mxu0 0.0
        %1340 = vmatpush.msra.mxu0 0.0
        %1341 = vmatpush.msra.mxu0 0.0
        %1342 = vmatpush.msra.mxu0 0.0
        %1343 = vmatpush.msra.mxu0 0.0
        %1344 = vmatpush.msra.mxu0 0.0
        %1345 = vmatpush.msra.mxu0 %v811
        %1346 = vmatmul.f32.gmra.mxu0 %v1328
        %v1347 = vpop.f32.mrf.mxu0
        %v1348 = vadd.f32 %v803, %v1347
        %1349 = vdwg.mxu0
        %v1350 = vmax.f32 %v1348, 0.0
        %v1351 = vsub.f32 0.0, %v1350
        %v1352 = vmul.f32 %v1351, 1.442695
        %v1353 = vpow.pop %v1352
        %1355 = vrot.lane.b32.xlu0 %v1353, 64
        %v1356 = vpop.permute.xlu0 %1355
        %v1358 = vmul.f32 %v1320, %v1356
        %1360 = vrot.lane.b32.xlu0 %v1358, 64
        %v1361 = vpop.permute.xlu0 %1360
        %v1362 = vsel %vm841, %v1361, 0
        %1364 = vmatpush.msra.mxu0 0.0
        %1365 = vmatpush.msra.mxu0 0.0
        %1366 = vmatpush.msra.mxu0 0.0
        %1367 = vmatpush.msra.mxu0 0.0
        %1368 = vmatpush.msra.mxu0 0.0
        %1369 = vmatpush.msra.mxu0 0.0
        %1370 = vmatpush.msra.mxu0 0.0
        %1371 = vmatpush.msra.mxu0 0.0
        %1372 = vmatpush.msra.mxu0 0.0
        %1373 = vmatpush.msra.mxu0 0.0
        %1374 = vmatpush.msra.mxu0 0.0
        %1375 = vmatpush.msra.mxu0 0.0
        %1376 = vmatpush.msra.mxu0 %v787
        %1377 = vmatpush.msra.mxu0 %v786
        %1378 = vmatpush.msra.mxu0 %v785
        %1379 = vmatpush.msra.mxu0 %v784
        %1380 = vmatmul.f32.gmra.mxu0 %v1362
        %v1381 = vpop.f32.mrf.mxu0
        %v1382 = vadd.f32 %v839, %v1381
        %1383 = vdwg.mxu0
        %v1384 = vmul.f32 %v1324, %v1322
        %v1385 = vsub.f32 1.0, %v1324
        %v1386 = vmul.f32 %v1385, %v1382
        %v1387 = vadd.f32 %v1384, %v1386
        %v1389 = vsel %vm805, %v1387, 0
        %1391 = vmatpush.msra.mxu0 0.0
        %1392 = vmatpush.msra.mxu0 0.0
        %1393 = vmatpush.msra.mxu0 0.0
        %1394 = vmatpush.msra.mxu0 0.0
        %1395 = vmatpush.msra.mxu0 0.0
        %1396 = vmatpush.msra.mxu0 0.0
        %1397 = vmatpush.msra.mxu0 0.0
        %1398 = vmatpush.msra.mxu0 0.0
        %1399 = vmatpush.msra.mxu0 0.0
        %1400 = vmatpush.msra.mxu0 0.0
        %1401 = vmatpush.msra.mxu0 0.0
        %1402 = vmatpush.msra.mxu0 0.0
        %1403 = vmatpush.msra.mxu0 0.0
        %1404 = vmatpush.msra.mxu0 0.0
        %1405 = vmatpush.msra.mxu0 0.0
        %1406 = vmatpush.msra.mxu0 %v876
        %1407 = vmatmul.f32.gmra.mxu0 %v1389
        %v1408 = vpop.f32.mrf.mxu0
        %v1409 = vadd.f32 %v870, %v1408
        %1410 = vdwg.mxu0
        %1411 = vrot.lane.b32.xlu0 %v1353, 96
        %v1412 = vpop.permute.xlu0 %1411
        %1415 = vrot.lane.b32.xlu0 %v1324, 4
        %v1416 = vpop.permute.xlu0 %1415
        %v1418 = vsel %vm805, %v1412, %v1416
        %v1420 = vsel %vm910, %v1418, 0
        %1422 = vmatpush.msra.mxu0 0.0
        %1423 = vmatpush.msra.mxu0 0.0
        %1424 = vmatpush.msra.mxu0 0.0
        %1425 = vmatpush.msra.mxu0 0.0
        %1426 = vmatpush.msra.mxu0 0.0
        %1427 = vmatpush.msra.mxu0 0.0
        %1428 = vmatpush.msra.mxu0 0.0
        %1429 = vmatpush.msra.mxu0 0.0
        %1430 = vmatpush.msra.mxu0 0.0
        %1431 = vmatpush.msra.mxu0 0.0
        %1432 = vmatpush.msra.mxu0 0.0
        %1433 = vmatpush.msra.mxu0 0.0
        %1434 = vmatpush.msra.mxu0 0.0
        %1435 = vmatpush.msra.mxu0 0.0
        %1436 = vmatpush.msra.mxu0 0.0
        %1437 = vmatpush.msra.mxu0 %v791
        %1438 = vmatmul.f32.gmra.mxu0 %v1420
        %v1439 = vpop.f32.mrf.mxu0
        %v1440 = vadd.f32 %v908, %v1439
        %1441 = vdwg.mxu0
        %v1442 = vxor.u32 %v1440, 2147483648
        %v1443 = vmul.f32 %v1442, 1.442695
        %v1444 = vpow.pop %v1443
        %v1445 = vadd.f32 %v1444, 1.0
        %v1446 = vrcp.pop %v1445
        %v1447 = vmul.f32 %v1445, %v1446
        %v1448 = vsub.f32 1.0, %v1447
        %v1449 = vmul.f32 %v1446, %v1448
        %v1450 = vadd.f32 %v1446, %v1449
        %vm1451 = vweird.f32 %v1445
        %vm1452 = vweird.f32 %v1446
        %vm1453 = vmor %vm1451, %vm1452
        %v1454 = vsel %vm1453, %v1446, %v1450
        %v1455 = vand.u32 2147483647, %v1445
        %vm1456 = vcmp.eq.f32.partialorder %v1455, 8.507059e+37
        %v1457 = vand.u32 %v1445, 2147483648
        %v1458 = vor.u32 1.1754944e-38, %v1457
        %v1459 = vsel %vm1456, %v1458, %v1454
        %v1460 = vmul.f32 1.0, %v1459
        %v1461 = vmul.f32 %v1460, %v1409
        %v1462 = vsub.f32 1.0, %v1460
        %v1463 = vmul.f32 %v1462, %v1382
        %v1464 = vadd.f32 %v1461, %v1463
        %v1465 = vmul.f32 %v1322, %v781
        %v1466 = vmul.f32 %v1382, %v781
        %v1467 = vsub.f32 %v1466, %v1465
        %v1468 = vand.u32 2147483647, %v1467
        %v1469 = vmul.f32 %v1409, %v781
        %v1470 = vsub.f32 %v1469, %v1465
        %v1471 = vand.u32 2147483647, %v1470
        %v1472 = vadd.f32 %v1468, %v1471
        %v1473 = vmul.f32 %v1464, %v781
        %v1474 = vsub.f32 %v1473, %v1465
        %v1475 = vand.u32 2147483647, %v1474
        %v1476 = vadd.f32 %v1472, %v1475
        %v1477 = vmul.f32 %v1476, %v1324
        %v1478 = vsel %vm970, %v1477, 0.0
        %1479 = vadd.xlane.f32.xlu0 %v1478
        %v1480 = vpop.xlane.xlu0 %1479
        %v1481 = vrot.slane %v1480, 4
        %v1482 = vadd.f32 %v1480, %v1481
        %v1483 = vrot.slane %v1482, 2
        %v1484 = vadd.f32 %v1482, %v1483
        %v1485 = vrot.slane %v1484, 1
        %v1486 = vadd.f32 %v1484, %v1485
        %s1487 = vtos %v1486
        %v1488 = vstv %s1487
        %v1489 = vsel %vm970, %v1324, 0.0
        %1490 = vadd.xlane.f32.xlu0 %v1489
        %v1491 = vpop.xlane.xlu0 %1490
        %v1492 = vrot.slane %v1491, 4
        %v1493 = vadd.f32 %v1491, %v1492
        %v1494 = vrot.slane %v1493, 2
        %v1495 = vadd.f32 %v1493, %v1494
        %v1496 = vrot.slane %v1495, 1
        %v1497 = vadd.f32 %v1495, %v1496
        %s1498 = vtos %v1497
        %v1499 = vstv %s1498
        %v1500 = vadd.f32 %v1499, 1e-12
        %v1501 = vrcp.pop %v1500
        %v1502 = vmul.f32 %v1488, %v1501
        %v1503 = vadd.f32 %v1251, %v1502
        %v1504 = vmul.f32 %v1385, %v1464
        %v1505 = vadd.f32 %v1384, %v1504
        %s1506 = scalar_lea.vmem %s772, 4
        %1507 = vst.msk [vmem:[%s1506] sm:$0x3] %vm970, %v1464
        %1508 = vrot.lane.b32.xlu0 %v1358, 72
        %v1509 = vpop.permute.xlu0 %1508
        %v1511 = vsel %vm805, %v1505, %v1416
        %v1512 = vsel %vm910, %v1511, %v1509
        %v1514 = vsel %vm1008, %v1512, 0
        %1516 = vmatpush.msra.mxu0 0.0
        %1517 = vmatpush.msra.mxu0 0.0
        %1518 = vmatpush.msra.mxu0 0.0
        %1519 = vmatpush.msra.mxu0 0.0
        %1520 = vmatpush.msra.mxu0 0.0
        %1521 = vmatpush.msra.mxu0 0.0
        %1522 = vmatpush.msra.mxu0 0.0
        %1523 = vmatpush.msra.mxu0 0.0
        %1524 = vmatpush.msra.mxu0 0.0
        %1525 = vmatpush.msra.mxu0 0.0
        %1526 = vmatpush.msra.mxu0 0.0
        %1527 = vmatpush.msra.mxu0 %v797
        %1528 = vmatpush.msra.mxu0 %v796
        %1529 = vmatpush.msra.mxu0 %v795
        %1530 = vmatpush.msra.mxu0 %v794
        %1531 = vmatpush.msra.mxu0 %v793
        %1532 = vmatmul.f32.gmra.mxu0 %v1514
        %v1533 = vpop.f32.mrf.mxu0
        %v1534 = vadd.f32 %v1006, %v1533
        %1535 = vdwg.mxu0
        %v1536 = vxor.u32 %v1534, 2147483648
        %v1537 = vmul.f32 %v1536, 1.442695
        %v1538 = vpow.pop %v1537
        %v1539 = vadd.f32 %v1538, 1.0
        %v1540 = vrcp.pop %v1539
        %v1541 = vmul.f32 %v1539, %v1540
        %v1542 = vsub.f32 1.0, %v1541
        %v1543 = vmul.f32 %v1540, %v1542
        %v1544 = vadd.f32 %v1540, %v1543
        %vm1545 = vweird.f32 %v1539
        %vm1546 = vweird.f32 %v1540
        %vm1547 = vmor %vm1545, %vm1546
        %v1548 = vsel %vm1547, %v1540, %v1544
        %v1549 = vand.u32 2147483647, %v1539
        %vm1550 = vcmp.eq.f32.partialorder %v1549, 8.507059e+37
        %v1551 = vand.u32 %v1539, 2147483648
        %v1552 = vor.u32 1.1754944e-38, %v1551
        %v1553 = vsel %vm1550, %v1552, %v1548
        %v1554 = vmul.f32 1.0, %v1553
        %v1555 = vtanh.pop %v1534
        %v1556 = vmul.f32 %v1554, %v1314
        %1558 = vrot.lane.b32.xlu0 %v1555, 32
        %v1559 = vpop.permute.xlu0 %1558
        %v1561 = vmul.f32 %v1554, %v1559
        %1563 = vrot.lane.b32.xlu0 %v1561, 32
        %v1564 = vpop.permute.xlu0 %1563
        %v1566 = vadd.f32 %v1556, %v1564
        %v1567 = vtanh.pop %v1566
        %1569 = vrot.lane.b32.xlu0 %v1567, 32
        %v1570 = vpop.permute.xlu0 %1569
        %v1572 = vmul.f32 %v1554, %v1570
        %s1573 = scalar_lea.vmem %s720, 6
        %v1574 = vld [vmem:[%s1573] sm:$0x3]
        %s1575 = scalar_lea.vmem %s725, 6
        %v1576 = vld [vmem:[%s1575] sm:$0x3]
        %s1577 = scalar_lea.vmem %s730, 6
        %v1578 = vld [vmem:[%s1577] sm:$0x3]
        %v1580 = vsel %vm805, %v1578, 0
        %1582 = vmatpush.msra.mxu0 0.0
        %1583 = vmatpush.msra.mxu0 0.0
        %1584 = vmatpush.msra.mxu0 0.0
        %1585 = vmatpush.msra.mxu0 0.0
        %1586 = vmatpush.msra.mxu0 0.0
        %1587 = vmatpush.msra.mxu0 0.0
        %1588 = vmatpush.msra.mxu0 0.0
        %1589 = vmatpush.msra.mxu0 0.0
        %1590 = vmatpush.msra.mxu0 0.0
        %1591 = vmatpush.msra.mxu0 0.0
        %1592 = vmatpush.msra.mxu0 0.0
        %1593 = vmatpush.msra.mxu0 0.0
        %1594 = vmatpush.msra.mxu0 0.0
        %1595 = vmatpush.msra.mxu0 0.0
        %1596 = vmatpush.msra.mxu0 0.0
        %1597 = vmatpush.msra.mxu0 %v811
        %1598 = vmatmul.f32.gmra.mxu0 %v1580
        %v1599 = vpop.f32.mrf.mxu0
        %v1600 = vadd.f32 %v803, %v1599
        %1601 = vdwg.mxu0
        %v1602 = vmax.f32 %v1600, 0.0
        %v1603 = vsub.f32 0.0, %v1602
        %v1604 = vmul.f32 %v1603, 1.442695
        %v1605 = vpow.pop %v1604
        %1607 = vrot.lane.b32.xlu0 %v1605, 64
        %v1608 = vpop.permute.xlu0 %1607
        %v1610 = vmul.f32 %v1572, %v1608
        %1612 = vrot.lane.b32.xlu0 %v1610, 64
        %v1613 = vpop.permute.xlu0 %1612
        %v1614 = vsel %vm841, %v1613, 0
        %1616 = vmatpush.msra.mxu0 0.0
        %1617 = vmatpush.msra.mxu0 0.0
        %1618 = vmatpush.msra.mxu0 0.0
        %1619 = vmatpush.msra.mxu0 0.0
        %1620 = vmatpush.msra.mxu0 0.0
        %1621 = vmatpush.msra.mxu0 0.0
        %1622 = vmatpush.msra.mxu0 0.0
        %1623 = vmatpush.msra.mxu0 0.0
        %1624 = vmatpush.msra.mxu0 0.0
        %1625 = vmatpush.msra.mxu0 0.0
        %1626 = vmatpush.msra.mxu0 0.0
        %1627 = vmatpush.msra.mxu0 0.0
        %1628 = vmatpush.msra.mxu0 %v787
        %1629 = vmatpush.msra.mxu0 %v786
        %1630 = vmatpush.msra.mxu0 %v785
        %1631 = vmatpush.msra.mxu0 %v784
        %1632 = vmatmul.f32.gmra.mxu0 %v1614
        %v1633 = vpop.f32.mrf.mxu0
        %v1634 = vadd.f32 %v839, %v1633
        %1635 = vdwg.mxu0
        %v1636 = vmul.f32 %v1576, %v1574
        %v1637 = vsub.f32 1.0, %v1576
        %v1638 = vmul.f32 %v1637, %v1634
        %v1639 = vadd.f32 %v1636, %v1638
        %v1641 = vsel %vm805, %v1639, 0
        %1643 = vmatpush.msra.mxu0 0.0
        %1644 = vmatpush.msra.mxu0 0.0
        %1645 = vmatpush.msra.mxu0 0.0
        %1646 = vmatpush.msra.mxu0 0.0
        %1647 = vmatpush.msra.mxu0 0.0
        %1648 = vmatpush.msra.mxu0 0.0
        %1649 = vmatpush.msra.mxu0 0.0
        %1650 = vmatpush.msra.mxu0 0.0
        %1651 = vmatpush.msra.mxu0 0.0
        %1652 = vmatpush.msra.mxu0 0.0
        %1653 = vmatpush.msra.mxu0 0.0
        %1654 = vmatpush.msra.mxu0 0.0
        %1655 = vmatpush.msra.mxu0 0.0
        %1656 = vmatpush.msra.mxu0 0.0
        %1657 = vmatpush.msra.mxu0 0.0
        %1658 = vmatpush.msra.mxu0 %v876
        %1659 = vmatmul.f32.gmra.mxu0 %v1641
        %v1660 = vpop.f32.mrf.mxu0
        %v1661 = vadd.f32 %v870, %v1660
        %1662 = vdwg.mxu0
        %1663 = vrot.lane.b32.xlu0 %v1605, 96
        %v1664 = vpop.permute.xlu0 %1663
        %1667 = vrot.lane.b32.xlu0 %v1576, 4
        %v1668 = vpop.permute.xlu0 %1667
        %v1670 = vsel %vm805, %v1664, %v1668
        %v1672 = vsel %vm910, %v1670, 0
        %1674 = vmatpush.msra.mxu0 0.0
        %1675 = vmatpush.msra.mxu0 0.0
        %1676 = vmatpush.msra.mxu0 0.0
        %1677 = vmatpush.msra.mxu0 0.0
        %1678 = vmatpush.msra.mxu0 0.0
        %1679 = vmatpush.msra.mxu0 0.0
        %1680 = vmatpush.msra.mxu0 0.0
        %1681 = vmatpush.msra.mxu0 0.0
        %1682 = vmatpush.msra.mxu0 0.0
        %1683 = vmatpush.msra.mxu0 0.0
        %1684 = vmatpush.msra.mxu0 0.0
        %1685 = vmatpush.msra.mxu0 0.0
        %1686 = vmatpush.msra.mxu0 0.0
        %1687 = vmatpush.msra.mxu0 0.0
        %1688 = vmatpush.msra.mxu0 0.0
        %1689 = vmatpush.msra.mxu0 %v791
        %1690 = vmatmul.f32.gmra.mxu0 %v1672
        %v1691 = vpop.f32.mrf.mxu0
        %v1692 = vadd.f32 %v908, %v1691
        %1693 = vdwg.mxu0
        %v1694 = vxor.u32 %v1692, 2147483648
        %v1695 = vmul.f32 %v1694, 1.442695
        %v1696 = vpow.pop %v1695
        %v1697 = vadd.f32 %v1696, 1.0
        %v1698 = vrcp.pop %v1697
        %v1699 = vmul.f32 %v1697, %v1698
        %v1700 = vsub.f32 1.0, %v1699
        %v1701 = vmul.f32 %v1698, %v1700
        %v1702 = vadd.f32 %v1698, %v1701
        %vm1703 = vweird.f32 %v1697
        %vm1704 = vweird.f32 %v1698
        %vm1705 = vmor %vm1703, %vm1704
        %v1706 = vsel %vm1705, %v1698, %v1702
        %v1707 = vand.u32 2147483647, %v1697
        %vm1708 = vcmp.eq.f32.partialorder %v1707, 8.507059e+37
        %v1709 = vand.u32 %v1697, 2147483648
        %v1710 = vor.u32 1.1754944e-38, %v1709
        %v1711 = vsel %vm1708, %v1710, %v1706
        %v1712 = vmul.f32 1.0, %v1711
        %v1713 = vmul.f32 %v1712, %v1661
        %v1714 = vsub.f32 1.0, %v1712
        %v1715 = vmul.f32 %v1714, %v1634
        %v1716 = vadd.f32 %v1713, %v1715
        %v1717 = vmul.f32 %v1574, %v781
        %v1718 = vmul.f32 %v1634, %v781
        %v1719 = vsub.f32 %v1718, %v1717
        %v1720 = vand.u32 2147483647, %v1719
        %v1721 = vmul.f32 %v1661, %v781
        %v1722 = vsub.f32 %v1721, %v1717
        %v1723 = vand.u32 2147483647, %v1722
        %v1724 = vadd.f32 %v1720, %v1723
        %v1725 = vmul.f32 %v1716, %v781
        %v1726 = vsub.f32 %v1725, %v1717
        %v1727 = vand.u32 2147483647, %v1726
        %v1728 = vadd.f32 %v1724, %v1727
        %v1729 = vmul.f32 %v1728, %v1576
        %v1730 = vsel %vm970, %v1729, 0.0
        %1731 = vadd.xlane.f32.xlu0 %v1730
        %v1732 = vpop.xlane.xlu0 %1731
        %v1733 = vrot.slane %v1732, 4
        %v1734 = vadd.f32 %v1732, %v1733
        %v1735 = vrot.slane %v1734, 2
        %v1736 = vadd.f32 %v1734, %v1735
        %v1737 = vrot.slane %v1736, 1
        %v1738 = vadd.f32 %v1736, %v1737
        %s1739 = vtos %v1738
        %v1740 = vstv %s1739
        %v1741 = vsel %vm970, %v1576, 0.0
        %1742 = vadd.xlane.f32.xlu0 %v1741
        %v1743 = vpop.xlane.xlu0 %1742
        %v1744 = vrot.slane %v1743, 4
        %v1745 = vadd.f32 %v1743, %v1744
        %v1746 = vrot.slane %v1745, 2
        %v1747 = vadd.f32 %v1745, %v1746
        %v1748 = vrot.slane %v1747, 1
        %v1749 = vadd.f32 %v1747, %v1748
        %s1750 = vtos %v1749
        %v1751 = vstv %s1750
        %v1752 = vadd.f32 %v1751, 1e-12
        %v1753 = vrcp.pop %v1752
        %v1754 = vmul.f32 %v1740, %v1753
        %v1755 = vadd.f32 %v1503, %v1754
        %v1756 = vmul.f32 %v1637, %v1716
        %v1757 = vadd.f32 %v1636, %v1756
        %s1758 = scalar_lea.vmem %s772, 6
        %1759 = vst.msk [vmem:[%s1758] sm:$0x3] %vm970, %v1716
        %1760 = vrot.lane.b32.xlu0 %v1610, 72
        %v1761 = vpop.permute.xlu0 %1760
        %v1763 = vsel %vm805, %v1757, %v1668
        %v1764 = vsel %vm910, %v1763, %v1761
        %v1766 = vsel %vm1008, %v1764, 0
        %1768 = vmatpush.msra.mxu0 0.0
        %1769 = vmatpush.msra.mxu0 0.0
        %1770 = vmatpush.msra.mxu0 0.0
        %1771 = vmatpush.msra.mxu0 0.0
        %1772 = vmatpush.msra.mxu0 0.0
        %1773 = vmatpush.msra.mxu0 0.0
        %1774 = vmatpush.msra.mxu0 0.0
        %1775 = vmatpush.msra.mxu0 0.0
        %1776 = vmatpush.msra.mxu0 0.0
        %1777 = vmatpush.msra.mxu0 0.0
        %1778 = vmatpush.msra.mxu0 0.0
        %1779 = vmatpush.msra.mxu0 %v797
        %1780 = vmatpush.msra.mxu0 %v796
        %1781 = vmatpush.msra.mxu0 %v795
        %1782 = vmatpush.msra.mxu0 %v794
        %1783 = vmatpush.msra.mxu0 %v793
        %1784 = vmatmul.f32.gmra.mxu0 %v1766
        %v1785 = vpop.f32.mrf.mxu0
        %v1786 = vadd.f32 %v1006, %v1785
        %1787 = vdwg.mxu0
        %v1788 = vxor.u32 %v1786, 2147483648
        %v1789 = vmul.f32 %v1788, 1.442695
        %v1790 = vpow.pop %v1789
        %v1791 = vadd.f32 %v1790, 1.0
        %v1792 = vrcp.pop %v1791
        %v1793 = vmul.f32 %v1791, %v1792
        %v1794 = vsub.f32 1.0, %v1793
        %v1795 = vmul.f32 %v1792, %v1794
        %v1796 = vadd.f32 %v1792, %v1795
        %vm1797 = vweird.f32 %v1791
        %vm1798 = vweird.f32 %v1792
        %vm1799 = vmor %vm1797, %vm1798
        %v1800 = vsel %vm1799, %v1792, %v1796
        %v1801 = vand.u32 2147483647, %v1791
        %vm1802 = vcmp.eq.f32.partialorder %v1801, 8.507059e+37
        %v1803 = vand.u32 %v1791, 2147483648
        %v1804 = vor.u32 1.1754944e-38, %v1803
        %v1805 = vsel %vm1802, %v1804, %v1800
        %v1806 = vmul.f32 1.0, %v1805
        %v1807 = vtanh.pop %v1786
        %v1808 = vmul.f32 %v1806, %v1566
        %1810 = vrot.lane.b32.xlu0 %v1807, 32
        %v1811 = vpop.permute.xlu0 %1810
        %v1813 = vmul.f32 %v1806, %v1811
        %1815 = vrot.lane.b32.xlu0 %v1813, 32
        %v1816 = vpop.permute.xlu0 %1815
        %v1818 = vadd.f32 %v1808, %v1816
        %v1819 = vtanh.pop %v1818
        %1821 = vrot.lane.b32.xlu0 %v1819, 32
        %v1822 = vpop.permute.xlu0 %1821
        %v1824 = vmul.f32 %v1806, %v1822
        %s1825 = scalar_lea.vmem %s720, 8
        %v1826 = vld [vmem:[%s1825] sm:$0x3]
        %s1827 = scalar_lea.vmem %s725, 8
        %v1828 = vld [vmem:[%s1827] sm:$0x3]
        %s1829 = scalar_lea.vmem %s730, 8
        %v1830 = vld [vmem:[%s1829] sm:$0x3]
        %v1832 = vsel %vm805, %v1830, 0
        %1834 = vmatpush.msra.mxu0 0.0
        %1835 = vmatpush.msra.mxu0 0.0
        %1836 = vmatpush.msra.mxu0 0.0
        %1837 = vmatpush.msra.mxu0 0.0
        %1838 = vmatpush.msra.mxu0 0.0
        %1839 = vmatpush.msra.mxu0 0.0
        %1840 = vmatpush.msra.mxu0 0.0
        %1841 = vmatpush.msra.mxu0 0.0
        %1842 = vmatpush.msra.mxu0 0.0
        %1843 = vmatpush.msra.mxu0 0.0
        %1844 = vmatpush.msra.mxu0 0.0
        %1845 = vmatpush.msra.mxu0 0.0
        %1846 = vmatpush.msra.mxu0 0.0
        %1847 = vmatpush.msra.mxu0 0.0
        %1848 = vmatpush.msra.mxu0 0.0
        %1849 = vmatpush.msra.mxu0 %v811
        %1850 = vmatmul.f32.gmra.mxu0 %v1832
        %v1851 = vpop.f32.mrf.mxu0
        %v1852 = vadd.f32 %v803, %v1851
        %1853 = vdwg.mxu0
        %v1854 = vmax.f32 %v1852, 0.0
        %v1855 = vsub.f32 0.0, %v1854
        %v1856 = vmul.f32 %v1855, 1.442695
        %v1857 = vpow.pop %v1856
        %1859 = vrot.lane.b32.xlu0 %v1857, 64
        %v1860 = vpop.permute.xlu0 %1859
        %v1862 = vmul.f32 %v1824, %v1860
        %1864 = vrot.lane.b32.xlu0 %v1862, 64
        %v1865 = vpop.permute.xlu0 %1864
        %v1866 = vsel %vm841, %v1865, 0
        %1868 = vmatpush.msra.mxu0 0.0
        %1869 = vmatpush.msra.mxu0 0.0
        %1870 = vmatpush.msra.mxu0 0.0
        %1871 = vmatpush.msra.mxu0 0.0
        %1872 = vmatpush.msra.mxu0 0.0
        %1873 = vmatpush.msra.mxu0 0.0
        %1874 = vmatpush.msra.mxu0 0.0
        %1875 = vmatpush.msra.mxu0 0.0
        %1876 = vmatpush.msra.mxu0 0.0
        %1877 = vmatpush.msra.mxu0 0.0
        %1878 = vmatpush.msra.mxu0 0.0
        %1879 = vmatpush.msra.mxu0 0.0
        %1880 = vmatpush.msra.mxu0 %v787
        %1881 = vmatpush.msra.mxu0 %v786
        %1882 = vmatpush.msra.mxu0 %v785
        %1883 = vmatpush.msra.mxu0 %v784
        %1884 = vmatmul.f32.gmra.mxu0 %v1866
        %v1885 = vpop.f32.mrf.mxu0
        %v1886 = vadd.f32 %v839, %v1885
        %1887 = vdwg.mxu0
        %v1888 = vmul.f32 %v1828, %v1826
        %v1889 = vsub.f32 1.0, %v1828
        %v1890 = vmul.f32 %v1889, %v1886
        %v1891 = vadd.f32 %v1888, %v1890
        %v1893 = vsel %vm805, %v1891, 0
        %1895 = vmatpush.msra.mxu0 0.0
        %1896 = vmatpush.msra.mxu0 0.0
        %1897 = vmatpush.msra.mxu0 0.0
        %1898 = vmatpush.msra.mxu0 0.0
        %1899 = vmatpush.msra.mxu0 0.0
        %1900 = vmatpush.msra.mxu0 0.0
        %1901 = vmatpush.msra.mxu0 0.0
        %1902 = vmatpush.msra.mxu0 0.0
        %1903 = vmatpush.msra.mxu0 0.0
        %1904 = vmatpush.msra.mxu0 0.0
        %1905 = vmatpush.msra.mxu0 0.0
        %1906 = vmatpush.msra.mxu0 0.0
        %1907 = vmatpush.msra.mxu0 0.0
        %1908 = vmatpush.msra.mxu0 0.0
        %1909 = vmatpush.msra.mxu0 0.0
        %1910 = vmatpush.msra.mxu0 %v876
        %1911 = vmatmul.f32.gmra.mxu0 %v1893
        %v1912 = vpop.f32.mrf.mxu0
        %v1913 = vadd.f32 %v870, %v1912
        %1914 = vdwg.mxu0
        %1915 = vrot.lane.b32.xlu0 %v1857, 96
        %v1916 = vpop.permute.xlu0 %1915
        %1919 = vrot.lane.b32.xlu0 %v1828, 4
        %v1920 = vpop.permute.xlu0 %1919
        %v1922 = vsel %vm805, %v1916, %v1920
        %v1924 = vsel %vm910, %v1922, 0
        %1926 = vmatpush.msra.mxu0 0.0
        %1927 = vmatpush.msra.mxu0 0.0
        %1928 = vmatpush.msra.mxu0 0.0
        %1929 = vmatpush.msra.mxu0 0.0
        %1930 = vmatpush.msra.mxu0 0.0
        %1931 = vmatpush.msra.mxu0 0.0
        %1932 = vmatpush.msra.mxu0 0.0
        %1933 = vmatpush.msra.mxu0 0.0
        %1934 = vmatpush.msra.mxu0 0.0
        %1935 = vmatpush.msra.mxu0 0.0
        %1936 = vmatpush.msra.mxu0 0.0
        %1937 = vmatpush.msra.mxu0 0.0
        %1938 = vmatpush.msra.mxu0 0.0
        %1939 = vmatpush.msra.mxu0 0.0
        %1940 = vmatpush.msra.mxu0 0.0
        %1941 = vmatpush.msra.mxu0 %v791
        %1942 = vmatmul.f32.gmra.mxu0 %v1924
        %v1943 = vpop.f32.mrf.mxu0
        %v1944 = vadd.f32 %v908, %v1943
        %1945 = vdwg.mxu0
        %v1946 = vxor.u32 %v1944, 2147483648
        %v1947 = vmul.f32 %v1946, 1.442695
        %v1948 = vpow.pop %v1947
        %v1949 = vadd.f32 %v1948, 1.0
        %v1950 = vrcp.pop %v1949
        %v1951 = vmul.f32 %v1949, %v1950
        %v1952 = vsub.f32 1.0, %v1951
        %v1953 = vmul.f32 %v1950, %v1952
        %v1954 = vadd.f32 %v1950, %v1953
        %vm1955 = vweird.f32 %v1949
        %vm1956 = vweird.f32 %v1950
        %vm1957 = vmor %vm1955, %vm1956
        %v1958 = vsel %vm1957, %v1950, %v1954
        %v1959 = vand.u32 2147483647, %v1949
        %vm1960 = vcmp.eq.f32.partialorder %v1959, 8.507059e+37
        %v1961 = vand.u32 %v1949, 2147483648
        %v1962 = vor.u32 1.1754944e-38, %v1961
        %v1963 = vsel %vm1960, %v1962, %v1958
        %v1964 = vmul.f32 1.0, %v1963
        %v1965 = vmul.f32 %v1964, %v1913
        %v1966 = vsub.f32 1.0, %v1964
        %v1967 = vmul.f32 %v1966, %v1886
        %v1968 = vadd.f32 %v1965, %v1967
        %v1969 = vmul.f32 %v1826, %v781
        %v1970 = vmul.f32 %v1886, %v781
        %v1971 = vsub.f32 %v1970, %v1969
        %v1972 = vand.u32 2147483647, %v1971
        %v1973 = vmul.f32 %v1913, %v781
        %v1974 = vsub.f32 %v1973, %v1969
        %v1975 = vand.u32 2147483647, %v1974
        %v1976 = vadd.f32 %v1972, %v1975
        %v1977 = vmul.f32 %v1968, %v781
        %v1978 = vsub.f32 %v1977, %v1969
        %v1979 = vand.u32 2147483647, %v1978
        %v1980 = vadd.f32 %v1976, %v1979
        %v1981 = vmul.f32 %v1980, %v1828
        %v1982 = vsel %vm970, %v1981, 0.0
        %1983 = vadd.xlane.f32.xlu0 %v1982
        %v1984 = vpop.xlane.xlu0 %1983
        %v1985 = vrot.slane %v1984, 4
        %v1986 = vadd.f32 %v1984, %v1985
        %v1987 = vrot.slane %v1986, 2
        %v1988 = vadd.f32 %v1986, %v1987
        %v1989 = vrot.slane %v1988, 1
        %v1990 = vadd.f32 %v1988, %v1989
        %s1991 = vtos %v1990
        %v1992 = vstv %s1991
        %v1993 = vsel %vm970, %v1828, 0.0
        %1994 = vadd.xlane.f32.xlu0 %v1993
        %v1995 = vpop.xlane.xlu0 %1994
        %v1996 = vrot.slane %v1995, 4
        %v1997 = vadd.f32 %v1995, %v1996
        %v1998 = vrot.slane %v1997, 2
        %v1999 = vadd.f32 %v1997, %v1998
        %v2000 = vrot.slane %v1999, 1
        %v2001 = vadd.f32 %v1999, %v2000
        %s2002 = vtos %v2001
        %v2003 = vstv %s2002
        %v2004 = vadd.f32 %v2003, 1e-12
        %v2005 = vrcp.pop %v2004
        %v2006 = vmul.f32 %v1992, %v2005
        %v2007 = vadd.f32 %v1755, %v2006
        %v2008 = vmul.f32 %v1889, %v1968
        %v2009 = vadd.f32 %v1888, %v2008
        %s2010 = scalar_lea.vmem %s772, 8
        %2011 = vst.msk [vmem:[%s2010] sm:$0x3] %vm970, %v1968
        %2012 = vrot.lane.b32.xlu0 %v1862, 72
        %v2013 = vpop.permute.xlu0 %2012
        %v2015 = vsel %vm805, %v2009, %v1920
        %v2016 = vsel %vm910, %v2015, %v2013
        %v2018 = vsel %vm1008, %v2016, 0
        %2020 = vmatpush.msra.mxu0 0.0
        %2021 = vmatpush.msra.mxu0 0.0
        %2022 = vmatpush.msra.mxu0 0.0
        %2023 = vmatpush.msra.mxu0 0.0
        %2024 = vmatpush.msra.mxu0 0.0
        %2025 = vmatpush.msra.mxu0 0.0
        %2026 = vmatpush.msra.mxu0 0.0
        %2027 = vmatpush.msra.mxu0 0.0
        %2028 = vmatpush.msra.mxu0 0.0
        %2029 = vmatpush.msra.mxu0 0.0
        %2030 = vmatpush.msra.mxu0 0.0
        %2031 = vmatpush.msra.mxu0 %v797
        %2032 = vmatpush.msra.mxu0 %v796
        %2033 = vmatpush.msra.mxu0 %v795
        %2034 = vmatpush.msra.mxu0 %v794
        %2035 = vmatpush.msra.mxu0 %v793
        %2036 = vmatmul.f32.gmra.mxu0 %v2018
        %v2037 = vpop.f32.mrf.mxu0
        %v2038 = vadd.f32 %v1006, %v2037
        %2039 = vdwg.mxu0
        %v2040 = vxor.u32 %v2038, 2147483648
        %v2041 = vmul.f32 %v2040, 1.442695
        %v2042 = vpow.pop %v2041
        %v2043 = vadd.f32 %v2042, 1.0
        %v2044 = vrcp.pop %v2043
        %v2045 = vmul.f32 %v2043, %v2044
        %v2046 = vsub.f32 1.0, %v2045
        %v2047 = vmul.f32 %v2044, %v2046
        %v2048 = vadd.f32 %v2044, %v2047
        %vm2049 = vweird.f32 %v2043
        %vm2050 = vweird.f32 %v2044
        %vm2051 = vmor %vm2049, %vm2050
        %v2052 = vsel %vm2051, %v2044, %v2048
        %v2053 = vand.u32 2147483647, %v2043
        %vm2054 = vcmp.eq.f32.partialorder %v2053, 8.507059e+37
        %v2055 = vand.u32 %v2043, 2147483648
        %v2056 = vor.u32 1.1754944e-38, %v2055
        %v2057 = vsel %vm2054, %v2056, %v2052
        %v2058 = vmul.f32 1.0, %v2057
        %v2059 = vtanh.pop %v2038
        %v2060 = vmul.f32 %v2058, %v1818
        %2062 = vrot.lane.b32.xlu0 %v2059, 32
        %v2063 = vpop.permute.xlu0 %2062
        %v2065 = vmul.f32 %v2058, %v2063
        %2067 = vrot.lane.b32.xlu0 %v2065, 32
        %v2068 = vpop.permute.xlu0 %2067
        %v2070 = vadd.f32 %v2060, %v2068
        %v2071 = vtanh.pop %v2070
        %2073 = vrot.lane.b32.xlu0 %v2071, 32
        %v2074 = vpop.permute.xlu0 %2073
        %v2076 = vmul.f32 %v2058, %v2074
        %s2077 = scalar_lea.vmem %s720, 10
        %v2078 = vld [vmem:[%s2077] sm:$0x3]
        %s2079 = scalar_lea.vmem %s725, 10
        %v2080 = vld [vmem:[%s2079] sm:$0x3]
        %s2081 = scalar_lea.vmem %s730, 10
        %v2082 = vld [vmem:[%s2081] sm:$0x3]
        %v2084 = vsel %vm805, %v2082, 0
        %2086 = vmatpush.msra.mxu0 0.0
        %2087 = vmatpush.msra.mxu0 0.0
        %2088 = vmatpush.msra.mxu0 0.0
        %2089 = vmatpush.msra.mxu0 0.0
        %2090 = vmatpush.msra.mxu0 0.0
        %2091 = vmatpush.msra.mxu0 0.0
        %2092 = vmatpush.msra.mxu0 0.0
        %2093 = vmatpush.msra.mxu0 0.0
        %2094 = vmatpush.msra.mxu0 0.0
        %2095 = vmatpush.msra.mxu0 0.0
        %2096 = vmatpush.msra.mxu0 0.0
        %2097 = vmatpush.msra.mxu0 0.0
        %2098 = vmatpush.msra.mxu0 0.0
        %2099 = vmatpush.msra.mxu0 0.0
        %2100 = vmatpush.msra.mxu0 0.0
        %2101 = vmatpush.msra.mxu0 %v811
        %2102 = vmatmul.f32.gmra.mxu0 %v2084
        %v2103 = vpop.f32.mrf.mxu0
        %v2104 = vadd.f32 %v803, %v2103
        %2105 = vdwg.mxu0
        %v2106 = vmax.f32 %v2104, 0.0
        %v2107 = vsub.f32 0.0, %v2106
        %v2108 = vmul.f32 %v2107, 1.442695
        %v2109 = vpow.pop %v2108
        %2111 = vrot.lane.b32.xlu0 %v2109, 64
        %v2112 = vpop.permute.xlu0 %2111
        %v2114 = vmul.f32 %v2076, %v2112
        %2116 = vrot.lane.b32.xlu0 %v2114, 64
        %v2117 = vpop.permute.xlu0 %2116
        %v2118 = vsel %vm841, %v2117, 0
        %2120 = vmatpush.msra.mxu0 0.0
        %2121 = vmatpush.msra.mxu0 0.0
        %2122 = vmatpush.msra.mxu0 0.0
        %2123 = vmatpush.msra.mxu0 0.0
        %2124 = vmatpush.msra.mxu0 0.0
        %2125 = vmatpush.msra.mxu0 0.0
        %2126 = vmatpush.msra.mxu0 0.0
        %2127 = vmatpush.msra.mxu0 0.0
        %2128 = vmatpush.msra.mxu0 0.0
        %2129 = vmatpush.msra.mxu0 0.0
        %2130 = vmatpush.msra.mxu0 0.0
        %2131 = vmatpush.msra.mxu0 0.0
        %2132 = vmatpush.msra.mxu0 %v787
        %2133 = vmatpush.msra.mxu0 %v786
        %2134 = vmatpush.msra.mxu0 %v785
        %2135 = vmatpush.msra.mxu0 %v784
        %2136 = vmatmul.f32.gmra.mxu0 %v2118
        %v2137 = vpop.f32.mrf.mxu0
        %v2138 = vadd.f32 %v839, %v2137
        %2139 = vdwg.mxu0
        %v2140 = vmul.f32 %v2080, %v2078
        %v2141 = vsub.f32 1.0, %v2080
        %v2142 = vmul.f32 %v2141, %v2138
        %v2143 = vadd.f32 %v2140, %v2142
        %v2145 = vsel %vm805, %v2143, 0
        %2147 = vmatpush.msra.mxu0 0.0
        %2148 = vmatpush.msra.mxu0 0.0
        %2149 = vmatpush.msra.mxu0 0.0
        %2150 = vmatpush.msra.mxu0 0.0
        %2151 = vmatpush.msra.mxu0 0.0
        %2152 = vmatpush.msra.mxu0 0.0
        %2153 = vmatpush.msra.mxu0 0.0
        %2154 = vmatpush.msra.mxu0 0.0
        %2155 = vmatpush.msra.mxu0 0.0
        %2156 = vmatpush.msra.mxu0 0.0
        %2157 = vmatpush.msra.mxu0 0.0
        %2158 = vmatpush.msra.mxu0 0.0
        %2159 = vmatpush.msra.mxu0 0.0
        %2160 = vmatpush.msra.mxu0 0.0
        %2161 = vmatpush.msra.mxu0 0.0
        %2162 = vmatpush.msra.mxu0 %v876
        %2163 = vmatmul.f32.gmra.mxu0 %v2145
        %v2164 = vpop.f32.mrf.mxu0
        %v2165 = vadd.f32 %v870, %v2164
        %2166 = vdwg.mxu0
        %2167 = vrot.lane.b32.xlu0 %v2109, 96
        %v2168 = vpop.permute.xlu0 %2167
        %2171 = vrot.lane.b32.xlu0 %v2080, 4
        %v2172 = vpop.permute.xlu0 %2171
        %v2174 = vsel %vm805, %v2168, %v2172
        %v2176 = vsel %vm910, %v2174, 0
        %2178 = vmatpush.msra.mxu0 0.0
        %2179 = vmatpush.msra.mxu0 0.0
        %2180 = vmatpush.msra.mxu0 0.0
        %2181 = vmatpush.msra.mxu0 0.0
        %2182 = vmatpush.msra.mxu0 0.0
        %2183 = vmatpush.msra.mxu0 0.0
        %2184 = vmatpush.msra.mxu0 0.0
        %2185 = vmatpush.msra.mxu0 0.0
        %2186 = vmatpush.msra.mxu0 0.0
        %2187 = vmatpush.msra.mxu0 0.0
        %2188 = vmatpush.msra.mxu0 0.0
        %2189 = vmatpush.msra.mxu0 0.0
        %2190 = vmatpush.msra.mxu0 0.0
        %2191 = vmatpush.msra.mxu0 0.0
        %2192 = vmatpush.msra.mxu0 0.0
        %2193 = vmatpush.msra.mxu0 %v791
        %2194 = vmatmul.f32.gmra.mxu0 %v2176
        %v2195 = vpop.f32.mrf.mxu0
        %v2196 = vadd.f32 %v908, %v2195
        %2197 = vdwg.mxu0
        %v2198 = vxor.u32 %v2196, 2147483648
        %v2199 = vmul.f32 %v2198, 1.442695
        %v2200 = vpow.pop %v2199
        %v2201 = vadd.f32 %v2200, 1.0
        %v2202 = vrcp.pop %v2201
        %v2203 = vmul.f32 %v2201, %v2202
        %v2204 = vsub.f32 1.0, %v2203
        %v2205 = vmul.f32 %v2202, %v2204
        %v2206 = vadd.f32 %v2202, %v2205
        %vm2207 = vweird.f32 %v2201
        %vm2208 = vweird.f32 %v2202
        %vm2209 = vmor %vm2207, %vm2208
        %v2210 = vsel %vm2209, %v2202, %v2206
        %v2211 = vand.u32 2147483647, %v2201
        %vm2212 = vcmp.eq.f32.partialorder %v2211, 8.507059e+37
        %v2213 = vand.u32 %v2201, 2147483648
        %v2214 = vor.u32 1.1754944e-38, %v2213
        %v2215 = vsel %vm2212, %v2214, %v2210
        %v2216 = vmul.f32 1.0, %v2215
        %v2217 = vmul.f32 %v2216, %v2165
        %v2218 = vsub.f32 1.0, %v2216
        %v2219 = vmul.f32 %v2218, %v2138
        %v2220 = vadd.f32 %v2217, %v2219
        %v2221 = vmul.f32 %v2078, %v781
        %v2222 = vmul.f32 %v2138, %v781
        %v2223 = vsub.f32 %v2222, %v2221
        %v2224 = vand.u32 2147483647, %v2223
        %v2225 = vmul.f32 %v2165, %v781
        %v2226 = vsub.f32 %v2225, %v2221
        %v2227 = vand.u32 2147483647, %v2226
        %v2228 = vadd.f32 %v2224, %v2227
        %v2229 = vmul.f32 %v2220, %v781
        %v2230 = vsub.f32 %v2229, %v2221
        %v2231 = vand.u32 2147483647, %v2230
        %v2232 = vadd.f32 %v2228, %v2231
        %v2233 = vmul.f32 %v2232, %v2080
        %v2234 = vsel %vm970, %v2233, 0.0
        %2235 = vadd.xlane.f32.xlu0 %v2234
        %v2236 = vpop.xlane.xlu0 %2235
        %v2237 = vrot.slane %v2236, 4
        %v2238 = vadd.f32 %v2236, %v2237
        %v2239 = vrot.slane %v2238, 2
        %v2240 = vadd.f32 %v2238, %v2239
        %v2241 = vrot.slane %v2240, 1
        %v2242 = vadd.f32 %v2240, %v2241
        %s2243 = vtos %v2242
        %v2244 = vstv %s2243
        %v2245 = vsel %vm970, %v2080, 0.0
        %2246 = vadd.xlane.f32.xlu0 %v2245
        %v2247 = vpop.xlane.xlu0 %2246
        %v2248 = vrot.slane %v2247, 4
        %v2249 = vadd.f32 %v2247, %v2248
        %v2250 = vrot.slane %v2249, 2
        %v2251 = vadd.f32 %v2249, %v2250
        %v2252 = vrot.slane %v2251, 1
        %v2253 = vadd.f32 %v2251, %v2252
        %s2254 = vtos %v2253
        %v2255 = vstv %s2254
        %v2256 = vadd.f32 %v2255, 1e-12
        %v2257 = vrcp.pop %v2256
        %v2258 = vmul.f32 %v2244, %v2257
        %v2259 = vadd.f32 %v2007, %v2258
        %v2260 = vmul.f32 %v2141, %v2220
        %v2261 = vadd.f32 %v2140, %v2260
        %s2262 = scalar_lea.vmem %s772, 10
        %2263 = vst.msk [vmem:[%s2262] sm:$0x3] %vm970, %v2220
        %2264 = vrot.lane.b32.xlu0 %v2114, 72
        %v2265 = vpop.permute.xlu0 %2264
        %v2267 = vsel %vm805, %v2261, %v2172
        %v2268 = vsel %vm910, %v2267, %v2265
        %v2270 = vsel %vm1008, %v2268, 0
        %2272 = vmatpush.msra.mxu0 0.0
        %2273 = vmatpush.msra.mxu0 0.0
        %2274 = vmatpush.msra.mxu0 0.0
        %2275 = vmatpush.msra.mxu0 0.0
        %2276 = vmatpush.msra.mxu0 0.0
        %2277 = vmatpush.msra.mxu0 0.0
        %2278 = vmatpush.msra.mxu0 0.0
        %2279 = vmatpush.msra.mxu0 0.0
        %2280 = vmatpush.msra.mxu0 0.0
        %2281 = vmatpush.msra.mxu0 0.0
        %2282 = vmatpush.msra.mxu0 0.0
        %2283 = vmatpush.msra.mxu0 %v797
        %2284 = vmatpush.msra.mxu0 %v796
        %2285 = vmatpush.msra.mxu0 %v795
        %2286 = vmatpush.msra.mxu0 %v794
        %2287 = vmatpush.msra.mxu0 %v793
        %2288 = vmatmul.f32.gmra.mxu0 %v2270
        %v2289 = vpop.f32.mrf.mxu0
        %v2290 = vadd.f32 %v1006, %v2289
        %2291 = vdwg.mxu0
        %v2292 = vxor.u32 %v2290, 2147483648
        %v2293 = vmul.f32 %v2292, 1.442695
        %v2294 = vpow.pop %v2293
        %v2295 = vadd.f32 %v2294, 1.0
        %v2296 = vrcp.pop %v2295
        %v2297 = vmul.f32 %v2295, %v2296
        %v2298 = vsub.f32 1.0, %v2297
        %v2299 = vmul.f32 %v2296, %v2298
        %v2300 = vadd.f32 %v2296, %v2299
        %vm2301 = vweird.f32 %v2295
        %vm2302 = vweird.f32 %v2296
        %vm2303 = vmor %vm2301, %vm2302
        %v2304 = vsel %vm2303, %v2296, %v2300
        %v2305 = vand.u32 2147483647, %v2295
        %vm2306 = vcmp.eq.f32.partialorder %v2305, 8.507059e+37
        %v2307 = vand.u32 %v2295, 2147483648
        %v2308 = vor.u32 1.1754944e-38, %v2307
        %v2309 = vsel %vm2306, %v2308, %v2304
        %v2310 = vmul.f32 1.0, %v2309
        %v2311 = vtanh.pop %v2290
        %v2312 = vmul.f32 %v2310, %v2070
        %2314 = vrot.lane.b32.xlu0 %v2311, 32
        %v2315 = vpop.permute.xlu0 %2314
        %v2317 = vmul.f32 %v2310, %v2315
        %2319 = vrot.lane.b32.xlu0 %v2317, 32
        %v2320 = vpop.permute.xlu0 %2319
        %v2322 = vadd.f32 %v2312, %v2320
        %v2323 = vtanh.pop %v2322
        %2325 = vrot.lane.b32.xlu0 %v2323, 32
        %v2326 = vpop.permute.xlu0 %2325
        %v2328 = vmul.f32 %v2310, %v2326
        %s2329 = scalar_lea.vmem %s720, 12
        %v2330 = vld [vmem:[%s2329] sm:$0x3]
        %s2331 = scalar_lea.vmem %s725, 12
        %v2332 = vld [vmem:[%s2331] sm:$0x3]
        %s2333 = scalar_lea.vmem %s730, 12
        %v2334 = vld [vmem:[%s2333] sm:$0x3]
        %v2336 = vsel %vm805, %v2334, 0
        %2338 = vmatpush.msra.mxu0 0.0
        %2339 = vmatpush.msra.mxu0 0.0
        %2340 = vmatpush.msra.mxu0 0.0
        %2341 = vmatpush.msra.mxu0 0.0
        %2342 = vmatpush.msra.mxu0 0.0
        %2343 = vmatpush.msra.mxu0 0.0
        %2344 = vmatpush.msra.mxu0 0.0
        %2345 = vmatpush.msra.mxu0 0.0
        %2346 = vmatpush.msra.mxu0 0.0
        %2347 = vmatpush.msra.mxu0 0.0
        %2348 = vmatpush.msra.mxu0 0.0
        %2349 = vmatpush.msra.mxu0 0.0
        %2350 = vmatpush.msra.mxu0 0.0
        %2351 = vmatpush.msra.mxu0 0.0
        %2352 = vmatpush.msra.mxu0 0.0
        %2353 = vmatpush.msra.mxu0 %v811
        %2354 = vmatmul.f32.gmra.mxu0 %v2336
        %v2355 = vpop.f32.mrf.mxu0
        %v2356 = vadd.f32 %v803, %v2355
        %2357 = vdwg.mxu0
        %v2358 = vmax.f32 %v2356, 0.0
        %v2359 = vsub.f32 0.0, %v2358
        %v2360 = vmul.f32 %v2359, 1.442695
        %v2361 = vpow.pop %v2360
        %2363 = vrot.lane.b32.xlu0 %v2361, 64
        %v2364 = vpop.permute.xlu0 %2363
        %v2366 = vmul.f32 %v2328, %v2364
        %2368 = vrot.lane.b32.xlu0 %v2366, 64
        %v2369 = vpop.permute.xlu0 %2368
        %v2370 = vsel %vm841, %v2369, 0
        %2372 = vmatpush.msra.mxu0 0.0
        %2373 = vmatpush.msra.mxu0 0.0
        %2374 = vmatpush.msra.mxu0 0.0
        %2375 = vmatpush.msra.mxu0 0.0
        %2376 = vmatpush.msra.mxu0 0.0
        %2377 = vmatpush.msra.mxu0 0.0
        %2378 = vmatpush.msra.mxu0 0.0
        %2379 = vmatpush.msra.mxu0 0.0
        %2380 = vmatpush.msra.mxu0 0.0
        %2381 = vmatpush.msra.mxu0 0.0
        %2382 = vmatpush.msra.mxu0 0.0
        %2383 = vmatpush.msra.mxu0 0.0
        %2384 = vmatpush.msra.mxu0 %v787
        %2385 = vmatpush.msra.mxu0 %v786
        %2386 = vmatpush.msra.mxu0 %v785
        %2387 = vmatpush.msra.mxu0 %v784
        %2388 = vmatmul.f32.gmra.mxu0 %v2370
        %v2389 = vpop.f32.mrf.mxu0
        %v2390 = vadd.f32 %v839, %v2389
        %2391 = vdwg.mxu0
        %v2392 = vmul.f32 %v2332, %v2330
        %v2393 = vsub.f32 1.0, %v2332
        %v2394 = vmul.f32 %v2393, %v2390
        %v2395 = vadd.f32 %v2392, %v2394
        %v2397 = vsel %vm805, %v2395, 0
        %2399 = vmatpush.msra.mxu0 0.0
        %2400 = vmatpush.msra.mxu0 0.0
        %2401 = vmatpush.msra.mxu0 0.0
        %2402 = vmatpush.msra.mxu0 0.0
        %2403 = vmatpush.msra.mxu0 0.0
        %2404 = vmatpush.msra.mxu0 0.0
        %2405 = vmatpush.msra.mxu0 0.0
        %2406 = vmatpush.msra.mxu0 0.0
        %2407 = vmatpush.msra.mxu0 0.0
        %2408 = vmatpush.msra.mxu0 0.0
        %2409 = vmatpush.msra.mxu0 0.0
        %2410 = vmatpush.msra.mxu0 0.0
        %2411 = vmatpush.msra.mxu0 0.0
        %2412 = vmatpush.msra.mxu0 0.0
        %2413 = vmatpush.msra.mxu0 0.0
        %2414 = vmatpush.msra.mxu0 %v876
        %2415 = vmatmul.f32.gmra.mxu0 %v2397
        %v2416 = vpop.f32.mrf.mxu0
        %v2417 = vadd.f32 %v870, %v2416
        %2418 = vdwg.mxu0
        %2419 = vrot.lane.b32.xlu0 %v2361, 96
        %v2420 = vpop.permute.xlu0 %2419
        %2423 = vrot.lane.b32.xlu0 %v2332, 4
        %v2424 = vpop.permute.xlu0 %2423
        %v2426 = vsel %vm805, %v2420, %v2424
        %v2428 = vsel %vm910, %v2426, 0
        %2430 = vmatpush.msra.mxu0 0.0
        %2431 = vmatpush.msra.mxu0 0.0
        %2432 = vmatpush.msra.mxu0 0.0
        %2433 = vmatpush.msra.mxu0 0.0
        %2434 = vmatpush.msra.mxu0 0.0
        %2435 = vmatpush.msra.mxu0 0.0
        %2436 = vmatpush.msra.mxu0 0.0
        %2437 = vmatpush.msra.mxu0 0.0
        %2438 = vmatpush.msra.mxu0 0.0
        %2439 = vmatpush.msra.mxu0 0.0
        %2440 = vmatpush.msra.mxu0 0.0
        %2441 = vmatpush.msra.mxu0 0.0
        %2442 = vmatpush.msra.mxu0 0.0
        %2443 = vmatpush.msra.mxu0 0.0
        %2444 = vmatpush.msra.mxu0 0.0
        %2445 = vmatpush.msra.mxu0 %v791
        %2446 = vmatmul.f32.gmra.mxu0 %v2428
        %v2447 = vpop.f32.mrf.mxu0
        %v2448 = vadd.f32 %v908, %v2447
        %2449 = vdwg.mxu0
        %v2450 = vxor.u32 %v2448, 2147483648
        %v2451 = vmul.f32 %v2450, 1.442695
        %v2452 = vpow.pop %v2451
        %v2453 = vadd.f32 %v2452, 1.0
        %v2454 = vrcp.pop %v2453
        %v2455 = vmul.f32 %v2453, %v2454
        %v2456 = vsub.f32 1.0, %v2455
        %v2457 = vmul.f32 %v2454, %v2456
        %v2458 = vadd.f32 %v2454, %v2457
        %vm2459 = vweird.f32 %v2453
        %vm2460 = vweird.f32 %v2454
        %vm2461 = vmor %vm2459, %vm2460
        %v2462 = vsel %vm2461, %v2454, %v2458
        %v2463 = vand.u32 2147483647, %v2453
        %vm2464 = vcmp.eq.f32.partialorder %v2463, 8.507059e+37
        %v2465 = vand.u32 %v2453, 2147483648
        %v2466 = vor.u32 1.1754944e-38, %v2465
        %v2467 = vsel %vm2464, %v2466, %v2462
        %v2468 = vmul.f32 1.0, %v2467
        %v2469 = vmul.f32 %v2468, %v2417
        %v2470 = vsub.f32 1.0, %v2468
        %v2471 = vmul.f32 %v2470, %v2390
        %v2472 = vadd.f32 %v2469, %v2471
        %v2473 = vmul.f32 %v2330, %v781
        %v2474 = vmul.f32 %v2390, %v781
        %v2475 = vsub.f32 %v2474, %v2473
        %v2476 = vand.u32 2147483647, %v2475
        %v2477 = vmul.f32 %v2417, %v781
        %v2478 = vsub.f32 %v2477, %v2473
        %v2479 = vand.u32 2147483647, %v2478
        %v2480 = vadd.f32 %v2476, %v2479
        %v2481 = vmul.f32 %v2472, %v781
        %v2482 = vsub.f32 %v2481, %v2473
        %v2483 = vand.u32 2147483647, %v2482
        %v2484 = vadd.f32 %v2480, %v2483
        %v2485 = vmul.f32 %v2484, %v2332
        %v2486 = vsel %vm970, %v2485, 0.0
        %2487 = vadd.xlane.f32.xlu0 %v2486
        %v2488 = vpop.xlane.xlu0 %2487
        %v2489 = vrot.slane %v2488, 4
        %v2490 = vadd.f32 %v2488, %v2489
        %v2491 = vrot.slane %v2490, 2
        %v2492 = vadd.f32 %v2490, %v2491
        %v2493 = vrot.slane %v2492, 1
        %v2494 = vadd.f32 %v2492, %v2493
        %s2495 = vtos %v2494
        %v2496 = vstv %s2495
        %v2497 = vsel %vm970, %v2332, 0.0
        %2498 = vadd.xlane.f32.xlu0 %v2497
        %v2499 = vpop.xlane.xlu0 %2498
        %v2500 = vrot.slane %v2499, 4
        %v2501 = vadd.f32 %v2499, %v2500
        %v2502 = vrot.slane %v2501, 2
        %v2503 = vadd.f32 %v2501, %v2502
        %v2504 = vrot.slane %v2503, 1
        %v2505 = vadd.f32 %v2503, %v2504
        %s2506 = vtos %v2505
        %v2507 = vstv %s2506
        %v2508 = vadd.f32 %v2507, 1e-12
        %v2509 = vrcp.pop %v2508
        %v2510 = vmul.f32 %v2496, %v2509
        %v2511 = vadd.f32 %v2259, %v2510
        %v2512 = vmul.f32 %v2393, %v2472
        %v2513 = vadd.f32 %v2392, %v2512
        %s2514 = scalar_lea.vmem %s772, 12
        %2515 = vst.msk [vmem:[%s2514] sm:$0x3] %vm970, %v2472
        %2516 = vrot.lane.b32.xlu0 %v2366, 72
        %v2517 = vpop.permute.xlu0 %2516
        %v2519 = vsel %vm805, %v2513, %v2424
        %v2520 = vsel %vm910, %v2519, %v2517
        %v2522 = vsel %vm1008, %v2520, 0
        %2524 = vmatpush.msra.mxu0 0.0
        %2525 = vmatpush.msra.mxu0 0.0
        %2526 = vmatpush.msra.mxu0 0.0
        %2527 = vmatpush.msra.mxu0 0.0
        %2528 = vmatpush.msra.mxu0 0.0
        %2529 = vmatpush.msra.mxu0 0.0
        %2530 = vmatpush.msra.mxu0 0.0
        %2531 = vmatpush.msra.mxu0 0.0
        %2532 = vmatpush.msra.mxu0 0.0
        %2533 = vmatpush.msra.mxu0 0.0
        %2534 = vmatpush.msra.mxu0 0.0
        %2535 = vmatpush.msra.mxu0 %v797
        %2536 = vmatpush.msra.mxu0 %v796
        %2537 = vmatpush.msra.mxu0 %v795
        %2538 = vmatpush.msra.mxu0 %v794
        %2539 = vmatpush.msra.mxu0 %v793
        %2540 = vmatmul.f32.gmra.mxu0 %v2522
        %v2541 = vpop.f32.mrf.mxu0
        %v2542 = vadd.f32 %v1006, %v2541
        %2543 = vdwg.mxu0
        %v2544 = vxor.u32 %v2542, 2147483648
        %v2545 = vmul.f32 %v2544, 1.442695
        %v2546 = vpow.pop %v2545
        %v2547 = vadd.f32 %v2546, 1.0
        %v2548 = vrcp.pop %v2547
        %v2549 = vmul.f32 %v2547, %v2548
        %v2550 = vsub.f32 1.0, %v2549
        %v2551 = vmul.f32 %v2548, %v2550
        %v2552 = vadd.f32 %v2548, %v2551
        %vm2553 = vweird.f32 %v2547
        %vm2554 = vweird.f32 %v2548
        %vm2555 = vmor %vm2553, %vm2554
        %v2556 = vsel %vm2555, %v2548, %v2552
        %v2557 = vand.u32 2147483647, %v2547
        %vm2558 = vcmp.eq.f32.partialorder %v2557, 8.507059e+37
        %v2559 = vand.u32 %v2547, 2147483648
        %v2560 = vor.u32 1.1754944e-38, %v2559
        %v2561 = vsel %vm2558, %v2560, %v2556
        %v2562 = vmul.f32 1.0, %v2561
        %v2563 = vtanh.pop %v2542
        %v2564 = vmul.f32 %v2562, %v2322
        %2566 = vrot.lane.b32.xlu0 %v2563, 32
        %v2567 = vpop.permute.xlu0 %2566
        %v2569 = vmul.f32 %v2562, %v2567
        %2571 = vrot.lane.b32.xlu0 %v2569, 32
        %v2572 = vpop.permute.xlu0 %2571
        %v2574 = vadd.f32 %v2564, %v2572
        %v2575 = vtanh.pop %v2574
        %2577 = vrot.lane.b32.xlu0 %v2575, 32
        %v2578 = vpop.permute.xlu0 %2577
        %v2580 = vmul.f32 %v2562, %v2578
        %s2581 = scalar_lea.vmem %s720, 14
        %v2582 = vld [vmem:[%s2581] sm:$0x3]
        %s2583 = scalar_lea.vmem %s725, 14
        %v2584 = vld [vmem:[%s2583] sm:$0x3]
        %s2585 = scalar_lea.vmem %s730, 14
        %v2586 = vld [vmem:[%s2585] sm:$0x3]
        %v2588 = vsel %vm805, %v2586, 0
        %2590 = vmatpush.msra.mxu0 0.0
        %2591 = vmatpush.msra.mxu0 0.0
        %2592 = vmatpush.msra.mxu0 0.0
        %2593 = vmatpush.msra.mxu0 0.0
        %2594 = vmatpush.msra.mxu0 0.0
        %2595 = vmatpush.msra.mxu0 0.0
        %2596 = vmatpush.msra.mxu0 0.0
        %2597 = vmatpush.msra.mxu0 0.0
        %2598 = vmatpush.msra.mxu0 0.0
        %2599 = vmatpush.msra.mxu0 0.0
        %2600 = vmatpush.msra.mxu0 0.0
        %2601 = vmatpush.msra.mxu0 0.0
        %2602 = vmatpush.msra.mxu0 0.0
        %2603 = vmatpush.msra.mxu0 0.0
        %2604 = vmatpush.msra.mxu0 0.0
        %2605 = vmatpush.msra.mxu0 %v811
        %2606 = vmatmul.f32.gmra.mxu0 %v2588
        %v2607 = vpop.f32.mrf.mxu0
        %v2608 = vadd.f32 %v803, %v2607
        %2609 = vdwg.mxu0
        %v2610 = vmax.f32 %v2608, 0.0
        %v2611 = vsub.f32 0.0, %v2610
        %v2612 = vmul.f32 %v2611, 1.442695
        %v2613 = vpow.pop %v2612
        %2615 = vrot.lane.b32.xlu0 %v2613, 64
        %v2616 = vpop.permute.xlu0 %2615
        %v2618 = vmul.f32 %v2580, %v2616
        %2620 = vrot.lane.b32.xlu0 %v2618, 64
        %v2621 = vpop.permute.xlu0 %2620
        %v2622 = vsel %vm841, %v2621, 0
        %2624 = vmatpush.msra.mxu0 0.0
        %2625 = vmatpush.msra.mxu0 0.0
        %2626 = vmatpush.msra.mxu0 0.0
        %2627 = vmatpush.msra.mxu0 0.0
        %2628 = vmatpush.msra.mxu0 0.0
        %2629 = vmatpush.msra.mxu0 0.0
        %2630 = vmatpush.msra.mxu0 0.0
        %2631 = vmatpush.msra.mxu0 0.0
        %2632 = vmatpush.msra.mxu0 0.0
        %2633 = vmatpush.msra.mxu0 0.0
        %2634 = vmatpush.msra.mxu0 0.0
        %2635 = vmatpush.msra.mxu0 0.0
        %2636 = vmatpush.msra.mxu0 %v787
        %2637 = vmatpush.msra.mxu0 %v786
        %2638 = vmatpush.msra.mxu0 %v785
        %2639 = vmatpush.msra.mxu0 %v784
        %2640 = vmatmul.f32.gmra.mxu0 %v2622
        %v2641 = vpop.f32.mrf.mxu0
        %v2642 = vadd.f32 %v839, %v2641
        %2643 = vdwg.mxu0
        %v2644 = vmul.f32 %v2584, %v2582
        %v2645 = vsub.f32 1.0, %v2584
        %v2646 = vmul.f32 %v2645, %v2642
        %v2647 = vadd.f32 %v2644, %v2646
        %v2649 = vsel %vm805, %v2647, 0
        %2651 = vmatpush.msra.mxu0 0.0
        %2652 = vmatpush.msra.mxu0 0.0
        %2653 = vmatpush.msra.mxu0 0.0
        %2654 = vmatpush.msra.mxu0 0.0
        %2655 = vmatpush.msra.mxu0 0.0
        %2656 = vmatpush.msra.mxu0 0.0
        %2657 = vmatpush.msra.mxu0 0.0
        %2658 = vmatpush.msra.mxu0 0.0
        %2659 = vmatpush.msra.mxu0 0.0
        %2660 = vmatpush.msra.mxu0 0.0
        %2661 = vmatpush.msra.mxu0 0.0
        %2662 = vmatpush.msra.mxu0 0.0
        %2663 = vmatpush.msra.mxu0 0.0
        %2664 = vmatpush.msra.mxu0 0.0
        %2665 = vmatpush.msra.mxu0 0.0
        %2666 = vmatpush.msra.mxu0 %v876
        %2667 = vmatmul.f32.gmra.mxu0 %v2649
        %v2668 = vpop.f32.mrf.mxu0
        %v2669 = vadd.f32 %v870, %v2668
        %2670 = vdwg.mxu0
        %2671 = vrot.lane.b32.xlu0 %v2613, 96
        %v2672 = vpop.permute.xlu0 %2671
        %2675 = vrot.lane.b32.xlu0 %v2584, 4
        %v2676 = vpop.permute.xlu0 %2675
        %v2678 = vsel %vm805, %v2672, %v2676
        %v2680 = vsel %vm910, %v2678, 0
        %2682 = vmatpush.msra.mxu0 0.0
        %2683 = vmatpush.msra.mxu0 0.0
        %2684 = vmatpush.msra.mxu0 0.0
        %2685 = vmatpush.msra.mxu0 0.0
        %2686 = vmatpush.msra.mxu0 0.0
        %2687 = vmatpush.msra.mxu0 0.0
        %2688 = vmatpush.msra.mxu0 0.0
        %2689 = vmatpush.msra.mxu0 0.0
        %2690 = vmatpush.msra.mxu0 0.0
        %2691 = vmatpush.msra.mxu0 0.0
        %2692 = vmatpush.msra.mxu0 0.0
        %2693 = vmatpush.msra.mxu0 0.0
        %2694 = vmatpush.msra.mxu0 0.0
        %2695 = vmatpush.msra.mxu0 0.0
        %2696 = vmatpush.msra.mxu0 0.0
        %2697 = vmatpush.msra.mxu0 %v791
        %2698 = vmatmul.f32.gmra.mxu0 %v2680
        %v2699 = vpop.f32.mrf.mxu0
        %v2700 = vadd.f32 %v908, %v2699
        %2701 = vdwg.mxu0
        %v2702 = vxor.u32 %v2700, 2147483648
        %v2703 = vmul.f32 %v2702, 1.442695
        %v2704 = vpow.pop %v2703
        %v2705 = vadd.f32 %v2704, 1.0
        %v2706 = vrcp.pop %v2705
        %v2707 = vmul.f32 %v2705, %v2706
        %v2708 = vsub.f32 1.0, %v2707
        %v2709 = vmul.f32 %v2706, %v2708
        %v2710 = vadd.f32 %v2706, %v2709
        %vm2711 = vweird.f32 %v2705
        %vm2712 = vweird.f32 %v2706
        %vm2713 = vmor %vm2711, %vm2712
        %v2714 = vsel %vm2713, %v2706, %v2710
        %v2715 = vand.u32 2147483647, %v2705
        %vm2716 = vcmp.eq.f32.partialorder %v2715, 8.507059e+37
        %v2717 = vand.u32 %v2705, 2147483648
        %v2718 = vor.u32 1.1754944e-38, %v2717
        %v2719 = vsel %vm2716, %v2718, %v2714
        %v2720 = vmul.f32 1.0, %v2719
        %v2721 = vmul.f32 %v2720, %v2669
        %v2722 = vsub.f32 1.0, %v2720
        %v2723 = vmul.f32 %v2722, %v2642
        %v2724 = vadd.f32 %v2721, %v2723
        %v2725 = vmul.f32 %v2582, %v781
        %v2726 = vmul.f32 %v2642, %v781
        %v2727 = vsub.f32 %v2726, %v2725
        %v2728 = vand.u32 2147483647, %v2727
        %v2729 = vmul.f32 %v2669, %v781
        %v2730 = vsub.f32 %v2729, %v2725
        %v2731 = vand.u32 2147483647, %v2730
        %v2732 = vadd.f32 %v2728, %v2731
        %v2733 = vmul.f32 %v2724, %v781
        %v2734 = vsub.f32 %v2733, %v2725
        %v2735 = vand.u32 2147483647, %v2734
        %v2736 = vadd.f32 %v2732, %v2735
        %v2737 = vmul.f32 %v2736, %v2584
        %v2738 = vsel %vm970, %v2737, 0.0
        %2739 = vadd.xlane.f32.xlu0 %v2738
        %v2740 = vpop.xlane.xlu0 %2739
        %v2741 = vrot.slane %v2740, 4
        %v2742 = vadd.f32 %v2740, %v2741
        %v2743 = vrot.slane %v2742, 2
        %v2744 = vadd.f32 %v2742, %v2743
        %v2745 = vrot.slane %v2744, 1
        %v2746 = vadd.f32 %v2744, %v2745
        %s2747 = vtos %v2746
        %v2748 = vstv %s2747
        %v2749 = vsel %vm970, %v2584, 0.0
        %2750 = vadd.xlane.f32.xlu0 %v2749
        %v2751 = vpop.xlane.xlu0 %2750
        %v2752 = vrot.slane %v2751, 4
        %v2753 = vadd.f32 %v2751, %v2752
        %v2754 = vrot.slane %v2753, 2
        %v2755 = vadd.f32 %v2753, %v2754
        %v2756 = vrot.slane %v2755, 1
        %v2757 = vadd.f32 %v2755, %v2756
        %s2758 = vtos %v2757
        %v2759 = vstv %s2758
        %v2760 = vadd.f32 %v2759, 1e-12
        %v2761 = vrcp.pop %v2760
        %v2762 = vmul.f32 %v2748, %v2761
        %v2763 = vadd.f32 %v2511, %v2762
        %v2764 = vmul.f32 %v2645, %v2724
        %v2765 = vadd.f32 %v2644, %v2764
        %s2766 = scalar_lea.vmem %s772, 14
        %2767 = vst.msk [vmem:[%s2766] sm:$0x3] %vm970, %v2724
        %2768 = vrot.lane.b32.xlu0 %v2618, 72
        %v2769 = vpop.permute.xlu0 %2768
        %v2771 = vsel %vm805, %v2765, %v2676
        %v2772 = vsel %vm910, %v2771, %v2769
        %v2774 = vsel %vm1008, %v2772, 0
        %2776 = vmatpush.msra.mxu0 0.0
        %2777 = vmatpush.msra.mxu0 0.0
        %2778 = vmatpush.msra.mxu0 0.0
        %2779 = vmatpush.msra.mxu0 0.0
        %2780 = vmatpush.msra.mxu0 0.0
        %2781 = vmatpush.msra.mxu0 0.0
        %2782 = vmatpush.msra.mxu0 0.0
        %2783 = vmatpush.msra.mxu0 0.0
        %2784 = vmatpush.msra.mxu0 0.0
        %2785 = vmatpush.msra.mxu0 0.0
        %2786 = vmatpush.msra.mxu0 0.0
        %2787 = vmatpush.msra.mxu0 %v797
        %2788 = vmatpush.msra.mxu0 %v796
        %2789 = vmatpush.msra.mxu0 %v795
        %2790 = vmatpush.msra.mxu0 %v794
        %2791 = vmatpush.msra.mxu0 %v793
        %2792 = vmatmul.f32.gmra.mxu0 %v2774
        %v2793 = vpop.f32.mrf.mxu0
        %v2794 = vadd.f32 %v1006, %v2793
        %2795 = vdwg.mxu0
        %v2796 = vxor.u32 %v2794, 2147483648
        %v2797 = vmul.f32 %v2796, 1.442695
        %v2798 = vpow.pop %v2797
        %v2799 = vadd.f32 %v2798, 1.0
        %v2800 = vrcp.pop %v2799
        %v2801 = vmul.f32 %v2799, %v2800
        %v2802 = vsub.f32 1.0, %v2801
        %v2803 = vmul.f32 %v2800, %v2802
        %v2804 = vadd.f32 %v2800, %v2803
        %vm2805 = vweird.f32 %v2799
        %vm2806 = vweird.f32 %v2800
        %vm2807 = vmor %vm2805, %vm2806
        %v2808 = vsel %vm2807, %v2800, %v2804
        %v2809 = vand.u32 2147483647, %v2799
        %vm2810 = vcmp.eq.f32.partialorder %v2809, 8.507059e+37
        %v2811 = vand.u32 %v2799, 2147483648
        %v2812 = vor.u32 1.1754944e-38, %v2811
        %v2813 = vsel %vm2810, %v2812, %v2808
        %v2814 = vmul.f32 1.0, %v2813
        %v2815 = vtanh.pop %v2794
        %v2816 = vmul.f32 %v2814, %v2574
        %2818 = vrot.lane.b32.xlu0 %v2815, 32
        %v2819 = vpop.permute.xlu0 %2818
        %v2821 = vmul.f32 %v2814, %v2819
        %2823 = vrot.lane.b32.xlu0 %v2821, 32
        %v2824 = vpop.permute.xlu0 %2823
        %v2826 = vadd.f32 %v2816, %v2824
        %v2827 = vtanh.pop %v2826
        %2829 = vrot.lane.b32.xlu0 %v2827, 32
        %v2830 = vpop.permute.xlu0 %2829
        %v2832 = vmul.f32 %v2814, %v2830
        %v2833 = vld [vmem:[%s772] sm:$0x3]
        %v2834 = vld [vmem:[%s772 + $0x2] sm:$0x3]
        %v2835 = vld [vmem:[%s772 + $0x4] sm:$0x3]
        %v2836 = vld [vmem:[%s772 + $0x6] sm:$0x3]
        %v2837 = vld [vmem:[%s772 + $0x8] sm:$0x3]
        %v2838 = vld [vmem:[%s772 + $0xa] sm:$0x3]
        %v2839 = vld [vmem:[%s772 + $0xc] sm:$0x3]
        %v2840 = vld [vmem:[%s772 + $0xe] sm:$0x3]
        %v2841 = vld [vmem:[%s725] sm:$0x3]
        %v2842 = vld [vmem:[%s725 + $0x2] sm:$0x3]
        %v2843 = vld [vmem:[%s725 + $0x4] sm:$0x3]
        %v2844 = vld [vmem:[%s725 + $0x6] sm:$0x3]
        %v2845 = vld [vmem:[%s725 + $0x8] sm:$0x3]
        %v2846 = vld [vmem:[%s725 + $0xa] sm:$0x3]
        %v2847 = vld [vmem:[%s725 + $0xc] sm:$0x3]
        %v2848 = vld [vmem:[%s725 + $0xe] sm:$0x3]
        %v2849 = vld [vmem:[%s720] sm:$0x3]
        %v2850 = vld [vmem:[%s720 + $0x2] sm:$0x3]
        %v2851 = vld [vmem:[%s720 + $0x4] sm:$0x3]
        %v2852 = vld [vmem:[%s720 + $0x6] sm:$0x3]
        %v2853 = vld [vmem:[%s720 + $0x8] sm:$0x3]
        %v2854 = vld [vmem:[%s720 + $0xa] sm:$0x3]
        %v2855 = vld [vmem:[%s720 + $0xc] sm:$0x3]
        %v2856 = vld [vmem:[%s720 + $0xe] sm:$0x3]
        %v2857 = vmul.f32 %v2841, %v2849
        %v2858 = vmul.f32 %v2842, %v2850
        %v2859 = vmul.f32 %v2843, %v2851
        %v2860 = vmul.f32 %v2844, %v2852
        %v2861 = vmul.f32 %v2845, %v2853
        %v2862 = vmul.f32 %v2846, %v2854
        %v2863 = vmul.f32 %v2847, %v2855
        %v2864 = vmul.f32 %v2848, %v2856
        %v2865 = vsub.f32 1.0, %v2841
        %v2866 = vsub.f32 1.0, %v2842
        %v2867 = vsub.f32 1.0, %v2843
        %v2868 = vsub.f32 1.0, %v2844
        %v2869 = vsub.f32 1.0, %v2845
        %v2870 = vsub.f32 1.0, %v2846
        %v2871 = vsub.f32 1.0, %v2847
        %v2872 = vsub.f32 1.0, %v2848
        %v2873 = vmul.f32 %v2865, %v2833
        %v2874 = vmul.f32 %v2866, %v2834
        %v2875 = vmul.f32 %v2867, %v2835
        %v2876 = vmul.f32 %v2868, %v2836
        %v2877 = vmul.f32 %v2869, %v2837
        %v2878 = vmul.f32 %v2870, %v2838
        %v2879 = vmul.f32 %v2871, %v2839
        %v2880 = vmul.f32 %v2872, %v2840
        %v2881 = vadd.f32 %v2857, %v2873
        %v2882 = vadd.f32 %v2858, %v2874
        %v2883 = vadd.f32 %v2859, %v2875
        %v2884 = vadd.f32 %v2860, %v2876
        %v2885 = vadd.f32 %v2861, %v2877
        %v2886 = vadd.f32 %v2862, %v2878
        %v2887 = vadd.f32 %v2863, %v2879
        %v2888 = vadd.f32 %v2864, %v2880
        %2889 = vst.msk [vmem:[%s777] sm:$0x3] %vm970, %v2881
        %2890 = vst.msk [vmem:[%s777 + $0x2] sm:$0x3] %vm970, %v2882
        %2891 = vst.msk [vmem:[%s777 + $0x4] sm:$0x3] %vm970, %v2883
        %2892 = vst.msk [vmem:[%s777 + $0x6] sm:$0x3] %vm970, %v2884
        %2893 = vst.msk [vmem:[%s777 + $0x8] sm:$0x3] %vm970, %v2885
        %2894 = vst.msk [vmem:[%s777 + $0xa] sm:$0x3] %vm970, %v2886
        %2895 = vst.msk [vmem:[%s777 + $0xc] sm:$0x3] %vm970, %v2887
        %2896 = vst.msk [vmem:[%s777 + $0xe] sm:$0x3] %vm970, %v2888
        %2898 = vrot.lane.b32.xlu0 %v2832, 64
        %v2899 = vpop.permute.xlu0 %2898
        %vm2901 = vcmask 254976
        %2902 = vst.msk [vmem:[%s710] sm:$0x3] %vm2901, %v2899
        %v2903 = vmul.f32 %v2763, 0.041666668
        %vm2904 = vcmask 0
        %2905 = vst.msk [vmem:[%s780] sm:$0x1] %vm2904, %v2903
        %p2906 = scmp.lt.s32.totalorder %s32, 1
        %s2907 = scalar_select %p2906, %s32, 1
        %s2908 = smul.addr %s2907, 8
        %s2909 = smul.addr %s2908, 2
        %s2910 = scalar_lea.vmem %s14, %s2909
        %p2911 = scmp.lt.s32.totalorder %s32, 1
        %s2912 = scalar_select %p2911, %s32, 1
        %s2913 = smul.addr %s2912, 8
        %s2914 = smul.addr %s2913, 2
        %s2915 = scalar_lea.vmem %s15, %s2914
        %s2916 = sand.u32 %s451, 1
        %s2917 = scalar_lea.sflag [#allocation3], %s2916
        %s2918 = sand.u32 %s451, 1
        %s2919 = smul.addr %s2918, 2
        %s2920 = scalar_lea.vmem [#allocation2], %s2919
        %p2921 = scmp.lt.s32.totalorder %s32, 1
        %s2922 = scalar_select %p2921, %s32, 1
        %s2923 = scalar_lea.vmem %s17, %s2922
        // Predicated region
        $region77: #{tpu_custom_call.1} parent=75 // pred_check
          %p2924 = pneg %p409
        $region78: #{tpu_custom_call.1} parent=75 // pred_check_branch
          %2926 = sbr.rel (%p2924) target = $region80
        $region79: #{tpu_custom_call.1} parent=75 // pred_region
          _
        $region80: #{tpu_custom_call.1} parent=75 // pred_fallthru
          _
        // Predicated region
        $region81: #{tpu_custom_call.1} parent=75 // pred_check
          %p2927 = pneg %p435
        $region82: #{tpu_custom_call.1} parent=75 // pred_check_branch
          %2929 = sbr.rel (%p2927) target = $region84
        $region83: #{tpu_custom_call.1} parent=75 // pred_region
          _
        $region84: #{tpu_custom_call.1} parent=75 // pred_fallthru
          _
        // Predicated region
        $region85: #{tpu_custom_call.1} parent=75 // pred_check
          %p2930 = pneg %p461
        $region86: #{tpu_custom_call.1} parent=75 // pred_check_branch
          %2932 = sbr.rel (%p2930) target = $region88
        $region87: #{tpu_custom_call.1} parent=75 // pred_region
          %2934 = vsyncadd %s2917, 0
          %s2935 = smul.addr %s32, 2
          %s2936 = scalar_lea.hbm %s16, %s2935
          %s2938 = sshll.u32 %s2920, 4
          %s2939 = int_to_ptr.vmem [resolvable:$true] %s2938
          %s2940 = sshll.u32 %s2936, 4
          %s2941 = int_to_ptr.hbm [resolvable:$true] %s2940
          %2943 = dma.vmem_to_hbm [thread:$0]  %s2939, 32, %s2941, %s2917
        $region88: #{tpu_custom_call.1} parent=75 // pred_fallthru
          _
        // Predicated region
        $region89: #{tpu_custom_call.1} parent=75 // pred_check
          %p2944 = pneg %p487
        $region90: #{tpu_custom_call.1} parent=75 // pred_check_branch
          %2946 = sbr.rel (%p2944) target = $region92
        $region91: #{tpu_custom_call.1} parent=75 // pred_region
          _
        $region92: #{tpu_custom_call.1} parent=75 // pred_fallthru
          _
      $region76: #{tpu_custom_call.1} parent=5 // pred_fallthru
        _
      %p2947 = scmp.le.s32.totalorder 2, %s27
      // Predicated region
      $region93: #{tpu_custom_call.1} parent=5 // pred_check
        %p2948 = pneg %p2947
      $region94: #{tpu_custom_call.1} parent=5 // pred_check_branch
        %2950 = sbr.rel (%p2948) target = $region96
      $region95: #{tpu_custom_call.1} parent=5 // pred_region
        %s2951 = ssub.s32 %s27, 2
        // Predicated region
        $region97: #{tpu_custom_call.1} parent=95 // pred_check
          %p2952 = pneg %p415
        $region98: #{tpu_custom_call.1} parent=95 // pred_check_branch
          %2954 = sbr.rel (%p2952) target = $region100
        $region99: #{tpu_custom_call.1} parent=95 // pred_region
          %p2955 = scmp.lt.s32.totalorder %s33, 1
          %s2956 = scalar_select %p2955, %s33, 1
          %s2957 = smul.addr %s2956, 8
          %s2958 = smul.addr %s2957, 2
          %s2959 = scalar_lea.vmem %s14, %s2958
        $region100: #{tpu_custom_call.1} parent=95 // pred_fallthru
          _
        // Predicated region
        $region101: #{tpu_custom_call.1} parent=95 // pred_check
          %p2960 = pneg %p441
        $region102: #{tpu_custom_call.1} parent=95 // pred_check_branch
          %2962 = sbr.rel (%p2960) target = $region104
        $region103: #{tpu_custom_call.1} parent=95 // pred_region
          %p2963 = scmp.lt.s32.totalorder %s33, 1
          %s2964 = scalar_select %p2963, %s33, 1
          %s2965 = smul.addr %s2964, 8
          %s2966 = smul.addr %s2965, 2
          %s2967 = scalar_lea.vmem %s15, %s2966
        $region104: #{tpu_custom_call.1} parent=95 // pred_fallthru
          _
        // Predicated region
        $region105: #{tpu_custom_call.1} parent=95 // pred_check
          %p2968 = pneg %p467
        $region106: #{tpu_custom_call.1} parent=95 // pred_check_branch
          %2970 = sbr.rel (%p2968) target = $region108
        $region107: #{tpu_custom_call.1} parent=95 // pred_region
          %s2971 = sand.u32 %s452, 1
          %s2972 = scalar_lea.sflag [#allocation3], %s2971
          %s2973 = sand.u32 %s452, 1
          %s2974 = smul.addr %s2973, 2
          %s2975 = scalar_lea.vmem [#allocation2], %s2974
          %2977 = dma.done %s2972, 32
        $region108: #{tpu_custom_call.1} parent=95 // pred_fallthru
          _
        // Predicated region
        $region109: #{tpu_custom_call.1} parent=95 // pred_check
          %p2978 = pneg %p493
        $region110: #{tpu_custom_call.1} parent=95 // pred_check_branch
          %2980 = sbr.rel (%p2978) target = $region112
        $region111: #{tpu_custom_call.1} parent=95 // pred_region
          %p2981 = scmp.lt.s32.totalorder %s33, 1
          %s2982 = scalar_select %p2981, %s33, 1
          %s2983 = scalar_lea.vmem %s17, %s2982
        $region112: #{tpu_custom_call.1} parent=95 // pred_fallthru
          _
      $region96: #{tpu_custom_call.1} parent=5 // pred_fallthru
        _
    $region6: #{tpu_custom_call.1} parent=1 // loop_footer
      %s31 = sadd.s32 1, %s27
    $region7: #{tpu_custom_call.1} parent=1 // loop_footer_branch
      %26 = sbr.rel target = $region3
    $region8: #{tpu_custom_call.1} parent=1 // loop_exit
      _
    %2984 = vsyncpa [#allocation3], 1
    %s2985 = scalar_lea.sflag [#allocation3], 1
    %2986 = vsyncpa %s2985, 1

</llo_original>
